<compile_context>
chip_gen: v7x
topology: tpu7x:2x2x1
jax: 0.10.0
libtpu: 0.0.40
codegen_flags: <defaults>
</compile_context>

<pallas_src>
import functools

import numpy as np

import jax
import jax.numpy as jnp
from jax import lax
from jax.experimental import pallas as pl
from jax.experimental.pallas import tpu as pltpu


# ------------------------------ fused kernel ------------------------------

def _net_fused_kernel(x_ref, w1b_ref, b1p_ref, w2b_ref, b2p_ref,
                      wf1_ref, bf1_ref, wf2_ref, bf2_ref, o_ref, *, tile_b):
    outs = []
    for b in range(tile_b):                                   # unrolled
        x = x_ref[0, b]                                       # (28, 28)

        # conv1 + ReLU -> packed (26, 26*8); y1[i, j*8+o] = relu(conv1)[o,i,j]
        y1 = jnp.dot(x[0:26, :], w1b_ref[0], preferred_element_type=jnp.float32)
        y1 = y1 + jnp.dot(x[1:27, :], w1b_ref[1], preferred_element_type=jnp.float32)
        y1 = y1 + jnp.dot(x[2:28, :], w1b_ref[2], preferred_element_type=jnp.float32)
        y1 = jnp.maximum(y1 + b1p_ref[...], 0.0)

        # conv2 + ReLU -> packed (24, 24*16); lane-dense (384 = 3*128)
        y2 = jnp.dot(y1[0:24, :], w2b_ref[0], preferred_element_type=jnp.float32)
        y2 = y2 + jnp.dot(y1[1:25, :], w2b_ref[1], preferred_element_type=jnp.float32)
        y2 = y2 + jnp.dot(y1[2:26, :], w2b_ref[2], preferred_element_type=jnp.float32)
        y2 = jnp.maximum(y2 + b2p_ref[...], 0.0)

        # maxpool(2,2) fused with fc1.  For pooled output row p:
        #   rmax   = max over the two conv rows 2p, 2p+1            (H pooling)
        #   pooled = max(rmax[l], rmax[l+16]); at lane l=32q+o this (W pooling)
        #            is pool[p,q,o].  fc1 weights were scattered to lanes
        #            32q+o (zeros on the garbage lanes), so a plain dot sums
        #            exactly the PyTorch x.view(-1, 12*12*16) @ fc1.weight.T.
        acc = bf1_ref[...]                                    # (1, 128)
        for p in range(12):
            rmax = jnp.maximum(y2[2 * p:2 * p + 1, :], y2[2 * p + 1:2 * p + 2, :])
            pooled = jnp.maximum(rmax[:, 0:368], rmax[:, 16:384])     # (1, 368)
            acc = acc + jnp.dot(pooled, wf1_ref[p],
                                preferred_element_type=jnp.float32)
        h = jnp.maximum(acc, 0.0)                             # fc1 + ReLU (1,128)

        out = jnp.dot(h, wf2_ref[...],
                      preferred_element_type=jnp.float32) + bf2_ref[...]
        outs.append(out)                                      # (1, 10)

    o_ref[...] = jnp.concatenate(outs, axis=0)[None]          # (1, tile_b, 10)


def _pick_tile_b(batch):
    # Amortize per-step overhead for large batches while keeping >= 2 grid
    # steps so the batch axis can be sharded across TensorCores (v7x).
    for cand in (8, 4, 2):
        if batch % cand == 0 and batch // cand >= 2:
            return cand
    return 1


def net_forward(x_nchw, prepped):
    w1b, b1p, w2b, b2p, wf1m, bf1, wf2, bf2 = prepped
    B = x_nchw.shape[0]
    tile_b = _pick_tile_b(B)
    nt = B // tile_b
    x = x_nchw.reshape(nt, tile_b, 28, 28)                    # C=1, free reshape

    kernel = functools.partial(_net_fused_kernel, tile_b=tile_b)
    out = pl.pallas_call(
        kernel,
        out_shape=jax.ShapeDtypeStruct((nt, tile_b, 10), jnp.float32),
        grid=(nt,),
        in_specs=[
            pl.BlockSpec((1, tile_b, 28, 28), lambda i: (i, 0, 0, 0)),  # x tile
            pl.BlockSpec((3, 28, 208), lambda i: (0, 0, 0)),            # conv1 band
            pl.BlockSpec((1, 208), lambda i: (0, 0)),                   # conv1 bias (packed)
            pl.BlockSpec((3, 208, 384), lambda i: (0, 0, 0)),           # conv2 band
            pl.BlockSpec((1, 384), lambda i: (0, 0)),                   # conv2 bias (packed)
            pl.BlockSpec((12, 368, 128), lambda i: (0, 0, 0)),          # fc1 (scattered)
            pl.BlockSpec((1, 128), lambda i: (0, 0)),                   # fc1 bias
            pl.BlockSpec((128, 10), lambda i: (0, 0)),                  # fc2
            pl.BlockSpec((1, 10), lambda i: (0, 0)),                    # fc2 bias
        ],
        out_specs=pl.BlockSpec((1, tile_b, 10), lambda i: (i, 0, 0)),
        compiler_params=pltpu.CompilerParams(
            dimension_semantics=("parallel",),
            vmem_limit_bytes=32 * 1024 * 1024),
    )(x, w1b, b1p, w2b, b2p, wf1m, bf1, wf2, bf2)
    return out.reshape(B, 10)


# ------------------- static weight repacking (init time) ------------------

def prepare_params(params):
    """Repack PyTorch-layout weights into banded / lane-scattered matrices.
    Done once outside the jitted forward (free at runtime)."""
    w1, b1, w2, b2, wf1, bf1, wf2, bf2 = [np.asarray(p, np.float32) for p in params]
    C1, C2 = 8, 16

    # conv1 band: (3, 28, 26*8);  w1b[ki, j+kj, j*8+o] = w1[o, 0, ki, kj]
    w1b = np.zeros((3, 28, 26 * C1), np.float32)
    for ki in range(3):
        for j in range(26):
            for kj in range(3):
                w1b[ki, j + kj, j * C1:(j + 1) * C1] = w1[:, 0, ki, kj]
    b1p = np.tile(b1, 26).reshape(1, 26 * C1)

    # conv2 band: (3, 26*8, 24*16);  w2b[ki, (j+kj)*8+c, j*16+o] = w2[o, c, ki, kj]
    w2b = np.zeros((3, 26 * C1, 24 * C2), np.float32)
    for ki in range(3):
        for j in range(24):
            for kj in range(3):
                w = j + kj
                w2b[ki, w * C1:(w + 1) * C1, j * C2:(j + 1) * C2] = w2[:, :, ki, kj].T
    b2p = np.tile(b2, 24).reshape(1, 24 * C2)

    # fc1 scattered to pooled packed lanes: pooled (p,q,o) lives on lane 32q+o.
    # PyTorch flatten order of (B,16,12,12) is idx = o*144 + p*12 + q.
    wf1m = np.zeros((12, 368, 128), np.float32)
    for p in range(12):
        for q in range(12):
            for o in range(16):
                wf1m[p, 32 * q + o, :] = wf1[:, o * 144 + p * 12 + q]

    return tuple(jnp.asarray(a) for a in (
        w1b, b1p, w2b, b2p, wf1m, bf1.reshape(1, 128), wf2.T, bf2.reshape(1, 10)))


def init_params(key):
    """Parameters in PyTorch layout: conv (O,C,kh,kw), linear (out,in)."""
    ks = jax.random.split(key, 8)
    s = 0.05
    w1 = s * jax.random.normal(ks[0], (8, 1, 3, 3), jnp.float32)
    b1 = s * jax.random.normal(ks[1], (8,), jnp.float32)
    w2 = s * jax.random.normal(ks[2], (16, 8, 3, 3), jnp.float32)
    b2 = s * jax.random.normal(ks[3], (16,), jnp.float32)
    wf1 = s * jax.random.normal(ks[4], (128, 12 * 12 * 16), jnp.float32)
    bf1 = s * jax.random.normal(ks[5], (128,), jnp.float32)
    wf2 = s * jax.random.normal(ks[6], (10, 128), jnp.float32)
    bf2 = s * jax.random.normal(ks[7], (10,), jnp.float32)
    return (w1, b1, w2, b2, wf1, bf1, wf2, bf2)


# ------------------------- pure-JAX reference model ------------------------

def net_reference(x_nchw, params):
    w1, b1, w2, b2, wf1, bf1, wf2, bf2 = params
    dn = ('NCHW', 'OIHW', 'NCHW')
    y = lax.conv_general_dilated(x_nchw, w1, (1, 1), 'VALID', dimension_numbers=dn)
    y = jnp.maximum(y + b1[None, :, None, None], 0.0)
    y = lax.conv_general_dilated(y, w2, (1, 1), 'VALID', dimension_numbers=dn)
    y = jnp.maximum(y + b2[None, :, None, None], 0.0)
    y = lax.reduce_window(y, -jnp.inf, lax.max, (1, 1, 2, 2), (1, 1, 2, 2), 'VALID')
    flat = y.reshape(y.shape[0], -1)                          # (B, 16*12*12), (C,H,W) order
    h = jnp.maximum(flat @ wf1.T + bf1, 0.0)
    return h @ wf2.T + bf2


if __name__ == "__main__":
    key = jax.random.PRNGKey(0)
    kx, kp = jax.random.split(key)
    # Input implied by the module: 28x28 single-channel images (NCHW).
    x = jax.random.normal(kx, (2, 1, 28, 28), jnp.float32)
    params = init_params(kp)
    prepped = prepare_params(params)

    fwd = jax.jit(net_forward)
    out = fwd(x, prepped)
    jax.block_until_ready(out)
    assert out.shape == (2, 10) and out.dtype == jnp.float32

    ref = net_reference(x, params)
    assert jnp.allclose(out, ref, rtol=2e-3, atol=2e-3), "mismatch vs reference"
    print("KERNEL_OK")
</pallas_src>

<mosaic_0001>
module attributes {stable_mosaic.version = 11 : i64} {
  func.func @_net_fused_kernel(%arg0: i32, %arg1: memref<1x1x28x28xf32, #tpu.memory_space<vmem>>, %arg2: memref<3x28x208xf32, #tpu.memory_space<vmem>>, %arg3: memref<1x208xf32, #tpu.memory_space<vmem>>, %arg4: memref<3x208x384xf32, #tpu.memory_space<vmem>>, %arg5: memref<1x384xf32, #tpu.memory_space<vmem>>, %arg6: memref<12x368x128xf32, #tpu.memory_space<vmem>>, %arg7: memref<1x128xf32, #tpu.memory_space<vmem>>, %arg8: memref<128x10xf32, #tpu.memory_space<vmem>>, %arg9: memref<1x10xf32, #tpu.memory_space<vmem>>, %arg10: memref<1x1x10xf32, #tpu.memory_space<vmem>>) attributes {dimension_semantics = [#tpu.dimension_semantics<parallel>], iteration_bounds = array<i64: 2>, scalar_prefetch = 0 : i64, scratch_operands = 0 : i64, tpu.core_type = #tpu.core_type<tc>, window_params = [{transform_indices = @transform_0, window_bounds = array<i64: 1, 1, 28, 28>}, {pipeline_mode = #tpu.pipeline_mode<synchronous>, transform_indices = @transform_1, window_bounds = array<i64: 3, 28, 208>}, {pipeline_mode = #tpu.pipeline_mode<synchronous>, transform_indices = @transform_2, window_bounds = array<i64: 1, 208>}, {pipeline_mode = #tpu.pipeline_mode<synchronous>, transform_indices = @transform_3, window_bounds = array<i64: 3, 208, 384>}, {pipeline_mode = #tpu.pipeline_mode<synchronous>, transform_indices = @transform_4, window_bounds = array<i64: 1, 384>}, {pipeline_mode = #tpu.pipeline_mode<synchronous>, transform_indices = @transform_5, window_bounds = array<i64: 12, 368, 128>}, {pipeline_mode = #tpu.pipeline_mode<synchronous>, transform_indices = @transform_6, window_bounds = array<i64: 1, 128>}, {pipeline_mode = #tpu.pipeline_mode<synchronous>, transform_indices = @transform_7, window_bounds = array<i64: 128, 10>}, {pipeline_mode = #tpu.pipeline_mode<synchronous>, transform_indices = @transform_8, window_bounds = array<i64: 1, 10>}, {transform_indices = @transform_9, window_bounds = array<i64: 1, 1, 10>}]} {
    %c0 = arith.constant 0 : index
    %c0_0 = arith.constant 0 : index
    %c0_1 = arith.constant 0 : index
    %c0_2 = arith.constant 0 : index
    %0 = vector.load %arg1[%c0, %c0_0, %c0_1, %c0_2] : memref<1x1x28x28xf32, #tpu.memory_space<vmem>>, vector<1x1x28x28xf32>
    %1 = vector.shape_cast %0 : vector<1x1x28x28xf32> to vector<28x28xf32>
    %2 = vector.extract_strided_slice %1 {offsets = [0, 0], sizes = [26, 28], strides = [1, 1]} : vector<28x28xf32> to vector<26x28xf32>
    %c0_3 = arith.constant 0 : index
    %c0_4 = arith.constant 0 : index
    %c0_5 = arith.constant 0 : index
    %3 = vector.load %arg2[%c0_3, %c0_4, %c0_5] : memref<3x28x208xf32, #tpu.memory_space<vmem>>, vector<1x28x208xf32>
    %4 = vector.shape_cast %3 : vector<1x28x208xf32> to vector<28x208xf32>
    %cst = arith.constant dense<0.000000e+00> : vector<26x208xf32>
    %5 = tpu.matmul %2, %4, %cst {dimension_numbers = #tpu.dot_dimension_numbers<[1], [0], [0], [1], [0, 0, 1, 1], [], []>} : vector<26x28xf32>, vector<28x208xf32>, vector<26x208xf32> -> vector<26x208xf32>
    %6 = vector.extract_strided_slice %1 {offsets = [1, 0], sizes = [26, 28], strides = [1, 1]} : vector<28x28xf32> to vector<26x28xf32>
    %c1 = arith.constant 1 : index
    %c0_6 = arith.constant 0 : index
    %c0_7 = arith.constant 0 : index
    %7 = vector.load %arg2[%c1, %c0_6, %c0_7] : memref<3x28x208xf32, #tpu.memory_space<vmem>>, vector<1x28x208xf32>
    %8 = vector.shape_cast %7 : vector<1x28x208xf32> to vector<28x208xf32>
    %cst_8 = arith.constant dense<0.000000e+00> : vector<26x208xf32>
    %9 = tpu.matmul %6, %8, %cst_8 {dimension_numbers = #tpu.dot_dimension_numbers<[1], [0], [0], [1], [0, 0, 1, 1], [], []>} : vector<26x28xf32>, vector<28x208xf32>, vector<26x208xf32> -> vector<26x208xf32>
    %10 = arith.addf %5, %9 : vector<26x208xf32>
    %11 = vector.extract_strided_slice %1 {offsets = [2, 0], sizes = [26, 28], strides = [1, 1]} : vector<28x28xf32> to vector<26x28xf32>
    %c2 = arith.constant 2 : index
    %c0_9 = arith.constant 0 : index
    %c0_10 = arith.constant 0 : index
    %12 = vector.load %arg2[%c2, %c0_9, %c0_10] : memref<3x28x208xf32, #tpu.memory_space<vmem>>, vector<1x28x208xf32>
    %13 = vector.shape_cast %12 : vector<1x28x208xf32> to vector<28x208xf32>
    %cst_11 = arith.constant dense<0.000000e+00> : vector<26x208xf32>
    %14 = tpu.matmul %11, %13, %cst_11 {dimension_numbers = #tpu.dot_dimension_numbers<[1], [0], [0], [1], [0, 0, 1, 1], [], []>} : vector<26x28xf32>, vector<28x208xf32>, vector<26x208xf32> -> vector<26x208xf32>
    %15 = arith.addf %10, %14 : vector<26x208xf32>
    %c0_12 = arith.constant 0 : index
    %c0_13 = arith.constant 0 : index
    %16 = vector.load %arg3[%c0_12, %c0_13] : memref<1x208xf32, #tpu.memory_space<vmem>>, vector<1x208xf32>
    %17 = vector.broadcast %16 : vector<1x208xf32> to vector<26x208xf32>
    %18 = arith.addf %15, %17 : vector<26x208xf32>
    %cst_14 = arith.constant 0.000000e+00 : f32
    %19 = vector.broadcast %cst_14 : f32 to vector<26x208xf32>
    %20 = arith.maximumf %18, %19 : vector<26x208xf32>
    %21 = vector.extract_strided_slice %20 {offsets = [0, 0], sizes = [24, 208], strides = [1, 1]} : vector<26x208xf32> to vector<24x208xf32>
    %c0_15 = arith.constant 0 : index
    %c0_16 = arith.constant 0 : index
    %c0_17 = arith.constant 0 : index
    %22 = vector.load %arg4[%c0_15, %c0_16, %c0_17] : memref<3x208x384xf32, #tpu.memory_space<vmem>>, vector<1x208x384xf32>
    %23 = vector.shape_cast %22 : vector<1x208x384xf32> to vector<208x384xf32>
    %cst_18 = arith.constant dense<0.000000e+00> : vector<24x384xf32>
    %24 = tpu.matmul %21, %23, %cst_18 {dimension_numbers = #tpu.dot_dimension_numbers<[1], [0], [0], [1], [0, 0, 1, 1], [], []>} : vector<24x208xf32>, vector<208x384xf32>, vector<24x384xf32> -> vector<24x384xf32>
    %25 = vector.extract_strided_slice %20 {offsets = [1, 0], sizes = [24, 208], strides = [1, 1]} : vector<26x208xf32> to vector<24x208xf32>
    %c1_19 = arith.constant 1 : index
    %c0_20 = arith.constant 0 : index
    %c0_21 = arith.constant 0 : index
    %26 = vector.load %arg4[%c1_19, %c0_20, %c0_21] : memref<3x208x384xf32, #tpu.memory_space<vmem>>, vector<1x208x384xf32>
    %27 = vector.shape_cast %26 : vector<1x208x384xf32> to vector<208x384xf32>
    %cst_22 = arith.constant dense<0.000000e+00> : vector<24x384xf32>
    %28 = tpu.matmul %25, %27, %cst_22 {dimension_numbers = #tpu.dot_dimension_numbers<[1], [0], [0], [1], [0, 0, 1, 1], [], []>} : vector<24x208xf32>, vector<208x384xf32>, vector<24x384xf32> -> vector<24x384xf32>
    %29 = arith.addf %24, %28 : vector<24x384xf32>
    %30 = vector.extract_strided_slice %20 {offsets = [2, 0], sizes = [24, 208], strides = [1, 1]} : vector<26x208xf32> to vector<24x208xf32>
    %c2_23 = arith.constant 2 : index
    %c0_24 = arith.constant 0 : index
    %c0_25 = arith.constant 0 : index
    %31 = vector.load %arg4[%c2_23, %c0_24, %c0_25] : memref<3x208x384xf32, #tpu.memory_space<vmem>>, vector<1x208x384xf32>
    %32 = vector.shape_cast %31 : vector<1x208x384xf32> to vector<208x384xf32>
    %cst_26 = arith.constant dense<0.000000e+00> : vector<24x384xf32>
    %33 = tpu.matmul %30, %32, %cst_26 {dimension_numbers = #tpu.dot_dimension_numbers<[1], [0], [0], [1], [0, 0, 1, 1], [], []>} : vector<24x208xf32>, vector<208x384xf32>, vector<24x384xf32> -> vector<24x384xf32>
    %34 = arith.addf %29, %33 : vector<24x384xf32>
    %c0_27 = arith.constant 0 : index
    %c0_28 = arith.constant 0 : index
    %35 = vector.load %arg5[%c0_27, %c0_28] : memref<1x384xf32, #tpu.memory_space<vmem>>, vector<1x384xf32>
    %36 = vector.broadcast %35 : vector<1x384xf32> to vector<24x384xf32>
    %37 = arith.addf %34, %36 : vector<24x384xf32>
    %cst_29 = arith.constant 0.000000e+00 : f32
    %38 = vector.broadcast %cst_29 : f32 to vector<24x384xf32>
    %39 = arith.maximumf %37, %38 : vector<24x384xf32>
    %c0_30 = arith.constant 0 : index
    %c0_31 = arith.constant 0 : index
    %40 = vector.load %arg7[%c0_30, %c0_31] : memref<1x128xf32, #tpu.memory_space<vmem>>, vector<1x128xf32>
    %41 = vector.extract_strided_slice %39 {offsets = [0, 0], sizes = [1, 384], strides = [1, 1]} : vector<24x384xf32> to vector<1x384xf32>
    %42 = vector.extract_strided_slice %39 {offsets = [1, 0], sizes = [1, 384], strides = [1, 1]} : vector<24x384xf32> to vector<1x384xf32>
    %43 = arith.maximumf %41, %42 : vector<1x384xf32>
    %44 = vector.extract_strided_slice %43 {offsets = [0, 0], sizes = [1, 368], strides = [1, 1]} : vector<1x384xf32> to vector<1x368xf32>
    %45 = vector.extract_strided_slice %43 {offsets = [0, 16], sizes = [1, 368], strides = [1, 1]} : vector<1x384xf32> to vector<1x368xf32>
    %46 = arith.maximumf %44, %45 : vector<1x368xf32>
    %c0_32 = arith.constant 0 : index
    %c0_33 = arith.constant 0 : index
    %c0_34 = arith.constant 0 : index
    %47 = vector.load %arg6[%c0_32, %c0_33, %c0_34] : memref<12x368x128xf32, #tpu.memory_space<vmem>>, vector<1x368x128xf32>
    %48 = vector.shape_cast %47 : vector<1x368x128xf32> to vector<368x128xf32>
    %cst_35 = arith.constant dense<0.000000e+00> : vector<1x128xf32>
    %49 = tpu.matmul %46, %48, %cst_35 {dimension_numbers = #tpu.dot_dimension_numbers<[1], [0], [0], [1], [0, 0, 1, 1], [], []>} : vector<1x368xf32>, vector<368x128xf32>, vector<1x128xf32> -> vector<1x128xf32>
    %50 = arith.addf %40, %49 : vector<1x128xf32>
    %51 = vector.extract_strided_slice %39 {offsets = [2, 0], sizes = [1, 384], strides = [1, 1]} : vector<24x384xf32> to vector<1x384xf32>
    %52 = vector.extract_strided_slice %39 {offsets = [3, 0], sizes = [1, 384], strides = [1, 1]} : vector<24x384xf32> to vector<1x384xf32>
    %53 = arith.maximumf %51, %52 : vector<1x384xf32>
    %54 = vector.extract_strided_slice %53 {offsets = [0, 0], sizes = [1, 368], strides = [1, 1]} : vector<1x384xf32> to vector<1x368xf32>
    %55 = vector.extract_strided_slice %53 {offsets = [0, 16], sizes = [1, 368], strides = [1, 1]} : vector<1x384xf32> to vector<1x368xf32>
    %56 = arith.maximumf %54, %55 : vector<1x368xf32>
    %c1_36 = arith.constant 1 : index
    %c0_37 = arith.constant 0 : index
    %c0_38 = arith.constant 0 : index
    %57 = vector.load %arg6[%c1_36, %c0_37, %c0_38] : memref<12x368x128xf32, #tpu.memory_space<vmem>>, vector<1x368x128xf32>
    %58 = vector.shape_cast %57 : vector<1x368x128xf32> to vector<368x128xf32>
    %cst_39 = arith.constant dense<0.000000e+00> : vector<1x128xf32>
    %59 = tpu.matmul %56, %58, %cst_39 {dimension_numbers = #tpu.dot_dimension_numbers<[1], [0], [0], [1], [0, 0, 1, 1], [], []>} : vector<1x368xf32>, vector<368x128xf32>, vector<1x128xf32> -> vector<1x128xf32>
    %60 = arith.addf %50, %59 : vector<1x128xf32>
    %61 = vector.extract_strided_slice %39 {offsets = [4, 0], sizes = [1, 384], strides = [1, 1]} : vector<24x384xf32> to vector<1x384xf32>
    %62 = vector.extract_strided_slice %39 {offsets = [5, 0], sizes = [1, 384], strides = [1, 1]} : vector<24x384xf32> to vector<1x384xf32>
    %63 = arith.maximumf %61, %62 : vector<1x384xf32>
    %64 = vector.extract_strided_slice %63 {offsets = [0, 0], sizes = [1, 368], strides = [1, 1]} : vector<1x384xf32> to vector<1x368xf32>
    %65 = vector.extract_strided_slice %63 {offsets = [0, 16], sizes = [1, 368], strides = [1, 1]} : vector<1x384xf32> to vector<1x368xf32>
    %66 = arith.maximumf %64, %65 : vector<1x368xf32>
    %c2_40 = arith.constant 2 : index
    %c0_41 = arith.constant 0 : index
    %c0_42 = arith.constant 0 : index
    %67 = vector.load %arg6[%c2_40, %c0_41, %c0_42] : memref<12x368x128xf32, #tpu.memory_space<vmem>>, vector<1x368x128xf32>
    %68 = vector.shape_cast %67 : vector<1x368x128xf32> to vector<368x128xf32>
    %cst_43 = arith.constant dense<0.000000e+00> : vector<1x128xf32>
    %69 = tpu.matmul %66, %68, %cst_43 {dimension_numbers = #tpu.dot_dimension_numbers<[1], [0], [0], [1], [0, 0, 1, 1], [], []>} : vector<1x368xf32>, vector<368x128xf32>, vector<1x128xf32> -> vector<1x128xf32>
    %70 = arith.addf %60, %69 : vector<1x128xf32>
    %71 = vector.extract_strided_slice %39 {offsets = [6, 0], sizes = [1, 384], strides = [1, 1]} : vector<24x384xf32> to vector<1x384xf32>
    %72 = vector.extract_strided_slice %39 {offsets = [7, 0], sizes = [1, 384], strides = [1, 1]} : vector<24x384xf32> to vector<1x384xf32>
    %73 = arith.maximumf %71, %72 : vector<1x384xf32>
    %74 = vector.extract_strided_slice %73 {offsets = [0, 0], sizes = [1, 368], strides = [1, 1]} : vector<1x384xf32> to vector<1x368xf32>
    %75 = vector.extract_strided_slice %73 {offsets = [0, 16], sizes = [1, 368], strides = [1, 1]} : vector<1x384xf32> to vector<1x368xf32>
    %76 = arith.maximumf %74, %75 : vector<1x368xf32>
    %c3 = arith.constant 3 : index
    %c0_44 = arith.constant 0 : index
    %c0_45 = arith.constant 0 : index
    %77 = vector.load %arg6[%c3, %c0_44, %c0_45] : memref<12x368x128xf32, #tpu.memory_space<vmem>>, vector<1x368x128xf32>
    %78 = vector.shape_cast %77 : vector<1x368x128xf32> to vector<368x128xf32>
    %cst_46 = arith.constant dense<0.000000e+00> : vector<1x128xf32>
    %79 = tpu.matmul %76, %78, %cst_46 {dimension_numbers = #tpu.dot_dimension_numbers<[1], [0], [0], [1], [0, 0, 1, 1], [], []>} : vector<1x368xf32>, vector<368x128xf32>, vector<1x128xf32> -> vector<1x128xf32>
    %80 = arith.addf %70, %79 : vector<1x128xf32>
    %81 = vector.extract_strided_slice %39 {offsets = [8, 0], sizes = [1, 384], strides = [1, 1]} : vector<24x384xf32> to vector<1x384xf32>
    %82 = vector.extract_strided_slice %39 {offsets = [9, 0], sizes = [1, 384], strides = [1, 1]} : vector<24x384xf32> to vector<1x384xf32>
    %83 = arith.maximumf %81, %82 : vector<1x384xf32>
    %84 = vector.extract_strided_slice %83 {offsets = [0, 0], sizes = [1, 368], strides = [1, 1]} : vector<1x384xf32> to vector<1x368xf32>
    %85 = vector.extract_strided_slice %83 {offsets = [0, 16], sizes = [1, 368], strides = [1, 1]} : vector<1x384xf32> to vector<1x368xf32>
    %86 = arith.maximumf %84, %85 : vector<1x368xf32>
    %c4 = arith.constant 4 : index
    %c0_47 = arith.constant 0 : index
    %c0_48 = arith.constant 0 : index
    %87 = vector.load %arg6[%c4, %c0_47, %c0_48] : memref<12x368x128xf32, #tpu.memory_space<vmem>>, vector<1x368x128xf32>
    %88 = vector.shape_cast %87 : vector<1x368x128xf32> to vector<368x128xf32>
    %cst_49 = arith.constant dense<0.000000e+00> : vector<1x128xf32>
    %89 = tpu.matmul %86, %88, %cst_49 {dimension_numbers = #tpu.dot_dimension_numbers<[1], [0], [0], [1], [0, 0, 1, 1], [], []>} : vector<1x368xf32>, vector<368x128xf32>, vector<1x128xf32> -> vector<1x128xf32>
    %90 = arith.addf %80, %89 : vector<1x128xf32>
    %91 = vector.extract_strided_slice %39 {offsets = [10, 0], sizes = [1, 384], strides = [1, 1]} : vector<24x384xf32> to vector<1x384xf32>
    %92 = vector.extract_strided_slice %39 {offsets = [11, 0], sizes = [1, 384], strides = [1, 1]} : vector<24x384xf32> to vector<1x384xf32>
    %93 = arith.maximumf %91, %92 : vector<1x384xf32>
    %94 = vector.extract_strided_slice %93 {offsets = [0, 0], sizes = [1, 368], strides = [1, 1]} : vector<1x384xf32> to vector<1x368xf32>
    %95 = vector.extract_strided_slice %93 {offsets = [0, 16], sizes = [1, 368], strides = [1, 1]} : vector<1x384xf32> to vector<1x368xf32>
    %96 = arith.maximumf %94, %95 : vector<1x368xf32>
    %c5 = arith.constant 5 : index
    %c0_50 = arith.constant 0 : index
    %c0_51 = arith.constant 0 : index
    %97 = vector.load %arg6[%c5, %c0_50, %c0_51] : memref<12x368x128xf32, #tpu.memory_space<vmem>>, vector<1x368x128xf32>
    %98 = vector.shape_cast %97 : vector<1x368x128xf32> to vector<368x128xf32>
    %cst_52 = arith.constant dense<0.000000e+00> : vector<1x128xf32>
    %99 = tpu.matmul %96, %98, %cst_52 {dimension_numbers = #tpu.dot_dimension_numbers<[1], [0], [0], [1], [0, 0, 1, 1], [], []>} : vector<1x368xf32>, vector<368x128xf32>, vector<1x128xf32> -> vector<1x128xf32>
    %100 = arith.addf %90, %99 : vector<1x128xf32>
    %101 = vector.extract_strided_slice %39 {offsets = [12, 0], sizes = [1, 384], strides = [1, 1]} : vector<24x384xf32> to vector<1x384xf32>
    %102 = vector.extract_strided_slice %39 {offsets = [13, 0], sizes = [1, 384], strides = [1, 1]} : vector<24x384xf32> to vector<1x384xf32>
    %103 = arith.maximumf %101, %102 : vector<1x384xf32>
    %104 = vector.extract_strided_slice %103 {offsets = [0, 0], sizes = [1, 368], strides = [1, 1]} : vector<1x384xf32> to vector<1x368xf32>
    %105 = vector.extract_strided_slice %103 {offsets = [0, 16], sizes = [1, 368], strides = [1, 1]} : vector<1x384xf32> to vector<1x368xf32>
    %106 = arith.maximumf %104, %105 : vector<1x368xf32>
    %c6 = arith.constant 6 : index
    %c0_53 = arith.constant 0 : index
    %c0_54 = arith.constant 0 : index
    %107 = vector.load %arg6[%c6, %c0_53, %c0_54] : memref<12x368x128xf32, #tpu.memory_space<vmem>>, vector<1x368x128xf32>
    %108 = vector.shape_cast %107 : vector<1x368x128xf32> to vector<368x128xf32>
    %cst_55 = arith.constant dense<0.000000e+00> : vector<1x128xf32>
    %109 = tpu.matmul %106, %108, %cst_55 {dimension_numbers = #tpu.dot_dimension_numbers<[1], [0], [0], [1], [0, 0, 1, 1], [], []>} : vector<1x368xf32>, vector<368x128xf32>, vector<1x128xf32> -> vector<1x128xf32>
    %110 = arith.addf %100, %109 : vector<1x128xf32>
    %111 = vector.extract_strided_slice %39 {offsets = [14, 0], sizes = [1, 384], strides = [1, 1]} : vector<24x384xf32> to vector<1x384xf32>
    %112 = vector.extract_strided_slice %39 {offsets = [15, 0], sizes = [1, 384], strides = [1, 1]} : vector<24x384xf32> to vector<1x384xf32>
    %113 = arith.maximumf %111, %112 : vector<1x384xf32>
    %114 = vector.extract_strided_slice %113 {offsets = [0, 0], sizes = [1, 368], strides = [1, 1]} : vector<1x384xf32> to vector<1x368xf32>
    %115 = vector.extract_strided_slice %113 {offsets = [0, 16], sizes = [1, 368], strides = [1, 1]} : vector<1x384xf32> to vector<1x368xf32>
    %116 = arith.maximumf %114, %115 : vector<1x368xf32>
    %c7 = arith.constant 7 : index
    %c0_56 = arith.constant 0 : index
    %c0_57 = arith.constant 0 : index
    %117 = vector.load %arg6[%c7, %c0_56, %c0_57] : memref<12x368x128xf32, #tpu.memory_space<vmem>>, vector<1x368x128xf32>
    %118 = vector.shape_cast %117 : vector<1x368x128xf32> to vector<368x128xf32>
    %cst_58 = arith.constant dense<0.000000e+00> : vector<1x128xf32>
    %119 = tpu.matmul %116, %118, %cst_58 {dimension_numbers = #tpu.dot_dimension_numbers<[1], [0], [0], [1], [0, 0, 1, 1], [], []>} : vector<1x368xf32>, vector<368x128xf32>, vector<1x128xf32> -> vector<1x128xf32>
    %120 = arith.addf %110, %119 : vector<1x128xf32>
    %121 = vector.extract_strided_slice %39 {offsets = [16, 0], sizes = [1, 384], strides = [1, 1]} : vector<24x384xf32> to vector<1x384xf32>
    %122 = vector.extract_strided_slice %39 {offsets = [17, 0], sizes = [1, 384], strides = [1, 1]} : vector<24x384xf32> to vector<1x384xf32>
    %123 = arith.maximumf %121, %122 : vector<1x384xf32>
    %124 = vector.extract_strided_slice %123 {offsets = [0, 0], sizes = [1, 368], strides = [1, 1]} : vector<1x384xf32> to vector<1x368xf32>
    %125 = vector.extract_strided_slice %123 {offsets = [0, 16], sizes = [1, 368], strides = [1, 1]} : vector<1x384xf32> to vector<1x368xf32>
    %126 = arith.maximumf %124, %125 : vector<1x368xf32>
    %c8 = arith.constant 8 : index
    %c0_59 = arith.constant 0 : index
    %c0_60 = arith.constant 0 : index
    %127 = vector.load %arg6[%c8, %c0_59, %c0_60] : memref<12x368x128xf32, #tpu.memory_space<vmem>>, vector<1x368x128xf32>
    %128 = vector.shape_cast %127 : vector<1x368x128xf32> to vector<368x128xf32>
    %cst_61 = arith.constant dense<0.000000e+00> : vector<1x128xf32>
    %129 = tpu.matmul %126, %128, %cst_61 {dimension_numbers = #tpu.dot_dimension_numbers<[1], [0], [0], [1], [0, 0, 1, 1], [], []>} : vector<1x368xf32>, vector<368x128xf32>, vector<1x128xf32> -> vector<1x128xf32>
    %130 = arith.addf %120, %129 : vector<1x128xf32>
    %131 = vector.extract_strided_slice %39 {offsets = [18, 0], sizes = [1, 384], strides = [1, 1]} : vector<24x384xf32> to vector<1x384xf32>
    %132 = vector.extract_strided_slice %39 {offsets = [19, 0], sizes = [1, 384], strides = [1, 1]} : vector<24x384xf32> to vector<1x384xf32>
    %133 = arith.maximumf %131, %132 : vector<1x384xf32>
    %134 = vector.extract_strided_slice %133 {offsets = [0, 0], sizes = [1, 368], strides = [1, 1]} : vector<1x384xf32> to vector<1x368xf32>
    %135 = vector.extract_strided_slice %133 {offsets = [0, 16], sizes = [1, 368], strides = [1, 1]} : vector<1x384xf32> to vector<1x368xf32>
    %136 = arith.maximumf %134, %135 : vector<1x368xf32>
    %c9 = arith.constant 9 : index
    %c0_62 = arith.constant 0 : index
    %c0_63 = arith.constant 0 : index
    %137 = vector.load %arg6[%c9, %c0_62, %c0_63] : memref<12x368x128xf32, #tpu.memory_space<vmem>>, vector<1x368x128xf32>
    %138 = vector.shape_cast %137 : vector<1x368x128xf32> to vector<368x128xf32>
    %cst_64 = arith.constant dense<0.000000e+00> : vector<1x128xf32>
    %139 = tpu.matmul %136, %138, %cst_64 {dimension_numbers = #tpu.dot_dimension_numbers<[1], [0], [0], [1], [0, 0, 1, 1], [], []>} : vector<1x368xf32>, vector<368x128xf32>, vector<1x128xf32> -> vector<1x128xf32>
    %140 = arith.addf %130, %139 : vector<1x128xf32>
    %141 = vector.extract_strided_slice %39 {offsets = [20, 0], sizes = [1, 384], strides = [1, 1]} : vector<24x384xf32> to vector<1x384xf32>
    %142 = vector.extract_strided_slice %39 {offsets = [21, 0], sizes = [1, 384], strides = [1, 1]} : vector<24x384xf32> to vector<1x384xf32>
    %143 = arith.maximumf %141, %142 : vector<1x384xf32>
    %144 = vector.extract_strided_slice %143 {offsets = [0, 0], sizes = [1, 368], strides = [1, 1]} : vector<1x384xf32> to vector<1x368xf32>
    %145 = vector.extract_strided_slice %143 {offsets = [0, 16], sizes = [1, 368], strides = [1, 1]} : vector<1x384xf32> to vector<1x368xf32>
    %146 = arith.maximumf %144, %145 : vector<1x368xf32>
    %c10 = arith.constant 10 : index
    %c0_65 = arith.constant 0 : index
    %c0_66 = arith.constant 0 : index
    %147 = vector.load %arg6[%c10, %c0_65, %c0_66] : memref<12x368x128xf32, #tpu.memory_space<vmem>>, vector<1x368x128xf32>
    %148 = vector.shape_cast %147 : vector<1x368x128xf32> to vector<368x128xf32>
    %cst_67 = arith.constant dense<0.000000e+00> : vector<1x128xf32>
    %149 = tpu.matmul %146, %148, %cst_67 {dimension_numbers = #tpu.dot_dimension_numbers<[1], [0], [0], [1], [0, 0, 1, 1], [], []>} : vector<1x368xf32>, vector<368x128xf32>, vector<1x128xf32> -> vector<1x128xf32>
    %150 = arith.addf %140, %149 : vector<1x128xf32>
    %151 = vector.extract_strided_slice %39 {offsets = [22, 0], sizes = [1, 384], strides = [1, 1]} : vector<24x384xf32> to vector<1x384xf32>
    %152 = vector.extract_strided_slice %39 {offsets = [23, 0], sizes = [1, 384], strides = [1, 1]} : vector<24x384xf32> to vector<1x384xf32>
    %153 = arith.maximumf %151, %152 : vector<1x384xf32>
    %154 = vector.extract_strided_slice %153 {offsets = [0, 0], sizes = [1, 368], strides = [1, 1]} : vector<1x384xf32> to vector<1x368xf32>
    %155 = vector.extract_strided_slice %153 {offsets = [0, 16], sizes = [1, 368], strides = [1, 1]} : vector<1x384xf32> to vector<1x368xf32>
    %156 = arith.maximumf %154, %155 : vector<1x368xf32>
    %c11 = arith.constant 11 : index
    %c0_68 = arith.constant 0 : index
    %c0_69 = arith.constant 0 : index
    %157 = vector.load %arg6[%c11, %c0_68, %c0_69] : memref<12x368x128xf32, #tpu.memory_space<vmem>>, vector<1x368x128xf32>
    %158 = vector.shape_cast %157 : vector<1x368x128xf32> to vector<368x128xf32>
    %cst_70 = arith.constant dense<0.000000e+00> : vector<1x128xf32>
    %159 = tpu.matmul %156, %158, %cst_70 {dimension_numbers = #tpu.dot_dimension_numbers<[1], [0], [0], [1], [0, 0, 1, 1], [], []>} : vector<1x368xf32>, vector<368x128xf32>, vector<1x128xf32> -> vector<1x128xf32>
    %160 = arith.addf %150, %159 : vector<1x128xf32>
    %cst_71 = arith.constant 0.000000e+00 : f32
    %161 = vector.broadcast %cst_71 : f32 to vector<1x128xf32>
    %162 = arith.maximumf %160, %161 : vector<1x128xf32>
    %c0_72 = arith.constant 0 : index
    %c0_73 = arith.constant 0 : index
    %163 = vector.load %arg8[%c0_72, %c0_73] : memref<128x10xf32, #tpu.memory_space<vmem>>, vector<128x10xf32>
    %cst_74 = arith.constant dense<0.000000e+00> : vector<1x10xf32>
    %164 = tpu.matmul %162, %163, %cst_74 {dimension_numbers = #tpu.dot_dimension_numbers<[1], [0], [0], [1], [0, 0, 1, 1], [], []>} : vector<1x128xf32>, vector<128x10xf32>, vector<1x10xf32> -> vector<1x10xf32>
    %c0_75 = arith.constant 0 : index
    %c0_76 = arith.constant 0 : index
    %165 = vector.load %arg9[%c0_75, %c0_76] : memref<1x10xf32, #tpu.memory_space<vmem>>, vector<1x10xf32>
    %166 = arith.addf %164, %165 : vector<1x10xf32>
    %167 = vector.shape_cast %166 : vector<1x10xf32> to vector<1x1x10xf32>
    %c0_77 = arith.constant 0 : index
    %c0_78 = arith.constant 0 : index
    %c0_79 = arith.constant 0 : index
    %168 = vector.load %arg10[%c0_77, %c0_78, %c0_79] : memref<1x1x10xf32, #tpu.memory_space<vmem>>, vector<1x1x10xf32>
    tpu.vector_store %arg10[%c0_77, %c0_78, %c0_79], %167 {strides = array<i32>} : memref<1x1x10xf32, #tpu.memory_space<vmem>>, vector<1x1x10xf32>,
    return
  }
  func.func @transform_0(%arg0: i32) -> (i32, i32, i32, i32) {
    %c0_i32 = arith.constant 0 : i32
    %c0_i32_0 = arith.constant 0 : i32
    %c0_i32_1 = arith.constant 0 : i32
    %c0_i32_2 = arith.constant 0 : i32
    return %arg0, %c0_i32, %c0_i32_0, %c0_i32_1 : i32, i32, i32, i32
  }
  func.func @transform_1(%arg0: i32) -> (i32, i32, i32) {
    %c0_i32 = arith.constant 0 : i32
    %c0_i32_0 = arith.constant 0 : i32
    %c0_i32_1 = arith.constant 0 : i32
    %c0_i32_2 = arith.constant 0 : i32
    return %c0_i32, %c0_i32_0, %c0_i32_1 : i32, i32, i32
  }
  func.func @transform_2(%arg0: i32) -> (i32, i32) {
    %c0_i32 = arith.constant 0 : i32
    %c0_i32_0 = arith.constant 0 : i32
    %c0_i32_1 = arith.constant 0 : i32
    return %c0_i32, %c0_i32_0 : i32, i32
  }
  func.func @transform_3(%arg0: i32) -> (i32, i32, i32) {
    %c0_i32 = arith.constant 0 : i32
    %c0_i32_0 = arith.constant 0 : i32
    %c0_i32_1 = arith.constant 0 : i32
    %c0_i32_2 = arith.constant 0 : i32
    return %c0_i32, %c0_i32_0, %c0_i32_1 : i32, i32, i32
  }
  func.func @transform_4(%arg0: i32) -> (i32, i32) {
    %c0_i32 = arith.constant 0 : i32
    %c0_i32_0 = arith.constant 0 : i32
    %c0_i32_1 = arith.constant 0 : i32
    return %c0_i32, %c0_i32_0 : i32, i32
  }
  func.func @transform_5(%arg0: i32) -> (i32, i32, i32) {
    %c0_i32 = arith.constant 0 : i32
    %c0_i32_0 = arith.constant 0 : i32
    %c0_i32_1 = arith.constant 0 : i32
    %c0_i32_2 = arith.constant 0 : i32
    return %c0_i32, %c0_i32_0, %c0_i32_1 : i32, i32, i32
  }
  func.func @transform_6(%arg0: i32) -> (i32, i32) {
    %c0_i32 = arith.constant 0 : i32
    %c0_i32_0 = arith.constant 0 : i32
    %c0_i32_1 = arith.constant 0 : i32
    return %c0_i32, %c0_i32_0 : i32, i32
  }
  func.func @transform_7(%arg0: i32) -> (i32, i32) {
    %c0_i32 = arith.constant 0 : i32
    %c0_i32_0 = arith.constant 0 : i32
    %c0_i32_1 = arith.constant 0 : i32
    return %c0_i32, %c0_i32_0 : i32, i32
  }
  func.func @transform_8(%arg0: i32) -> (i32, i32) {
    %c0_i32 = arith.constant 0 : i32
    %c0_i32_0 = arith.constant 0 : i32
    %c0_i32_1 = arith.constant 0 : i32
    return %c0_i32, %c0_i32_0 : i32, i32
  }
  func.func @transform_9(%arg0: i32) -> (i32, i32, i32) {
    %c0_i32 = arith.constant 0 : i32
    %c0_i32_0 = arith.constant 0 : i32
    %c0_i32_1 = arith.constant 0 : i32
    return %arg0, %c0_i32, %c0_i32_0 : i32, i32, i32
  }
}

</mosaic_0001>

<llo_original>
// kernel: net_forward.1
$region0: #{net_forward.1}
  #allocation0 [shape = 'u32[]', space=smem, size = 0x4, offset = 0x4, fixed_abs, tag = 'smem constant byte address 0x4 - core index']
  #allocation1 [shape = 'u32[144,128]{1,0:T(1,128)}', space=vmem, size = 0x12000, scoped, tag = 'internal scratch']
  %s0 = inlined_call_operand.vmem [shape: f32[2,1,28,28], index: 0, kind: input, shape index: {}]
  %s1 = inlined_call_operand.hbm [shape: f32[3,28,208], index: 1, kind: input, shape index: {}]
  %s2 = inlined_call_operand.hbm [shape: f32[1,208], index: 2, kind: input, shape index: {}]
  %s3 = inlined_call_operand.hbm [shape: f32[3,208,384], index: 3, kind: input, shape index: {}]
  %s4 = inlined_call_operand.hbm [shape: f32[1,384], index: 4, kind: input, shape index: {}]
  %s5 = inlined_call_operand.hbm [shape: f32[12,368,128], index: 5, kind: input, shape index: {}]
  %s6 = inlined_call_operand.hbm [shape: f32[1,128], index: 6, kind: input, shape index: {}]
  %s7 = inlined_call_operand.vmem [shape: f32[128,10], index: 7, kind: input, shape index: {}]
  %s8 = inlined_call_operand.hbm [shape: f32[1,10], index: 8, kind: input, shape index: {}]
  %s9 = inlined_call_operand.hbm [shape: f32[2,1,10], index: 9, kind: output, shape index: {}]
  %s10 = sld [smem:[#allocation0]]
  $region97: #{net_forward.1} parent=0
    _
  %s12 = ssub.s32 1, %s10
  %s13 = scalar_select 0, %s12, %s10
  $region1: #{net_forward.1} parent=0
    #allocation2 [shape = 'u8[98304]{0}', space=vmem, size = 0x18000, scoped, tag = 'input window, operand 1, single buffered']
    #allocation3 [shape = 's32[2]{0}', space=sflag, size = 0x8, scoped, tag = 'scoped memory for net_forward.1']
    #allocation4 [shape = 's32[2]{0}', space=sflag, size = 0x8, scoped, tag = 'scoped memory for net_forward.1']
    #allocation5 [shape = 'u8[1024]{0}', space=vmem, size = 0x400, scoped, tag = 'input window, operand 2, single buffered']
    #allocation6 [shape = 's32[1]{0}', space=sflag, size = 0x4, scoped, tag = 'scoped memory for net_forward.1']
    #allocation7 [shape = 'u8[958464]{0}', space=vmem, size = 0xea000, scoped, tag = 'input window, operand 3, single buffered']
    #allocation8 [shape = 'u8[1536]{0}', space=vmem, size = 0x800, scoped, tag = 'input window, operand 4, single buffered']
    #allocation9 [shape = 's32[1]{0}', space=sflag, size = 0x4, scoped, tag = 'scoped memory for net_forward.1']
    #allocation10 [shape = 'u8[2260992]{0}', space=vmem, size = 0x228000, scoped, tag = 'input window, operand 5, single buffered']
    #allocation11 [shape = 'u8[512]{0}', space=vmem, size = 0x400, scoped, tag = 'input window, operand 6, single buffered']
    #allocation12 [shape = 's32[1]{0}', space=sflag, size = 0x4, scoped, tag = 'scoped memory for net_forward.1']
    #allocation13 [shape = 'u8[512]{0}', space=vmem, size = 0x400, scoped, tag = 'input window, operand 8, single buffered']
    #allocation14 [shape = 'u8[1024]{0}', space=vmem, size = 0x400, scoped, tag = 'output window, operand 0']
    %14 = vsyncpa [#allocation3], 0
    %15 = vsyncpa [#allocation6], 0
    %16 = vsyncpa [#allocation9], 0
    %17 = vsyncpa [#allocation12], 0
    %18 = vsyncpa [#allocation4], 0
    %s19 = scalar_lea.sflag [#allocation4], 1
    %20 = vsyncpa %s19, 0
    loop: start=0, step=1, limit=4
    $region2: #{net_forward.1} parent=1 // loop_pre_header
      _
    $region3: #{net_forward.1} parent=1 // loop_header
      %s22 = sphi 0, %s26
      %p23 = scmp.ge.s32.totalorder %s22, 4
      %s32 = sphi 0, %s34
      %s35 = sphi 0, %s32
      %s36 = sphi 0, %s35
      %s52 = sphi 0, %s36
      %s56 = sphi 0, %s56
      %s58 = sphi 0, %s56
      %s59 = sphi 0, %s58
      %s73 = sphi 0, %s59
      %s77 = sphi 0, %s77
      %s79 = sphi 0, %s77
      %s80 = sphi 0, %s79
      %s94 = sphi 0, %s80
      %s98 = sphi 0, %s98
      %s100 = sphi 0, %s98
      %s101 = sphi 0, %s100
      %s115 = sphi 0, %s101
      %s119 = sphi 0, %s119
      %s121 = sphi 0, %s119
      %s122 = sphi 0, %s121
      %s136 = sphi 0, %s122
      %s140 = sphi 0, %s140
      %s142 = sphi 0, %s140
      %s143 = sphi 0, %s142
      %s157 = sphi 0, %s143
      %s161 = sphi 0, %s161
      %s163 = sphi 0, %s161
      %s164 = sphi 0, %s163
      %s178 = sphi 0, %s164
      %s182 = sphi 0, %s182
      %s184 = sphi 0, %s182
      %s185 = sphi 0, %s184
      %s199 = sphi 0, %s185
      %s203 = sphi 0, %s203
      %s205 = sphi 0, %s203
      %s206 = sphi 0, %s205
      %s220 = sphi 0, %s206
      %s226 = sphi 0, %s228
      %s229 = sphi 0, %s226
      %s230 = sphi 0, %s229
      %s246 = sphi 0, %s230
    $region4: #{net_forward.1} parent=1 // loop_header_branch
      %25 = sbr.rel (%p23) target = $region8
    $region5: #{net_forward.1} parent=1 // loop_body
      %s27 = ssub.s32 %s22, 1
      %s28 = ssub.s32 %s22, 2
      %s29 = sadd.s32 %s22, 1
      %s30 = ssub.s32 %s22, %s29
      %p31 = scmp.eq.s32.totalorder %s30, 0
      %s33 = sadd.s32 %s32, 1
      %s34 = scalar_select %p31, %s32, %s33
      %p37 = pneg %p31
      %p38 = scmp.eq.s32.totalorder %s22, 1
      %p39 = por %p37, %p38
      %p40 = scmp.ne.s32.totalorder %s32, %s35
      %p41 = scmp.eq.s32.totalorder %s22, 0
      %p42 = por %p40, %p41
      %p43 = scmp.ne.s32.totalorder %s32, %s35
      %p44 = scmp.eq.s32.totalorder %s27, 1
      %p45 = por %p43, %p44
      %p46 = scmp.ne.s32.totalorder %s35, %s36
      %p47 = scmp.eq.s32.totalorder %s27, 0
      %p48 = por %p46, %p47
      %p49 = scmp.ne.s32.totalorder %s35, %s36
      %p50 = scmp.eq.s32.totalorder %s28, 1
      %p51 = por %p49, %p50
      %p53 = scmp.ne.s32.totalorder %s36, %s52
      %p54 = scmp.eq.s32.totalorder %s28, 0
      %p55 = por %p53, %p54
      %s57 = sadd.s32 %s56, 1
      %p60 = scmp.eq.s32.totalorder %s22, 1
      %p61 = scmp.ne.s32.totalorder %s56, %s58
      %p62 = scmp.eq.s32.totalorder %s22, 0
      %p63 = por %p61, %p62
      %p64 = scmp.ne.s32.totalorder %s56, %s58
      %p65 = scmp.eq.s32.totalorder %s27, 1
      %p66 = por %p64, %p65
      %p67 = scmp.ne.s32.totalorder %s58, %s59
      %p68 = scmp.eq.s32.totalorder %s27, 0
      %p69 = por %p67, %p68
      %p70 = scmp.ne.s32.totalorder %s58, %s59
      %p71 = scmp.eq.s32.totalorder %s28, 1
      %p72 = por %p70, %p71
      %p74 = scmp.ne.s32.totalorder %s59, %s73
      %p75 = scmp.eq.s32.totalorder %s28, 0
      %p76 = por %p74, %p75
      %s78 = sadd.s32 %s77, 1
      %p81 = scmp.eq.s32.totalorder %s22, 1
      %p82 = scmp.ne.s32.totalorder %s77, %s79
      %p83 = scmp.eq.s32.totalorder %s22, 0
      %p84 = por %p82, %p83
      %p85 = scmp.ne.s32.totalorder %s77, %s79
      %p86 = scmp.eq.s32.totalorder %s27, 1
      %p87 = por %p85, %p86
      %p88 = scmp.ne.s32.totalorder %s79, %s80
      %p89 = scmp.eq.s32.totalorder %s27, 0
      %p90 = por %p88, %p89
      %p91 = scmp.ne.s32.totalorder %s79, %s80
      %p92 = scmp.eq.s32.totalorder %s28, 1
      %p93 = por %p91, %p92
      %p95 = scmp.ne.s32.totalorder %s80, %s94
      %p96 = scmp.eq.s32.totalorder %s28, 0
      %p97 = por %p95, %p96
      %s99 = sadd.s32 %s98, 1
      %p102 = scmp.eq.s32.totalorder %s22, 1
      %p103 = scmp.ne.s32.totalorder %s98, %s100
      %p104 = scmp.eq.s32.totalorder %s22, 0
      %p105 = por %p103, %p104
      %p106 = scmp.ne.s32.totalorder %s98, %s100
      %p107 = scmp.eq.s32.totalorder %s27, 1
      %p108 = por %p106, %p107
      %p109 = scmp.ne.s32.totalorder %s100, %s101
      %p110 = scmp.eq.s32.totalorder %s27, 0
      %p111 = por %p109, %p110
      %p112 = scmp.ne.s32.totalorder %s100, %s101
      %p113 = scmp.eq.s32.totalorder %s28, 1
      %p114 = por %p112, %p113
      %p116 = scmp.ne.s32.totalorder %s101, %s115
      %p117 = scmp.eq.s32.totalorder %s28, 0
      %p118 = por %p116, %p117
      %s120 = sadd.s32 %s119, 1
      %p123 = scmp.eq.s32.totalorder %s22, 1
      %p124 = scmp.ne.s32.totalorder %s119, %s121
      %p125 = scmp.eq.s32.totalorder %s22, 0
      %p126 = por %p124, %p125
      %p127 = scmp.ne.s32.totalorder %s119, %s121
      %p128 = scmp.eq.s32.totalorder %s27, 1
      %p129 = por %p127, %p128
      %p130 = scmp.ne.s32.totalorder %s121, %s122
      %p131 = scmp.eq.s32.totalorder %s27, 0
      %p132 = por %p130, %p131
      %p133 = scmp.ne.s32.totalorder %s121, %s122
      %p134 = scmp.eq.s32.totalorder %s28, 1
      %p135 = por %p133, %p134
      %p137 = scmp.ne.s32.totalorder %s122, %s136
      %p138 = scmp.eq.s32.totalorder %s28, 0
      %p139 = por %p137, %p138
      %s141 = sadd.s32 %s140, 1
      %p144 = scmp.eq.s32.totalorder %s22, 1
      %p145 = scmp.ne.s32.totalorder %s140, %s142
      %p146 = scmp.eq.s32.totalorder %s22, 0
      %p147 = por %p145, %p146
      %p148 = scmp.ne.s32.totalorder %s140, %s142
      %p149 = scmp.eq.s32.totalorder %s27, 1
      %p150 = por %p148, %p149
      %p151 = scmp.ne.s32.totalorder %s142, %s143
      %p152 = scmp.eq.s32.totalorder %s27, 0
      %p153 = por %p151, %p152
      %p154 = scmp.ne.s32.totalorder %s142, %s143
      %p155 = scmp.eq.s32.totalorder %s28, 1
      %p156 = por %p154, %p155
      %p158 = scmp.ne.s32.totalorder %s143, %s157
      %p159 = scmp.eq.s32.totalorder %s28, 0
      %p160 = por %p158, %p159
      %s162 = sadd.s32 %s161, 1
      %p165 = scmp.eq.s32.totalorder %s22, 1
      %p166 = scmp.ne.s32.totalorder %s161, %s163
      %p167 = scmp.eq.s32.totalorder %s22, 0
      %p168 = por %p166, %p167
      %p169 = scmp.ne.s32.totalorder %s161, %s163
      %p170 = scmp.eq.s32.totalorder %s27, 1
      %p171 = por %p169, %p170
      %p172 = scmp.ne.s32.totalorder %s163, %s164
      %p173 = scmp.eq.s32.totalorder %s27, 0
      %p174 = por %p172, %p173
      %p175 = scmp.ne.s32.totalorder %s163, %s164
      %p176 = scmp.eq.s32.totalorder %s28, 1
      %p177 = por %p175, %p176
      %p179 = scmp.ne.s32.totalorder %s164, %s178
      %p180 = scmp.eq.s32.totalorder %s28, 0
      %p181 = por %p179, %p180
      %s183 = sadd.s32 %s182, 1
      %p186 = scmp.eq.s32.totalorder %s22, 1
      %p187 = scmp.ne.s32.totalorder %s182, %s184
      %p188 = scmp.eq.s32.totalorder %s22, 0
      %p189 = por %p187, %p188
      %p190 = scmp.ne.s32.totalorder %s182, %s184
      %p191 = scmp.eq.s32.totalorder %s27, 1
      %p192 = por %p190, %p191
      %p193 = scmp.ne.s32.totalorder %s184, %s185
      %p194 = scmp.eq.s32.totalorder %s27, 0
      %p195 = por %p193, %p194
      %p196 = scmp.ne.s32.totalorder %s184, %s185
      %p197 = scmp.eq.s32.totalorder %s28, 1
      %p198 = por %p196, %p197
      %p200 = scmp.ne.s32.totalorder %s185, %s199
      %p201 = scmp.eq.s32.totalorder %s28, 0
      %p202 = por %p200, %p201
      %s204 = sadd.s32 %s203, 1
      %p207 = scmp.eq.s32.totalorder %s22, 1
      %p208 = scmp.ne.s32.totalorder %s203, %s205
      %p209 = scmp.eq.s32.totalorder %s22, 0
      %p210 = por %p208, %p209
      %p211 = scmp.ne.s32.totalorder %s203, %s205
      %p212 = scmp.eq.s32.totalorder %s27, 1
      %p213 = por %p211, %p212
      %p214 = scmp.ne.s32.totalorder %s205, %s206
      %p215 = scmp.eq.s32.totalorder %s27, 0
      %p216 = por %p214, %p215
      %p217 = scmp.ne.s32.totalorder %s205, %s206
      %p218 = scmp.eq.s32.totalorder %s28, 1
      %p219 = por %p217, %p218
      %p221 = scmp.ne.s32.totalorder %s206, %s220
      %p222 = scmp.eq.s32.totalorder %s28, 0
      %p223 = por %p221, %p222
      %s224 = ssub.s32 %s22, %s29
      %p225 = scmp.eq.s32.totalorder %s224, 0
      %s227 = sadd.s32 %s226, 1
      %s228 = scalar_select %p225, %s226, %s227
      %p231 = pneg %p225
      %p232 = scmp.eq.s32.totalorder %s22, 1
      %p233 = por %p231, %p232
      %p234 = scmp.ne.s32.totalorder %s226, %s229
      %p235 = scmp.eq.s32.totalorder %s22, 0
      %p236 = por %p234, %p235
      %p237 = scmp.ne.s32.totalorder %s226, %s229
      %p238 = scmp.eq.s32.totalorder %s27, 1
      %p239 = por %p237, %p238
      %p240 = scmp.ne.s32.totalorder %s229, %s230
      %p241 = scmp.eq.s32.totalorder %s27, 0
      %p242 = por %p240, %p241
      %p243 = scmp.ne.s32.totalorder %s229, %s230
      %p244 = scmp.eq.s32.totalorder %s28, 1
      %p245 = por %p243, %p244
      %p247 = scmp.ne.s32.totalorder %s230, %s246
      %p248 = scmp.eq.s32.totalorder %s28, 0
      %p249 = por %p247, %p248
      %p250 = scmp.le.s32.totalorder 1, %s22
      %p251 = scmp.lt.s32.totalorder %s22, 3
      %p252 = pnand %p250, %p251
      %p253 = pneg %p252
      // Predicated region
      $region9: #{net_forward.1} parent=5 // pred_check
        _
      $region10: #{net_forward.1} parent=5 // pred_check_branch
        %255 = sbr.rel (%p252) target = $region12
      $region11: #{net_forward.1} parent=5 // pred_region
        %s256 = ssub.s32 %s22, 1
        // Predicated region
        $region13: #{net_forward.1} parent=11 // pred_check
          %p257 = pneg %p69
        $region14: #{net_forward.1} parent=11 // pred_check_branch
          %259 = sbr.rel (%p257) target = $region16
        $region15: #{net_forward.1} parent=11 // pred_region
          %s261 = ssub.s32 3072, 3072
          %262 = vsyncadd [#allocation3], %s261
          %s263 = sshll.u32 [#allocation2], 4
          %s264 = int_to_ptr.vmem [resolvable:$true] %s263
          %269 = dma.hbm_to_vmem [thread:$0]  %s1, 3072, %s264, [#allocation3], 256, 256, 16
        $region16: #{net_forward.1} parent=11 // pred_fallthru
          _
        // Predicated region
        $region17: #{net_forward.1} parent=11 // pred_check
          %p270 = pneg %p90
        $region18: #{net_forward.1} parent=11 // pred_check_branch
          %272 = sbr.rel (%p270) target = $region20
        $region19: #{net_forward.1} parent=11 // pred_region
          %s274 = ssub.s32 32, 32
          %275 = vsyncadd [#allocation6], %s274
          %s277 = sshll.u32 [#allocation5], 4
          %s278 = int_to_ptr.vmem [resolvable:$true] %s277
          %280 = dma.hbm_to_vmem [thread:$0]  %s2, 32, %s278, [#allocation6]
        $region20: #{net_forward.1} parent=11 // pred_fallthru
          _
        // Predicated region
        $region21: #{net_forward.1} parent=11 // pred_check
          %p281 = pneg %p111
        $region22: #{net_forward.1} parent=11 // pred_check_branch
          %283 = sbr.rel (%p281) target = $region24
        $region23: #{net_forward.1} parent=11 // pred_region
          %s285 = ssub.s32 29952, 29952
          %286 = vsyncadd [#allocation6], %s285
          %s287 = sshll.u32 [#allocation7], 4
          %s288 = int_to_ptr.vmem [resolvable:$true] %s287
          %293 = dma.hbm_to_vmem [thread:$0]  %s3, 29952, %s288, [#allocation6], 384, 384, 24
        $region24: #{net_forward.1} parent=11 // pred_fallthru
          _
        // Predicated region
        $region25: #{net_forward.1} parent=11 // pred_check
          %p294 = pneg %p132
        $region26: #{net_forward.1} parent=11 // pred_check_branch
          %296 = sbr.rel (%p294) target = $region28
        $region27: #{net_forward.1} parent=11 // pred_region
          %s298 = ssub.s32 48, 48
          %299 = vsyncadd [#allocation9], %s298
          %s301 = sshll.u32 [#allocation8], 4
          %s302 = int_to_ptr.vmem [resolvable:$true] %s301
          %304 = dma.hbm_to_vmem [thread:$0]  %s4, 48, %s302, [#allocation9]
        $region28: #{net_forward.1} parent=11 // pred_fallthru
          _
        // Predicated region
        $region29: #{net_forward.1} parent=11 // pred_check
          %p305 = pneg %p153
        $region30: #{net_forward.1} parent=11 // pred_check_branch
          %307 = sbr.rel (%p305) target = $region32
        $region31: #{net_forward.1} parent=11 // pred_region
          %s309 = ssub.s32 70656, 70656
          %310 = vsyncadd [#allocation9], %s309
          %s311 = sshll.u32 [#allocation10], 4
          %s312 = int_to_ptr.vmem [resolvable:$true] %s311
          %317 = dma.hbm_to_vmem [thread:$0]  %s5, 70656, %s312, [#allocation9], 128, 128, 8
        $region32: #{net_forward.1} parent=11 // pred_fallthru
          _
        // Predicated region
        $region33: #{net_forward.1} parent=11 // pred_check
          %p318 = pneg %p174
        $region34: #{net_forward.1} parent=11 // pred_check_branch
          %320 = sbr.rel (%p318) target = $region36
        $region35: #{net_forward.1} parent=11 // pred_region
          %s322 = ssub.s32 16, 16
          %323 = vsyncadd [#allocation12], %s322
          %s325 = sshll.u32 [#allocation11], 4
          %s326 = int_to_ptr.vmem [resolvable:$true] %s325
          %328 = dma.hbm_to_vmem [thread:$0]  %s6, 16, %s326, [#allocation12]
        $region36: #{net_forward.1} parent=11 // pred_fallthru
          _
        // Predicated region
        $region37: #{net_forward.1} parent=11 // pred_check
          %p329 = pneg %p195
        $region38: #{net_forward.1} parent=11 // pred_check_branch
          %331 = sbr.rel (%p329) target = $region40
        $region39: #{net_forward.1} parent=11 // pred_region
          _
        $region40: #{net_forward.1} parent=11 // pred_fallthru
          _
        // Predicated region
        $region41: #{net_forward.1} parent=11 // pred_check
          %p332 = pneg %p216
        $region42: #{net_forward.1} parent=11 // pred_check_branch
          %334 = sbr.rel (%p332) target = $region44
        $region43: #{net_forward.1} parent=11 // pred_region
          %s336 = ssub.s32 16, 16
          %337 = vsyncadd [#allocation12], %s336
          %s339 = sshll.u32 [#allocation13], 4
          %s340 = int_to_ptr.vmem [resolvable:$true] %s339
          %342 = dma.hbm_to_vmem [thread:$0]  %s8, 16, %s340, [#allocation12]
        $region44: #{net_forward.1} parent=11 // pred_fallthru
          _
      $region12: #{net_forward.1} parent=5 // pred_fallthru
        _
      %p343 = scmp.lt.s32.totalorder %s22, 2
      // Predicated region
      $region45: #{net_forward.1} parent=5 // pred_check
        %p344 = pneg %p343
      $region46: #{net_forward.1} parent=5 // pred_check_branch
        %346 = sbr.rel (%p344) target = $region48
      $region47: #{net_forward.1} parent=5 // pred_region
        // Predicated region
        $region49: #{net_forward.1} parent=47 // pred_check
          %p347 = pneg %p42
        $region50: #{net_forward.1} parent=47 // pred_check_branch
          %349 = sbr.rel (%p347) target = $region52
        $region51: #{net_forward.1} parent=47 // pred_region
          %p350 = scmp.lt.s32.totalorder %s22, 1
          %s351 = scalar_select %p350, %s22, 1
          %s352 = smul.addr %s351, 4
          %s353 = smul.addr %s352, 8
          %s354 = scalar_lea.vmem %s0, %s353
        $region52: #{net_forward.1} parent=47 // pred_fallthru
          _
      $region48: #{net_forward.1} parent=5 // pred_fallthru
        _
      %p355 = scmp.le.s32.totalorder 1, %s22
      %p356 = scmp.lt.s32.totalorder %s22, 3
      %p357 = pnand %p355, %p356
      %p358 = pneg %p357
      // Predicated region
      $region53: #{net_forward.1} parent=5 // pred_check
        _
      $region54: #{net_forward.1} parent=5 // pred_check_branch
        %360 = sbr.rel (%p357) target = $region56
      $region55: #{net_forward.1} parent=5 // pred_region
        %s361 = ssub.s32 %s22, 1
        // Predicated region
        $region57: #{net_forward.1} parent=55 // pred_check
          %p362 = pneg %p69
        $region58: #{net_forward.1} parent=55 // pred_check_branch
          %364 = sbr.rel (%p362) target = $region60
        $region59: #{net_forward.1} parent=55 // pred_region
          %365 = dma.done [#allocation3], 3072
        $region60: #{net_forward.1} parent=55 // pred_fallthru
          _
        // Predicated region
        $region61: #{net_forward.1} parent=55 // pred_check
          %p366 = pneg %p90
        $region62: #{net_forward.1} parent=55 // pred_check_branch
          %368 = sbr.rel (%p366) target = $region64
        $region63: #{net_forward.1} parent=55 // pred_region
          %369 = dma.done [#allocation6], 32
        $region64: #{net_forward.1} parent=55 // pred_fallthru
          _
        // Predicated region
        $region65: #{net_forward.1} parent=55 // pred_check
          %p370 = pneg %p111
        $region66: #{net_forward.1} parent=55 // pred_check_branch
          %372 = sbr.rel (%p370) target = $region68
        $region67: #{net_forward.1} parent=55 // pred_region
          %373 = dma.done [#allocation6], 29952
        $region68: #{net_forward.1} parent=55 // pred_fallthru
          _
        // Predicated region
        $region69: #{net_forward.1} parent=55 // pred_check
          %p374 = pneg %p132
        $region70: #{net_forward.1} parent=55 // pred_check_branch
          %376 = sbr.rel (%p374) target = $region72
        $region71: #{net_forward.1} parent=55 // pred_region
          %377 = dma.done [#allocation9], 48
        $region72: #{net_forward.1} parent=55 // pred_fallthru
          _
        // Predicated region
        $region73: #{net_forward.1} parent=55 // pred_check
          %p378 = pneg %p153
        $region74: #{net_forward.1} parent=55 // pred_check_branch
          %380 = sbr.rel (%p378) target = $region76
        $region75: #{net_forward.1} parent=55 // pred_region
          %381 = dma.done [#allocation9], 70656
        $region76: #{net_forward.1} parent=55 // pred_fallthru
          _
        // Predicated region
        $region77: #{net_forward.1} parent=55 // pred_check
          %p382 = pneg %p174
        $region78: #{net_forward.1} parent=55 // pred_check_branch
          %384 = sbr.rel (%p382) target = $region80
        $region79: #{net_forward.1} parent=55 // pred_region
          %385 = dma.done [#allocation12], 16
        $region80: #{net_forward.1} parent=55 // pred_fallthru
          _
        // Predicated region
        $region81: #{net_forward.1} parent=55 // pred_check
          %p386 = pneg %p216
        $region82: #{net_forward.1} parent=55 // pred_check_branch
          %388 = sbr.rel (%p386) target = $region84
        $region83: #{net_forward.1} parent=55 // pred_region
          %389 = dma.done [#allocation12], 16
        $region84: #{net_forward.1} parent=55 // pred_fallthru
          _
        %p390 = scmp.lt.s32.totalorder %s27, 1
        %s391 = scalar_select %p390, %s27, 1
        %s392 = smul.addr %s391, 4
        %s393 = smul.addr %s392, 8
        %s394 = scalar_lea.vmem %s0, %s393
        %p395 = pneg %p48
        %p396 = pneg %p45
        %p397 = pneg %p69
        %p398 = pneg %p66
        %p399 = pneg %p90
        %p400 = pneg %p87
        %p401 = pneg %p111
        %p402 = pneg %p108
        %p403 = pneg %p132
        %p404 = pneg %p129
        %p405 = pneg %p153
        %p406 = pneg %p150
        %p407 = pneg %p174
        %p408 = pneg %p171
        %p409 = pneg %p195
        %p410 = pneg %p192
        %p411 = pneg %p216
        %p412 = pneg %p213
        %p413 = pneg %p242
        %p414 = pneg %p239
        %s415 = sand.u32 %s229, 1
        %s416 = scalar_lea.sflag [#allocation4], %s415
        %s417 = sand.u32 %s229, 1
        %s418 = scalar_lea.vmem [#allocation14], %s417
        %p419 = scmp.lt.s32.totalorder %s27, 1
        %s420 = scalar_select %p419, %s27, 1
        %s421 = smul.addr %s420, 4
        %s422 = smul.addr %s421, 8
        %s423 = scalar_lea.vmem %s0, %s422
        %v424 = vld [vmem:[%s423] sm:$0xff]
        %v425 = vld [vmem:[%s423 + $0x8] sm:$0xff]
        %v426 = vld [vmem:[%s423 + $0x10] sm:$0xff]
        %v427 = vld [vmem:[%s423 + $0x18] sm:$0xf]
        %v428 = vld [vmem:[#allocation2] sm:$0xff]
        %v429 = vld [vmem:[#allocation2 + $0x8] sm:$0xff]
        %v430 = vld [vmem:[#allocation2 + $0x10] sm:$0xff]
        %v431 = vld [vmem:[#allocation2 + $0x18] sm:$0xff]
        %v432 = vld [vmem:[#allocation2 + $0x20] sm:$0xff]
        %v433 = vld [vmem:[#allocation2 + $0x28] sm:$0xff]
        %v434 = vld [vmem:[#allocation2 + $0x30] sm:$0xf]
        %v435 = vld [vmem:[#allocation2 + $0x38] sm:$0xf]
        %s436 = scalar_lea.vmem [#allocation2], 64
        %v437 = vld [vmem:[%s436] sm:$0xff]
        %v438 = vld [vmem:[%s436 + $0x8] sm:$0xff]
        %v439 = vld [vmem:[%s436 + $0x10] sm:$0xff]
        %v440 = vld [vmem:[%s436 + $0x18] sm:$0xff]
        %v441 = vld [vmem:[%s436 + $0x20] sm:$0xff]
        %v442 = vld [vmem:[%s436 + $0x28] sm:$0xff]
        %v443 = vld [vmem:[%s436 + $0x30] sm:$0xf]
        %v444 = vld [vmem:[%s436 + $0x38] sm:$0xf]
        %vm449 = vcmask 1046528
        %v450 = vrot.slane %v424, 1
        %v451 = vrot.slane %v425, 1
        %v452 = vsel %vm449, %v450, %v451
        %v453 = vrot.slane %v426, 1
        %v454 = vsel %vm449, %v451, %v453
        %v455 = vrot.slane %v427, 1
        %v456 = vsel %vm449, %v453, %v455
        %vm457 = vcmask 228352
        %v458 = vsel %vm457, %v452, 0
        %v460 = vsel %vm457, %v454, 0
        %v462 = vsel %vm457, %v456, 0
        %v464 = vsel %vm457, %v455, 0
        %vm466 = vcmask 1043456
        %v468 = vsel %vm466, %v443, 0
        %v471 = vsel %vm466, %v444, 0
        %473 = vmatprep.subr.mxu0 %v438
        %474 = vmatpush1.msra.mxu0 %v437
        %475 = vmatprep.subr.mxu0 %v440
        %476 = vmatpush1.msra.mxu0 %v439
        %477 = vmatprep.subr.mxu0 %v442
        %478 = vmatpush1.msra.mxu0 %v441
        %479 = vmatprep.subr.mxu0 %v471
        %480 = vmatpush1.msra.mxu0 %v468
        %481 = vmatprep.subr.mxu0 0.0
        %482 = vmatpush1.msra.mxu0 0.0
        %483 = vmatprep.subr.mxu0 0.0
        %484 = vmatpush1.msra.mxu0 0.0
        %485 = vmatprep.subr.mxu0 0.0
        %486 = vmatpush1.msra.mxu0 0.0
        %487 = vmatprep.subr.mxu0 0.0
        %488 = vmatpush1.msra.mxu0 0.0
        %489 = vmatprep.subr.mxu0 0.0
        %490 = vmatpush1.msra.mxu0 0.0
        %491 = vmatprep.subr.mxu0 0.0
        %492 = vmatpush1.msra.mxu0 0.0
        %493 = vmatprep.subr.mxu0 0.0
        %494 = vmatpush1.msra.mxu0 0.0
        %495 = vmatprep.subr.mxu0 0.0
        %496 = vmatpush1.msra.mxu0 0.0
        %497 = vmatprep.subr.mxu0 0.0
        %498 = vmatpush1.msra.mxu0 0.0
        %499 = vmatprep.subr.mxu0 0.0
        %500 = vmatpush1.msra.mxu0 0.0
        %501 = vmatprep.subr.mxu0 0.0
        %502 = vmatpush1.msra.mxu0 0.0
        %503 = vmatprep.subr.mxu0 0.0
        %504 = vmatpush1.msra.mxu0 0.0
        %505 = vmatprep.subr.mxu0 0.0
        %506 = vmatpush1.msra.mxu0 0.0
        %507 = vmatprep.subr.mxu0 0.0
        %508 = vmatpush1.msra.mxu0 0.0
        %509 = vmatprep.subr.mxu0 0.0
        %510 = vmatpush1.msra.mxu0 0.0
        %511 = vmatprep.subr.mxu0 0.0
        %512 = vmatpush1.msra.mxu0 0.0
        %513 = vmatprep.subr.mxu0 0.0
        %514 = vmatpush1.msra.mxu0 0.0
        %515 = vmatprep.subr.mxu0 0.0
        %516 = vmatpush1.msra.mxu0 0.0
        %517 = vmatprep.subr.mxu0 0.0
        %518 = vmatpush1.msra.mxu0 0.0
        %519 = vmatprep.subr.mxu0 0.0
        %520 = vmatpush1.msra.mxu0 0.0
        %521 = vmatprep.subr.mxu0 0.0
        %522 = vmatpush1.msra.mxu0 0.0
        %523 = vmatprep.subr.mxu0 0.0
        %524 = vmatpush1.msra.mxu0 0.0
        %525 = vmatprep.subr.mxu0 0.0
        %526 = vmatpush1.msra.mxu0 0.0
        %527 = vmatprep.subr.mxu0 0.0
        %528 = vmatpush1.msra.mxu0 0.0
        %529 = vmatprep.subr.mxu0 0.0
        %530 = vmatpush1.msra.mxu0 0.0
        %531 = vmatprep.subr.mxu0 0.0
        %532 = vmatpush1.msra.mxu0 0.0
        %533 = vmatprep.subr.mxu0 0.0
        %534 = vmatpush1.msra.mxu0 0.0
        %535 = vmatprep.subr.mxu0 0.0
        %536 = vmatpush1.msra.mxu0 0.0
        %537 = vmatprep.mubr.f32.mxu0 0.0
        %538 = vmatmul.mubr.f32.gmra.mrb[0].mxu0 %v458
        %v539 = vpop.f32.mrb[0].mxu0
        %v540 = vadd.f32 0.0, %v539
        %v541 = vpop.f32.mrb[0].mxu0
        %v542 = vadd.f32 0.0, %v541
        %543 = vmatprep.mubr.f32.mxu0 0.0
        %544 = vmatmul.mubr.f32.gmra.mrb[0].mxu0 %v460
        %v545 = vpop.f32.mrb[0].mxu0
        %v546 = vadd.f32 0.0, %v545
        %v547 = vpop.f32.mrb[0].mxu0
        %v548 = vadd.f32 0.0, %v547
        %549 = vmatprep.mubr.f32.mxu0 0.0
        %550 = vmatmul.mubr.f32.gmra.mrb[0].mxu0 %v462
        %v551 = vpop.f32.mrb[0].mxu0
        %v552 = vadd.f32 0.0, %v551
        %v553 = vpop.f32.mrb[0].mxu0
        %v554 = vadd.f32 0.0, %v553
        %555 = vmatprep.mubr.f32.mxu0 0.0
        %556 = vmatmul.mubr.f32.gmra.mrb[0].mxu0 %v464
        %v557 = vpop.f32.mrb[0].mxu0
        %v558 = vadd.f32 0.0, %v557
        %v559 = vpop.f32.mrb[0].mxu0
        %v560 = vadd.f32 0.0, %v559
        %561 = vdwg.mxu0
        %v562 = vsel %vm457, %v424, 0
        %v564 = vsel %vm457, %v425, 0
        %v566 = vsel %vm457, %v426, 0
        %v568 = vsel %vm457, %v427, 0
        %v571 = vsel %vm466, %v434, 0
        %v574 = vsel %vm466, %v435, 0
        %576 = vmatprep.subr.mxu0 %v429
        %577 = vmatpush1.msra.mxu0 %v428
        %578 = vmatprep.subr.mxu0 %v431
        %579 = vmatpush1.msra.mxu0 %v430
        %580 = vmatprep.subr.mxu0 %v433
        %581 = vmatpush1.msra.mxu0 %v432
        %582 = vmatprep.subr.mxu0 %v574
        %583 = vmatpush1.msra.mxu0 %v571
        %584 = vmatprep.subr.mxu0 0.0
        %585 = vmatpush1.msra.mxu0 0.0
        %586 = vmatprep.subr.mxu0 0.0
        %587 = vmatpush1.msra.mxu0 0.0
        %588 = vmatprep.subr.mxu0 0.0
        %589 = vmatpush1.msra.mxu0 0.0
        %590 = vmatprep.subr.mxu0 0.0
        %591 = vmatpush1.msra.mxu0 0.0
        %592 = vmatprep.subr.mxu0 0.0
        %593 = vmatpush1.msra.mxu0 0.0
        %594 = vmatprep.subr.mxu0 0.0
        %595 = vmatpush1.msra.mxu0 0.0
        %596 = vmatprep.subr.mxu0 0.0
        %597 = vmatpush1.msra.mxu0 0.0
        %598 = vmatprep.subr.mxu0 0.0
        %599 = vmatpush1.msra.mxu0 0.0
        %600 = vmatprep.subr.mxu0 0.0
        %601 = vmatpush1.msra.mxu0 0.0
        %602 = vmatprep.subr.mxu0 0.0
        %603 = vmatpush1.msra.mxu0 0.0
        %604 = vmatprep.subr.mxu0 0.0
        %605 = vmatpush1.msra.mxu0 0.0
        %606 = vmatprep.subr.mxu0 0.0
        %607 = vmatpush1.msra.mxu0 0.0
        %608 = vmatprep.subr.mxu0 0.0
        %609 = vmatpush1.msra.mxu0 0.0
        %610 = vmatprep.subr.mxu0 0.0
        %611 = vmatpush1.msra.mxu0 0.0
        %612 = vmatprep.subr.mxu0 0.0
        %613 = vmatpush1.msra.mxu0 0.0
        %614 = vmatprep.subr.mxu0 0.0
        %615 = vmatpush1.msra.mxu0 0.0
        %616 = vmatprep.subr.mxu0 0.0
        %617 = vmatpush1.msra.mxu0 0.0
        %618 = vmatprep.subr.mxu0 0.0
        %619 = vmatpush1.msra.mxu0 0.0
        %620 = vmatprep.subr.mxu0 0.0
        %621 = vmatpush1.msra.mxu0 0.0
        %622 = vmatprep.subr.mxu0 0.0
        %623 = vmatpush1.msra.mxu0 0.0
        %624 = vmatprep.subr.mxu0 0.0
        %625 = vmatpush1.msra.mxu0 0.0
        %626 = vmatprep.subr.mxu0 0.0
        %627 = vmatpush1.msra.mxu0 0.0
        %628 = vmatprep.subr.mxu0 0.0
        %629 = vmatpush1.msra.mxu0 0.0
        %630 = vmatprep.subr.mxu0 0.0
        %631 = vmatpush1.msra.mxu0 0.0
        %632 = vmatprep.subr.mxu0 0.0
        %633 = vmatpush1.msra.mxu0 0.0
        %634 = vmatprep.subr.mxu0 0.0
        %635 = vmatpush1.msra.mxu0 0.0
        %636 = vmatprep.subr.mxu0 0.0
        %637 = vmatpush1.msra.mxu0 0.0
        %638 = vmatprep.subr.mxu0 0.0
        %639 = vmatpush1.msra.mxu0 0.0
        %640 = vmatprep.mubr.f32.mxu0 0.0
        %641 = vmatmul.mubr.f32.gmra.mrb[0].mxu0 %v562
        %v642 = vpop.f32.mrb[0].mxu0
        %v643 = vadd.f32 %v540, %v642
        %v644 = vpop.f32.mrb[0].mxu0
        %v645 = vadd.f32 %v542, %v644
        %646 = vmatprep.mubr.f32.mxu0 0.0
        %647 = vmatmul.mubr.f32.gmra.mrb[0].mxu0 %v564
        %v648 = vpop.f32.mrb[0].mxu0
        %v649 = vadd.f32 %v546, %v648
        %v650 = vpop.f32.mrb[0].mxu0
        %v651 = vadd.f32 %v548, %v650
        %652 = vmatprep.mubr.f32.mxu0 0.0
        %653 = vmatmul.mubr.f32.gmra.mrb[0].mxu0 %v566
        %v654 = vpop.f32.mrb[0].mxu0
        %v655 = vadd.f32 %v552, %v654
        %v656 = vpop.f32.mrb[0].mxu0
        %v657 = vadd.f32 %v554, %v656
        %658 = vmatprep.mubr.f32.mxu0 0.0
        %659 = vmatmul.mubr.f32.gmra.mrb[0].mxu0 %v568
        %v660 = vpop.f32.mrb[0].mxu0
        %v661 = vadd.f32 %v558, %v660
        %v662 = vpop.f32.mrb[0].mxu0
        %v663 = vadd.f32 %v560, %v662
        %664 = vdwg.mxu0
        %s665 = scalar_lea.vmem [#allocation2], 128
        %v666 = vld [vmem:[%s665] sm:$0xff]
        %v667 = vld [vmem:[%s665 + $0x8] sm:$0xff]
        %v668 = vld [vmem:[%s665 + $0x10] sm:$0xff]
        %v669 = vld [vmem:[%s665 + $0x18] sm:$0xff]
        %v670 = vld [vmem:[%s665 + $0x20] sm:$0xff]
        %v671 = vld [vmem:[%s665 + $0x28] sm:$0xff]
        %v672 = vld [vmem:[%s665 + $0x30] sm:$0xf]
        %v673 = vld [vmem:[%s665 + $0x38] sm:$0xf]
        %vm674 = vcmask 1045504
        %v675 = vrot.slane %v424, 2
        %v676 = vrot.slane %v425, 2
        %v677 = vsel %vm674, %v675, %v676
        %v678 = vrot.slane %v426, 2
        %v679 = vsel %vm674, %v676, %v678
        %v680 = vrot.slane %v427, 2
        %v681 = vsel %vm674, %v678, %v680
        %v682 = vsel %vm457, %v677, 0
        %v684 = vsel %vm457, %v679, 0
        %v686 = vsel %vm457, %v681, 0
        %v688 = vsel %vm457, %v680, 0
        %v691 = vsel %vm466, %v672, 0
        %v694 = vsel %vm466, %v673, 0
        %696 = vmatprep.subr.mxu0 %v667
        %697 = vmatpush1.msra.mxu0 %v666
        %698 = vmatprep.subr.mxu0 %v669
        %699 = vmatpush1.msra.mxu0 %v668
        %700 = vmatprep.subr.mxu0 %v671
        %701 = vmatpush1.msra.mxu0 %v670
        %702 = vmatprep.subr.mxu0 %v694
        %703 = vmatpush1.msra.mxu0 %v691
        %704 = vmatprep.subr.mxu0 0.0
        %705 = vmatpush1.msra.mxu0 0.0
        %706 = vmatprep.subr.mxu0 0.0
        %707 = vmatpush1.msra.mxu0 0.0
        %708 = vmatprep.subr.mxu0 0.0
        %709 = vmatpush1.msra.mxu0 0.0
        %710 = vmatprep.subr.mxu0 0.0
        %711 = vmatpush1.msra.mxu0 0.0
        %712 = vmatprep.subr.mxu0 0.0
        %713 = vmatpush1.msra.mxu0 0.0
        %714 = vmatprep.subr.mxu0 0.0
        %715 = vmatpush1.msra.mxu0 0.0
        %716 = vmatprep.subr.mxu0 0.0
        %717 = vmatpush1.msra.mxu0 0.0
        %718 = vmatprep.subr.mxu0 0.0
        %719 = vmatpush1.msra.mxu0 0.0
        %720 = vmatprep.subr.mxu0 0.0
        %721 = vmatpush1.msra.mxu0 0.0
        %722 = vmatprep.subr.mxu0 0.0
        %723 = vmatpush1.msra.mxu0 0.0
        %724 = vmatprep.subr.mxu0 0.0
        %725 = vmatpush1.msra.mxu0 0.0
        %726 = vmatprep.subr.mxu0 0.0
        %727 = vmatpush1.msra.mxu0 0.0
        %728 = vmatprep.subr.mxu0 0.0
        %729 = vmatpush1.msra.mxu0 0.0
        %730 = vmatprep.subr.mxu0 0.0
        %731 = vmatpush1.msra.mxu0 0.0
        %732 = vmatprep.subr.mxu0 0.0
        %733 = vmatpush1.msra.mxu0 0.0
        %734 = vmatprep.subr.mxu0 0.0
        %735 = vmatpush1.msra.mxu0 0.0
        %736 = vmatprep.subr.mxu0 0.0
        %737 = vmatpush1.msra.mxu0 0.0
        %738 = vmatprep.subr.mxu0 0.0
        %739 = vmatpush1.msra.mxu0 0.0
        %740 = vmatprep.subr.mxu0 0.0
        %741 = vmatpush1.msra.mxu0 0.0
        %742 = vmatprep.subr.mxu0 0.0
        %743 = vmatpush1.msra.mxu0 0.0
        %744 = vmatprep.subr.mxu0 0.0
        %745 = vmatpush1.msra.mxu0 0.0
        %746 = vmatprep.subr.mxu0 0.0
        %747 = vmatpush1.msra.mxu0 0.0
        %748 = vmatprep.subr.mxu0 0.0
        %749 = vmatpush1.msra.mxu0 0.0
        %750 = vmatprep.subr.mxu0 0.0
        %751 = vmatpush1.msra.mxu0 0.0
        %752 = vmatprep.subr.mxu0 0.0
        %753 = vmatpush1.msra.mxu0 0.0
        %754 = vmatprep.subr.mxu0 0.0
        %755 = vmatpush1.msra.mxu0 0.0
        %756 = vmatprep.subr.mxu0 0.0
        %757 = vmatpush1.msra.mxu0 0.0
        %758 = vmatprep.subr.mxu0 0.0
        %759 = vmatpush1.msra.mxu0 0.0
        %760 = vmatprep.mubr.f32.mxu0 0.0
        %761 = vmatmul.mubr.f32.gmra.mrb[0].mxu0 %v682
        %v762 = vpop.f32.mrb[0].mxu0
        %v763 = vadd.f32 0.0, %v762
        %v764 = vpop.f32.mrb[0].mxu0
        %v765 = vadd.f32 0.0, %v764
        %766 = vmatprep.mubr.f32.mxu0 0.0
        %767 = vmatmul.mubr.f32.gmra.mrb[0].mxu0 %v684
        %v768 = vpop.f32.mrb[0].mxu0
        %v769 = vadd.f32 0.0, %v768
        %v770 = vpop.f32.mrb[0].mxu0
        %v771 = vadd.f32 0.0, %v770
        %772 = vmatprep.mubr.f32.mxu0 0.0
        %773 = vmatmul.mubr.f32.gmra.mrb[0].mxu0 %v686
        %v774 = vpop.f32.mrb[0].mxu0
        %v775 = vadd.f32 0.0, %v774
        %v776 = vpop.f32.mrb[0].mxu0
        %v777 = vadd.f32 0.0, %v776
        %778 = vmatprep.mubr.f32.mxu0 0.0
        %779 = vmatmul.mubr.f32.gmra.mrb[0].mxu0 %v688
        %v780 = vpop.f32.mrb[0].mxu0
        %v781 = vadd.f32 0.0, %v780
        %v782 = vpop.f32.mrb[0].mxu0
        %v783 = vadd.f32 0.0, %v782
        %784 = vdwg.mxu0
        %v785 = vadd.f32 %v643, %v763
        %v786 = vadd.f32 %v645, %v765
        %v787 = vadd.f32 %v649, %v769
        %v788 = vadd.f32 %v651, %v771
        %v789 = vadd.f32 %v655, %v775
        %v790 = vadd.f32 %v657, %v777
        %v791 = vadd.f32 %v661, %v781
        %v792 = vadd.f32 %v663, %v783
        %v793 = vld [vmem:[#allocation5] sm:$0x3]
        %v795 = vlaneseq
        %v796 = vshrl.u32 %v795, 7
        %v797 = vsub.s32 0, %v796
        %v798 = vrot.slane %v793, %v797
        %v799 = vlaneseq
        %v800 = vshrl.u32 %v799, 7
        %v801 = vsub.s32 1, %v800
        %v802 = vrot.slane %v793, %v801
        %v805 = vadd.f32 %v785, %v798
        %v806 = vadd.f32 %v786, %v802
        %v807 = vadd.f32 %v787, %v798
        %v808 = vadd.f32 %v788, %v802
        %v809 = vadd.f32 %v789, %v798
        %v810 = vadd.f32 %v790, %v802
        %v811 = vadd.f32 %v791, %v798
        %v812 = vadd.f32 %v792, %v802
        %v813 = vmax.f32 %v805, 0.0
        %v814 = vmax.f32 %v806, 0.0
        %v815 = vmax.f32 %v807, 0.0
        %v816 = vmax.f32 %v808, 0.0
        %v817 = vmax.f32 %v809, 0.0
        %v818 = vmax.f32 %v810, 0.0
        %v819 = vmax.f32 %v811, 0.0
        %v820 = vmax.f32 %v812, 0.0
        %v821 = vld [vmem:[#allocation7] sm:$0xff]
        %v822 = vld [vmem:[#allocation7 + $0x8] sm:$0xff]
        %v823 = vld [vmem:[#allocation7 + $0x10] sm:$0xff]
        %v824 = vld [vmem:[#allocation7 + $0x18] sm:$0xff]
        %v825 = vld [vmem:[#allocation7 + $0x20] sm:$0xff]
        %v826 = vld [vmem:[#allocation7 + $0x28] sm:$0xff]
        %v827 = vld [vmem:[#allocation7 + $0x30] sm:$0xff]
        %v828 = vld [vmem:[#allocation7 + $0x38] sm:$0xff]
        %v829 = vld [vmem:[#allocation7 + $0x40] sm:$0xff]
        %v830 = vld [vmem:[#allocation7 + $0x48] sm:$0xff]
        %v831 = vld [vmem:[#allocation7 + $0x50] sm:$0xff]
        %v832 = vld [vmem:[#allocation7 + $0x58] sm:$0xff]
        %v833 = vld [vmem:[#allocation7 + $0x60] sm:$0xff]
        %v834 = vld [vmem:[#allocation7 + $0x68] sm:$0xff]
        %v835 = vld [vmem:[#allocation7 + $0x70] sm:$0xff]
        %v836 = vld [vmem:[#allocation7 + $0x78] sm:$0xff]
        %v837 = vld [vmem:[#allocation7 + $0x80] sm:$0xff]
        %v838 = vld [vmem:[#allocation7 + $0x88] sm:$0xff]
        %v839 = vld [vmem:[#allocation7 + $0x90] sm:$0xff]
        %v840 = vld [vmem:[#allocation7 + $0x98] sm:$0xff]
        %v841 = vld [vmem:[#allocation7 + $0xa0] sm:$0xff]
        %v842 = vld [vmem:[#allocation7 + $0xa8] sm:$0xff]
        %v843 = vld [vmem:[#allocation7 + $0xb0] sm:$0xff]
        %v844 = vld [vmem:[#allocation7 + $0xb8] sm:$0xff]
        %v845 = vld [vmem:[#allocation7 + $0xc0] sm:$0xff]
        %v846 = vld [vmem:[#allocation7 + $0xc8] sm:$0xff]
        %v847 = vld [vmem:[#allocation7 + $0xd0] sm:$0xff]
        %v848 = vld [vmem:[#allocation7 + $0xd8] sm:$0xff]
        %v849 = vld [vmem:[#allocation7 + $0xe0] sm:$0xff]
        %v850 = vld [vmem:[#allocation7 + $0xe8] sm:$0xff]
        %v851 = vld [vmem:[#allocation7 + $0xf0] sm:$0xff]
        %v852 = vld [vmem:[#allocation7 + $0xf8] sm:$0xff]
        %v853 = vld [vmem:[#allocation7 + $0x100] sm:$0xff]
        %v854 = vld [vmem:[#allocation7 + $0x108] sm:$0xff]
        %v855 = vld [vmem:[#allocation7 + $0x110] sm:$0xff]
        %v856 = vld [vmem:[#allocation7 + $0x118] sm:$0xff]
        %v857 = vld [vmem:[#allocation7 + $0x120] sm:$0xff]
        %v858 = vld [vmem:[#allocation7 + $0x128] sm:$0xff]
        %v859 = vld [vmem:[#allocation7 + $0x130] sm:$0xff]
        %v860 = vld [vmem:[#allocation7 + $0x138] sm:$0xff]
        %v861 = vld [vmem:[#allocation7 + $0x140] sm:$0xff]
        %v862 = vld [vmem:[#allocation7 + $0x148] sm:$0xff]
        %v863 = vld [vmem:[#allocation7 + $0x150] sm:$0xff]
        %v864 = vld [vmem:[#allocation7 + $0x158] sm:$0xff]
        %v865 = vld [vmem:[#allocation7 + $0x160] sm:$0xff]
        %v866 = vld [vmem:[#allocation7 + $0x168] sm:$0xff]
        %v867 = vld [vmem:[#allocation7 + $0x170] sm:$0xff]
        %v868 = vld [vmem:[#allocation7 + $0x178] sm:$0xff]
        %v869 = vld [vmem:[#allocation7 + $0x180] sm:$0xff]
        %v870 = vld [vmem:[#allocation7 + $0x188] sm:$0xff]
        %v871 = vld [vmem:[#allocation7 + $0x190] sm:$0xff]
        %v872 = vld [vmem:[#allocation7 + $0x198] sm:$0xff]
        %v873 = vld [vmem:[#allocation7 + $0x1a0] sm:$0xff]
        %v874 = vld [vmem:[#allocation7 + $0x1a8] sm:$0xff]
        %v875 = vld [vmem:[#allocation7 + $0x1b0] sm:$0xff]
        %v876 = vld [vmem:[#allocation7 + $0x1b8] sm:$0xff]
        %v877 = vld [vmem:[#allocation7 + $0x1c0] sm:$0xff]
        %v878 = vld [vmem:[#allocation7 + $0x1c8] sm:$0xff]
        %v879 = vld [vmem:[#allocation7 + $0x1d0] sm:$0xff]
        %v880 = vld [vmem:[#allocation7 + $0x1d8] sm:$0xff]
        %v881 = vld [vmem:[#allocation7 + $0x1e0] sm:$0xff]
        %v882 = vld [vmem:[#allocation7 + $0x1e8] sm:$0xff]
        %v883 = vld [vmem:[#allocation7 + $0x1f0] sm:$0xff]
        %v884 = vld [vmem:[#allocation7 + $0x1f8] sm:$0xff]
        %v885 = vld [vmem:[#allocation7 + $0x200] sm:$0xff]
        %v886 = vld [vmem:[#allocation7 + $0x208] sm:$0xff]
        %v887 = vld [vmem:[#allocation7 + $0x210] sm:$0xff]
        %v888 = vld [vmem:[#allocation7 + $0x218] sm:$0xff]
        %v889 = vld [vmem:[#allocation7 + $0x220] sm:$0xff]
        %v890 = vld [vmem:[#allocation7 + $0x228] sm:$0xff]
        %v891 = vld [vmem:[#allocation7 + $0x230] sm:$0xff]
        %v892 = vld [vmem:[#allocation7 + $0x238] sm:$0xff]
        %v893 = vld [vmem:[#allocation7 + $0x240] sm:$0xff]
        %v894 = vld [vmem:[#allocation7 + $0x248] sm:$0xff]
        %v895 = vld [vmem:[#allocation7 + $0x250] sm:$0xff]
        %v896 = vld [vmem:[#allocation7 + $0x258] sm:$0xff]
        %v897 = vld [vmem:[#allocation7 + $0x260] sm:$0xff]
        %v898 = vld [vmem:[#allocation7 + $0x268] sm:$0xff]
        %s899 = scalar_lea.vmem [#allocation7], 624
        %v900 = vld [vmem:[%s899] sm:$0xff]
        %v901 = vld [vmem:[%s899 + $0x8] sm:$0xff]
        %v902 = vld [vmem:[%s899 + $0x10] sm:$0xff]
        %v903 = vld [vmem:[%s899 + $0x18] sm:$0xff]
        %v904 = vld [vmem:[%s899 + $0x20] sm:$0xff]
        %v905 = vld [vmem:[%s899 + $0x28] sm:$0xff]
        %v906 = vld [vmem:[%s899 + $0x30] sm:$0xff]
        %v907 = vld [vmem:[%s899 + $0x38] sm:$0xff]
        %v908 = vld [vmem:[%s899 + $0x40] sm:$0xff]
        %v909 = vld [vmem:[%s899 + $0x48] sm:$0xff]
        %v910 = vld [vmem:[%s899 + $0x50] sm:$0xff]
        %v911 = vld [vmem:[%s899 + $0x58] sm:$0xff]
        %v912 = vld [vmem:[%s899 + $0x60] sm:$0xff]
        %v913 = vld [vmem:[%s899 + $0x68] sm:$0xff]
        %v914 = vld [vmem:[%s899 + $0x70] sm:$0xff]
        %v915 = vld [vmem:[%s899 + $0x78] sm:$0xff]
        %v916 = vld [vmem:[%s899 + $0x80] sm:$0xff]
        %v917 = vld [vmem:[%s899 + $0x88] sm:$0xff]
        %v918 = vld [vmem:[%s899 + $0x90] sm:$0xff]
        %v919 = vld [vmem:[%s899 + $0x98] sm:$0xff]
        %v920 = vld [vmem:[%s899 + $0xa0] sm:$0xff]
        %v921 = vld [vmem:[%s899 + $0xa8] sm:$0xff]
        %v922 = vld [vmem:[%s899 + $0xb0] sm:$0xff]
        %v923 = vld [vmem:[%s899 + $0xb8] sm:$0xff]
        %v924 = vld [vmem:[%s899 + $0xc0] sm:$0xff]
        %v925 = vld [vmem:[%s899 + $0xc8] sm:$0xff]
        %v926 = vld [vmem:[%s899 + $0xd0] sm:$0xff]
        %v927 = vld [vmem:[%s899 + $0xd8] sm:$0xff]
        %v928 = vld [vmem:[%s899 + $0xe0] sm:$0xff]
        %v929 = vld [vmem:[%s899 + $0xe8] sm:$0xff]
        %v930 = vld [vmem:[%s899 + $0xf0] sm:$0xff]
        %v931 = vld [vmem:[%s899 + $0xf8] sm:$0xff]
        %v932 = vld [vmem:[%s899 + $0x100] sm:$0xff]
        %v933 = vld [vmem:[%s899 + $0x108] sm:$0xff]
        %v934 = vld [vmem:[%s899 + $0x110] sm:$0xff]
        %v935 = vld [vmem:[%s899 + $0x118] sm:$0xff]
        %v936 = vld [vmem:[%s899 + $0x120] sm:$0xff]
        %v937 = vld [vmem:[%s899 + $0x128] sm:$0xff]
        %v938 = vld [vmem:[%s899 + $0x130] sm:$0xff]
        %v939 = vld [vmem:[%s899 + $0x138] sm:$0xff]
        %v940 = vld [vmem:[%s899 + $0x140] sm:$0xff]
        %v941 = vld [vmem:[%s899 + $0x148] sm:$0xff]
        %v942 = vld [vmem:[%s899 + $0x150] sm:$0xff]
        %v943 = vld [vmem:[%s899 + $0x158] sm:$0xff]
        %v944 = vld [vmem:[%s899 + $0x160] sm:$0xff]
        %v945 = vld [vmem:[%s899 + $0x168] sm:$0xff]
        %v946 = vld [vmem:[%s899 + $0x170] sm:$0xff]
        %v947 = vld [vmem:[%s899 + $0x178] sm:$0xff]
        %v948 = vld [vmem:[%s899 + $0x180] sm:$0xff]
        %v949 = vld [vmem:[%s899 + $0x188] sm:$0xff]
        %v950 = vld [vmem:[%s899 + $0x190] sm:$0xff]
        %v951 = vld [vmem:[%s899 + $0x198] sm:$0xff]
        %v952 = vld [vmem:[%s899 + $0x1a0] sm:$0xff]
        %v953 = vld [vmem:[%s899 + $0x1a8] sm:$0xff]
        %v954 = vld [vmem:[%s899 + $0x1b0] sm:$0xff]
        %v955 = vld [vmem:[%s899 + $0x1b8] sm:$0xff]
        %v956 = vld [vmem:[%s899 + $0x1c0] sm:$0xff]
        %v957 = vld [vmem:[%s899 + $0x1c8] sm:$0xff]
        %v958 = vld [vmem:[%s899 + $0x1d0] sm:$0xff]
        %v959 = vld [vmem:[%s899 + $0x1d8] sm:$0xff]
        %v960 = vld [vmem:[%s899 + $0x1e0] sm:$0xff]
        %v961 = vld [vmem:[%s899 + $0x1e8] sm:$0xff]
        %v962 = vld [vmem:[%s899 + $0x1f0] sm:$0xff]
        %v963 = vld [vmem:[%s899 + $0x1f8] sm:$0xff]
        %v964 = vld [vmem:[%s899 + $0x200] sm:$0xff]
        %v965 = vld [vmem:[%s899 + $0x208] sm:$0xff]
        %v966 = vld [vmem:[%s899 + $0x210] sm:$0xff]
        %v967 = vld [vmem:[%s899 + $0x218] sm:$0xff]
        %v968 = vld [vmem:[%s899 + $0x220] sm:$0xff]
        %v969 = vld [vmem:[%s899 + $0x228] sm:$0xff]
        %v970 = vld [vmem:[%s899 + $0x230] sm:$0xff]
        %v971 = vld [vmem:[%s899 + $0x238] sm:$0xff]
        %v972 = vld [vmem:[%s899 + $0x240] sm:$0xff]
        %v973 = vld [vmem:[%s899 + $0x248] sm:$0xff]
        %v974 = vld [vmem:[%s899 + $0x250] sm:$0xff]
        %v975 = vld [vmem:[%s899 + $0x258] sm:$0xff]
        %v976 = vld [vmem:[%s899 + $0x260] sm:$0xff]
        %v977 = vld [vmem:[%s899 + $0x268] sm:$0xff]
        %v986 = vrot.slane %v813, 1
        %v987 = vrot.slane %v815, 1
        %v988 = vsel %vm449, %v986, %v987
        %v989 = vrot.slane %v814, 1
        %v990 = vrot.slane %v816, 1
        %v991 = vsel %vm449, %v989, %v990
        %v992 = vrot.slane %v817, 1
        %v993 = vsel %vm449, %v987, %v992
        %v994 = vrot.slane %v818, 1
        %v995 = vsel %vm449, %v990, %v994
        %v996 = vrot.slane %v819, 1
        %v997 = vsel %vm449, %v992, %v996
        %v998 = vrot.slane %v820, 1
        %v999 = vsel %vm449, %v994, %v998
        %vm1003 = vcmask 654336
        %v1004 = vsel %vm1003, %v991, 0
        %v1006 = vsel %vm1003, %v995, 0
        %v1008 = vsel %vm1003, %v999, 0
        %1010 = vmatprep.subr.mxu0 %v901
        %1011 = vmatpush1.msra.mxu0 %v900
        %1012 = vmatprep.subr.mxu0 %v904
        %1013 = vmatpush1.msra.mxu0 %v903
        %1014 = vmatprep.subr.mxu0 %v907
        %1015 = vmatpush1.msra.mxu0 %v906
        %1016 = vmatprep.subr.mxu0 %v910
        %1017 = vmatpush1.msra.mxu0 %v909
        %1018 = vmatprep.subr.mxu0 %v913
        %1019 = vmatpush1.msra.mxu0 %v912
        %1020 = vmatprep.subr.mxu0 %v916
        %1021 = vmatpush1.msra.mxu0 %v915
        %1022 = vmatprep.subr.mxu0 %v919
        %1023 = vmatpush1.msra.mxu0 %v918
        %1024 = vmatprep.subr.mxu0 %v922
        %1025 = vmatpush1.msra.mxu0 %v921
        %1026 = vmatprep.subr.mxu0 %v925
        %1027 = vmatpush1.msra.mxu0 %v924
        %1028 = vmatprep.subr.mxu0 %v928
        %1029 = vmatpush1.msra.mxu0 %v927
        %1030 = vmatprep.subr.mxu0 %v931
        %1031 = vmatpush1.msra.mxu0 %v930
        %1032 = vmatprep.subr.mxu0 %v934
        %1033 = vmatpush1.msra.mxu0 %v933
        %1034 = vmatprep.subr.mxu0 %v937
        %1035 = vmatpush1.msra.mxu0 %v936
        %1036 = vmatprep.subr.mxu0 %v940
        %1037 = vmatpush1.msra.mxu0 %v939
        %1038 = vmatprep.subr.mxu0 %v943
        %1039 = vmatpush1.msra.mxu0 %v942
        %1040 = vmatprep.subr.mxu0 %v946
        %1041 = vmatpush1.msra.mxu0 %v945
        %1042 = vmatprep.subr.mxu0 %v949
        %1043 = vmatpush1.msra.mxu0 %v948
        %1044 = vmatprep.subr.mxu0 %v952
        %1045 = vmatpush1.msra.mxu0 %v951
        %1046 = vmatprep.subr.mxu0 %v955
        %1047 = vmatpush1.msra.mxu0 %v954
        %1048 = vmatprep.subr.mxu0 %v958
        %1049 = vmatpush1.msra.mxu0 %v957
        %1050 = vmatprep.subr.mxu0 %v961
        %1051 = vmatpush1.msra.mxu0 %v960
        %1052 = vmatprep.subr.mxu0 %v964
        %1053 = vmatpush1.msra.mxu0 %v963
        %1054 = vmatprep.subr.mxu0 %v967
        %1055 = vmatpush1.msra.mxu0 %v966
        %1056 = vmatprep.subr.mxu0 %v970
        %1057 = vmatpush1.msra.mxu0 %v969
        %1058 = vmatprep.subr.mxu0 %v973
        %1059 = vmatpush1.msra.mxu0 %v972
        %1060 = vmatprep.subr.mxu0 %v976
        %1061 = vmatpush1.msra.mxu0 %v975
        %1062 = vmatprep.subr.mxu0 0.0
        %1063 = vmatpush1.msra.mxu0 0.0
        %1064 = vmatprep.subr.mxu0 0.0
        %1065 = vmatpush1.msra.mxu0 0.0
        %1066 = vmatprep.subr.mxu0 0.0
        %1067 = vmatpush1.msra.mxu0 0.0
        %1068 = vmatprep.subr.mxu0 0.0
        %1069 = vmatpush1.msra.mxu0 0.0
        %1070 = vmatprep.subr.mxu0 0.0
        %1071 = vmatpush1.msra.mxu0 0.0
        %1072 = vmatprep.subr.mxu0 0.0
        %1073 = vmatpush1.msra.mxu0 0.0
        %1074 = vmatprep.mubr.f32.mxu0 %v1004
        %1075 = vmatmul.mubr.f32.gmra.mrb[0].mxu0 %v988
        %v1076 = vpop.f32.mrb[0].mxu0
        %v1077 = vadd.f32 0.0, %v1076
        %v1078 = vpop.f32.mrb[0].mxu0
        %v1079 = vadd.f32 0.0, %v1078
        %1080 = vmatprep.mubr.f32.mxu0 %v1006
        %1081 = vmatmul.mubr.f32.gmra.mrb[0].mxu0 %v993
        %v1082 = vpop.f32.mrb[0].mxu0
        %v1083 = vadd.f32 0.0, %v1082
        %v1084 = vpop.f32.mrb[0].mxu0
        %v1085 = vadd.f32 0.0, %v1084
        %1086 = vmatprep.mubr.f32.mxu0 %v1008
        %1087 = vmatmul.mubr.f32.gmra.mrb[0].mxu0 %v997
        %v1088 = vpop.f32.mrb[0].mxu0
        %v1089 = vadd.f32 0.0, %v1088
        %v1090 = vpop.f32.mrb[0].mxu0
        %v1091 = vadd.f32 0.0, %v1090
        %1092 = vdwg.mxu0
        %1093 = vmatprep.subr.mxu0 0.0
        %1094 = vmatpush1.msra.mxu0 %v902
        %1095 = vmatprep.subr.mxu0 0.0
        %1096 = vmatpush1.msra.mxu0 %v905
        %1097 = vmatprep.subr.mxu0 0.0
        %1098 = vmatpush1.msra.mxu0 %v908
        %1099 = vmatprep.subr.mxu0 0.0
        %1100 = vmatpush1.msra.mxu0 %v911
        %1101 = vmatprep.subr.mxu0 0.0
        %1102 = vmatpush1.msra.mxu0 %v914
        %1103 = vmatprep.subr.mxu0 0.0
        %1104 = vmatpush1.msra.mxu0 %v917
        %1105 = vmatprep.subr.mxu0 0.0
        %1106 = vmatpush1.msra.mxu0 %v920
        %1107 = vmatprep.subr.mxu0 0.0
        %1108 = vmatpush1.msra.mxu0 %v923
        %1109 = vmatprep.subr.mxu0 0.0
        %1110 = vmatpush1.msra.mxu0 %v926
        %1111 = vmatprep.subr.mxu0 0.0
        %1112 = vmatpush1.msra.mxu0 %v929
        %1113 = vmatprep.subr.mxu0 0.0
        %1114 = vmatpush1.msra.mxu0 %v932
        %1115 = vmatprep.subr.mxu0 0.0
        %1116 = vmatpush1.msra.mxu0 %v935
        %1117 = vmatprep.subr.mxu0 0.0
        %1118 = vmatpush1.msra.mxu0 %v938
        %1119 = vmatprep.subr.mxu0 0.0
        %1120 = vmatpush1.msra.mxu0 %v941
        %1121 = vmatprep.subr.mxu0 0.0
        %1122 = vmatpush1.msra.mxu0 %v944
        %1123 = vmatprep.subr.mxu0 0.0
        %1124 = vmatpush1.msra.mxu0 %v947
        %1125 = vmatprep.subr.mxu0 0.0
        %1126 = vmatpush1.msra.mxu0 %v950
        %1127 = vmatprep.subr.mxu0 0.0
        %1128 = vmatpush1.msra.mxu0 %v953
        %1129 = vmatprep.subr.mxu0 0.0
        %1130 = vmatpush1.msra.mxu0 %v956
        %1131 = vmatprep.subr.mxu0 0.0
        %1132 = vmatpush1.msra.mxu0 %v959
        %1133 = vmatprep.subr.mxu0 0.0
        %1134 = vmatpush1.msra.mxu0 %v962
        %1135 = vmatprep.subr.mxu0 0.0
        %1136 = vmatpush1.msra.mxu0 %v965
        %1137 = vmatprep.subr.mxu0 0.0
        %1138 = vmatpush1.msra.mxu0 %v968
        %1139 = vmatprep.subr.mxu0 0.0
        %1140 = vmatpush1.msra.mxu0 %v971
        %1141 = vmatprep.subr.mxu0 0.0
        %1142 = vmatpush1.msra.mxu0 %v974
        %1143 = vmatprep.subr.mxu0 0.0
        %1144 = vmatpush1.msra.mxu0 %v977
        %1145 = vmatprep.subr.mxu0 0.0
        %1146 = vmatpush1.msra.mxu0 0.0
        %1147 = vmatprep.subr.mxu0 0.0
        %1148 = vmatpush1.msra.mxu0 0.0
        %1149 = vmatprep.subr.mxu0 0.0
        %1150 = vmatpush1.msra.mxu0 0.0
        %1151 = vmatprep.subr.mxu0 0.0
        %1152 = vmatpush1.msra.mxu0 0.0
        %1153 = vmatprep.subr.mxu0 0.0
        %1154 = vmatpush1.msra.mxu0 0.0
        %1155 = vmatprep.subr.mxu0 0.0
        %1156 = vmatpush1.msra.mxu0 0.0
        %1157 = vmatprep.mubr.f32.mxu0 %v1004
        %1158 = vmatmul.mubr.f32.gmra.mrb[0].mxu0 %v988
        %v1159 = vpop.f32.mrb[0].mxu0
        %v1160 = vadd.f32 0.0, %v1159
        %v1161 = vpop.f32.mrb[0].mxu0
        %1162 = vmatprep.mubr.f32.mxu0 %v1006
        %1163 = vmatmul.mubr.f32.gmra.mrb[0].mxu0 %v993
        %v1164 = vpop.f32.mrb[0].mxu0
        %v1165 = vadd.f32 0.0, %v1164
        %v1166 = vpop.f32.mrb[0].mxu0
        %1167 = vmatprep.mubr.f32.mxu0 %v1008
        %1168 = vmatmul.mubr.f32.gmra.mrb[0].mxu0 %v997
        %v1169 = vpop.f32.mrb[0].mxu0
        %v1170 = vadd.f32 0.0, %v1169
        %v1171 = vpop.f32.mrb[0].mxu0
        %1172 = vdwg.mxu0
        %v1173 = vsel %vm1003, %v814, 0
        %v1175 = vsel %vm1003, %v816, 0
        %v1177 = vsel %vm1003, %v818, 0
        %1179 = vmatprep.subr.mxu0 %v822
        %1180 = vmatpush1.msra.mxu0 %v821
        %1181 = vmatprep.subr.mxu0 %v825
        %1182 = vmatpush1.msra.mxu0 %v824
        %1183 = vmatprep.subr.mxu0 %v828
        %1184 = vmatpush1.msra.mxu0 %v827
        %1185 = vmatprep.subr.mxu0 %v831
        %1186 = vmatpush1.msra.mxu0 %v830
        %1187 = vmatprep.subr.mxu0 %v834
        %1188 = vmatpush1.msra.mxu0 %v833
        %1189 = vmatprep.subr.mxu0 %v837
        %1190 = vmatpush1.msra.mxu0 %v836
        %1191 = vmatprep.subr.mxu0 %v840
        %1192 = vmatpush1.msra.mxu0 %v839
        %1193 = vmatprep.subr.mxu0 %v843
        %1194 = vmatpush1.msra.mxu0 %v842
        %1195 = vmatprep.subr.mxu0 %v846
        %1196 = vmatpush1.msra.mxu0 %v845
        %1197 = vmatprep.subr.mxu0 %v849
        %1198 = vmatpush1.msra.mxu0 %v848
        %1199 = vmatprep.subr.mxu0 %v852
        %1200 = vmatpush1.msra.mxu0 %v851
        %1201 = vmatprep.subr.mxu0 %v855
        %1202 = vmatpush1.msra.mxu0 %v854
        %1203 = vmatprep.subr.mxu0 %v858
        %1204 = vmatpush1.msra.mxu0 %v857
        %1205 = vmatprep.subr.mxu0 %v861
        %1206 = vmatpush1.msra.mxu0 %v860
        %1207 = vmatprep.subr.mxu0 %v864
        %1208 = vmatpush1.msra.mxu0 %v863
        %1209 = vmatprep.subr.mxu0 %v867
        %1210 = vmatpush1.msra.mxu0 %v866
        %1211 = vmatprep.subr.mxu0 %v870
        %1212 = vmatpush1.msra.mxu0 %v869
        %1213 = vmatprep.subr.mxu0 %v873
        %1214 = vmatpush1.msra.mxu0 %v872
        %1215 = vmatprep.subr.mxu0 %v876
        %1216 = vmatpush1.msra.mxu0 %v875
        %1217 = vmatprep.subr.mxu0 %v879
        %1218 = vmatpush1.msra.mxu0 %v878
        %1219 = vmatprep.subr.mxu0 %v882
        %1220 = vmatpush1.msra.mxu0 %v881
        %1221 = vmatprep.subr.mxu0 %v885
        %1222 = vmatpush1.msra.mxu0 %v884
        %1223 = vmatprep.subr.mxu0 %v888
        %1224 = vmatpush1.msra.mxu0 %v887
        %1225 = vmatprep.subr.mxu0 %v891
        %1226 = vmatpush1.msra.mxu0 %v890
        %1227 = vmatprep.subr.mxu0 %v894
        %1228 = vmatpush1.msra.mxu0 %v893
        %1229 = vmatprep.subr.mxu0 %v897
        %1230 = vmatpush1.msra.mxu0 %v896
        %1231 = vmatprep.subr.mxu0 0.0
        %1232 = vmatpush1.msra.mxu0 0.0
        %1233 = vmatprep.subr.mxu0 0.0
        %1234 = vmatpush1.msra.mxu0 0.0
        %1235 = vmatprep.subr.mxu0 0.0
        %1236 = vmatpush1.msra.mxu0 0.0
        %1237 = vmatprep.subr.mxu0 0.0
        %1238 = vmatpush1.msra.mxu0 0.0
        %1239 = vmatprep.subr.mxu0 0.0
        %1240 = vmatpush1.msra.mxu0 0.0
        %1241 = vmatprep.subr.mxu0 0.0
        %1242 = vmatpush1.msra.mxu0 0.0
        %1243 = vmatprep.mubr.f32.mxu0 %v1173
        %1244 = vmatmul.mubr.f32.gmra.mrb[0].mxu0 %v813
        %v1245 = vpop.f32.mrb[0].mxu0
        %v1246 = vadd.f32 %v1077, %v1245
        %v1247 = vpop.f32.mrb[0].mxu0
        %v1248 = vadd.f32 %v1079, %v1247
        %1249 = vmatprep.mubr.f32.mxu0 %v1175
        %1250 = vmatmul.mubr.f32.gmra.mrb[0].mxu0 %v815
        %v1251 = vpop.f32.mrb[0].mxu0
        %v1252 = vadd.f32 %v1083, %v1251
        %v1253 = vpop.f32.mrb[0].mxu0
        %v1254 = vadd.f32 %v1085, %v1253
        %1255 = vmatprep.mubr.f32.mxu0 %v1177
        %1256 = vmatmul.mubr.f32.gmra.mrb[0].mxu0 %v817
        %v1257 = vpop.f32.mrb[0].mxu0
        %v1258 = vadd.f32 %v1089, %v1257
        %v1259 = vpop.f32.mrb[0].mxu0
        %v1260 = vadd.f32 %v1091, %v1259
        %1261 = vdwg.mxu0
        %1262 = vmatprep.subr.mxu0 0.0
        %1263 = vmatpush1.msra.mxu0 %v823
        %1264 = vmatprep.subr.mxu0 0.0
        %1265 = vmatpush1.msra.mxu0 %v826
        %1266 = vmatprep.subr.mxu0 0.0
        %1267 = vmatpush1.msra.mxu0 %v829
        %1268 = vmatprep.subr.mxu0 0.0
        %1269 = vmatpush1.msra.mxu0 %v832
        %1270 = vmatprep.subr.mxu0 0.0
        %1271 = vmatpush1.msra.mxu0 %v835
        %1272 = vmatprep.subr.mxu0 0.0
        %1273 = vmatpush1.msra.mxu0 %v838
        %1274 = vmatprep.subr.mxu0 0.0
        %1275 = vmatpush1.msra.mxu0 %v841
        %1276 = vmatprep.subr.mxu0 0.0
        %1277 = vmatpush1.msra.mxu0 %v844
        %1278 = vmatprep.subr.mxu0 0.0
        %1279 = vmatpush1.msra.mxu0 %v847
        %1280 = vmatprep.subr.mxu0 0.0
        %1281 = vmatpush1.msra.mxu0 %v850
        %1282 = vmatprep.subr.mxu0 0.0
        %1283 = vmatpush1.msra.mxu0 %v853
        %1284 = vmatprep.subr.mxu0 0.0
        %1285 = vmatpush1.msra.mxu0 %v856
        %1286 = vmatprep.subr.mxu0 0.0
        %1287 = vmatpush1.msra.mxu0 %v859
        %1288 = vmatprep.subr.mxu0 0.0
        %1289 = vmatpush1.msra.mxu0 %v862
        %1290 = vmatprep.subr.mxu0 0.0
        %1291 = vmatpush1.msra.mxu0 %v865
        %1292 = vmatprep.subr.mxu0 0.0
        %1293 = vmatpush1.msra.mxu0 %v868
        %1294 = vmatprep.subr.mxu0 0.0
        %1295 = vmatpush1.msra.mxu0 %v871
        %1296 = vmatprep.subr.mxu0 0.0
        %1297 = vmatpush1.msra.mxu0 %v874
        %1298 = vmatprep.subr.mxu0 0.0
        %1299 = vmatpush1.msra.mxu0 %v877
        %1300 = vmatprep.subr.mxu0 0.0
        %1301 = vmatpush1.msra.mxu0 %v880
        %1302 = vmatprep.subr.mxu0 0.0
        %1303 = vmatpush1.msra.mxu0 %v883
        %1304 = vmatprep.subr.mxu0 0.0
        %1305 = vmatpush1.msra.mxu0 %v886
        %1306 = vmatprep.subr.mxu0 0.0
        %1307 = vmatpush1.msra.mxu0 %v889
        %1308 = vmatprep.subr.mxu0 0.0
        %1309 = vmatpush1.msra.mxu0 %v892
        %1310 = vmatprep.subr.mxu0 0.0
        %1311 = vmatpush1.msra.mxu0 %v895
        %1312 = vmatprep.subr.mxu0 0.0
        %1313 = vmatpush1.msra.mxu0 %v898
        %1314 = vmatprep.subr.mxu0 0.0
        %1315 = vmatpush1.msra.mxu0 0.0
        %1316 = vmatprep.subr.mxu0 0.0
        %1317 = vmatpush1.msra.mxu0 0.0
        %1318 = vmatprep.subr.mxu0 0.0
        %1319 = vmatpush1.msra.mxu0 0.0
        %1320 = vmatprep.subr.mxu0 0.0
        %1321 = vmatpush1.msra.mxu0 0.0
        %1322 = vmatprep.subr.mxu0 0.0
        %1323 = vmatpush1.msra.mxu0 0.0
        %1324 = vmatprep.subr.mxu0 0.0
        %1325 = vmatpush1.msra.mxu0 0.0
        %1326 = vmatprep.mubr.f32.mxu0 %v1173
        %1327 = vmatmul.mubr.f32.gmra.mrb[0].mxu0 %v813
        %v1328 = vpop.f32.mrb[0].mxu0
        %v1329 = vadd.f32 %v1160, %v1328
        %v1330 = vpop.f32.mrb[0].mxu0
        %1331 = vmatprep.mubr.f32.mxu0 %v1175
        %1332 = vmatmul.mubr.f32.gmra.mrb[0].mxu0 %v815
        %v1333 = vpop.f32.mrb[0].mxu0
        %v1334 = vadd.f32 %v1165, %v1333
        %v1335 = vpop.f32.mrb[0].mxu0
        %1336 = vmatprep.mubr.f32.mxu0 %v1177
        %1337 = vmatmul.mubr.f32.gmra.mrb[0].mxu0 %v817
        %v1338 = vpop.f32.mrb[0].mxu0
        %v1339 = vadd.f32 %v1170, %v1338
        %v1340 = vpop.f32.mrb[0].mxu0
        %1341 = vdwg.mxu0
        %s1342 = scalar_lea.vmem [#allocation7], 1248
        %v1343 = vld [vmem:[%s1342] sm:$0xff]
        %v1344 = vld [vmem:[%s1342 + $0x8] sm:$0xff]
        %v1345 = vld [vmem:[%s1342 + $0x10] sm:$0xff]
        %v1346 = vld [vmem:[%s1342 + $0x18] sm:$0xff]
        %v1347 = vld [vmem:[%s1342 + $0x20] sm:$0xff]
        %v1348 = vld [vmem:[%s1342 + $0x28] sm:$0xff]
        %v1349 = vld [vmem:[%s1342 + $0x30] sm:$0xff]
        %v1350 = vld [vmem:[%s1342 + $0x38] sm:$0xff]
        %v1351 = vld [vmem:[%s1342 + $0x40] sm:$0xff]
        %v1352 = vld [vmem:[%s1342 + $0x48] sm:$0xff]
        %v1353 = vld [vmem:[%s1342 + $0x50] sm:$0xff]
        %v1354 = vld [vmem:[%s1342 + $0x58] sm:$0xff]
        %v1355 = vld [vmem:[%s1342 + $0x60] sm:$0xff]
        %v1356 = vld [vmem:[%s1342 + $0x68] sm:$0xff]
        %v1357 = vld [vmem:[%s1342 + $0x70] sm:$0xff]
        %v1358 = vld [vmem:[%s1342 + $0x78] sm:$0xff]
        %v1359 = vld [vmem:[%s1342 + $0x80] sm:$0xff]
        %v1360 = vld [vmem:[%s1342 + $0x88] sm:$0xff]
        %v1361 = vld [vmem:[%s1342 + $0x90] sm:$0xff]
        %v1362 = vld [vmem:[%s1342 + $0x98] sm:$0xff]
        %v1363 = vld [vmem:[%s1342 + $0xa0] sm:$0xff]
        %v1364 = vld [vmem:[%s1342 + $0xa8] sm:$0xff]
        %v1365 = vld [vmem:[%s1342 + $0xb0] sm:$0xff]
        %v1366 = vld [vmem:[%s1342 + $0xb8] sm:$0xff]
        %v1367 = vld [vmem:[%s1342 + $0xc0] sm:$0xff]
        %v1368 = vld [vmem:[%s1342 + $0xc8] sm:$0xff]
        %v1369 = vld [vmem:[%s1342 + $0xd0] sm:$0xff]
        %v1370 = vld [vmem:[%s1342 + $0xd8] sm:$0xff]
        %v1371 = vld [vmem:[%s1342 + $0xe0] sm:$0xff]
        %v1372 = vld [vmem:[%s1342 + $0xe8] sm:$0xff]
        %v1373 = vld [vmem:[%s1342 + $0xf0] sm:$0xff]
        %v1374 = vld [vmem:[%s1342 + $0xf8] sm:$0xff]
        %v1375 = vld [vmem:[%s1342 + $0x100] sm:$0xff]
        %v1376 = vld [vmem:[%s1342 + $0x108] sm:$0xff]
        %v1377 = vld [vmem:[%s1342 + $0x110] sm:$0xff]
        %v1378 = vld [vmem:[%s1342 + $0x118] sm:$0xff]
        %v1379 = vld [vmem:[%s1342 + $0x120] sm:$0xff]
        %v1380 = vld [vmem:[%s1342 + $0x128] sm:$0xff]
        %v1381 = vld [vmem:[%s1342 + $0x130] sm:$0xff]
        %v1382 = vld [vmem:[%s1342 + $0x138] sm:$0xff]
        %v1383 = vld [vmem:[%s1342 + $0x140] sm:$0xff]
        %v1384 = vld [vmem:[%s1342 + $0x148] sm:$0xff]
        %v1385 = vld [vmem:[%s1342 + $0x150] sm:$0xff]
        %v1386 = vld [vmem:[%s1342 + $0x158] sm:$0xff]
        %v1387 = vld [vmem:[%s1342 + $0x160] sm:$0xff]
        %v1388 = vld [vmem:[%s1342 + $0x168] sm:$0xff]
        %v1389 = vld [vmem:[%s1342 + $0x170] sm:$0xff]
        %v1390 = vld [vmem:[%s1342 + $0x178] sm:$0xff]
        %v1391 = vld [vmem:[%s1342 + $0x180] sm:$0xff]
        %v1392 = vld [vmem:[%s1342 + $0x188] sm:$0xff]
        %v1393 = vld [vmem:[%s1342 + $0x190] sm:$0xff]
        %v1394 = vld [vmem:[%s1342 + $0x198] sm:$0xff]
        %v1395 = vld [vmem:[%s1342 + $0x1a0] sm:$0xff]
        %v1396 = vld [vmem:[%s1342 + $0x1a8] sm:$0xff]
        %v1397 = vld [vmem:[%s1342 + $0x1b0] sm:$0xff]
        %v1398 = vld [vmem:[%s1342 + $0x1b8] sm:$0xff]
        %v1399 = vld [vmem:[%s1342 + $0x1c0] sm:$0xff]
        %v1400 = vld [vmem:[%s1342 + $0x1c8] sm:$0xff]
        %v1401 = vld [vmem:[%s1342 + $0x1d0] sm:$0xff]
        %v1402 = vld [vmem:[%s1342 + $0x1d8] sm:$0xff]
        %v1403 = vld [vmem:[%s1342 + $0x1e0] sm:$0xff]
        %v1404 = vld [vmem:[%s1342 + $0x1e8] sm:$0xff]
        %v1405 = vld [vmem:[%s1342 + $0x1f0] sm:$0xff]
        %v1406 = vld [vmem:[%s1342 + $0x1f8] sm:$0xff]
        %v1407 = vld [vmem:[%s1342 + $0x200] sm:$0xff]
        %v1408 = vld [vmem:[%s1342 + $0x208] sm:$0xff]
        %v1409 = vld [vmem:[%s1342 + $0x210] sm:$0xff]
        %v1410 = vld [vmem:[%s1342 + $0x218] sm:$0xff]
        %v1411 = vld [vmem:[%s1342 + $0x220] sm:$0xff]
        %v1412 = vld [vmem:[%s1342 + $0x228] sm:$0xff]
        %v1413 = vld [vmem:[%s1342 + $0x230] sm:$0xff]
        %v1414 = vld [vmem:[%s1342 + $0x238] sm:$0xff]
        %v1415 = vld [vmem:[%s1342 + $0x240] sm:$0xff]
        %v1416 = vld [vmem:[%s1342 + $0x248] sm:$0xff]
        %v1417 = vld [vmem:[%s1342 + $0x250] sm:$0xff]
        %v1418 = vld [vmem:[%s1342 + $0x258] sm:$0xff]
        %v1419 = vld [vmem:[%s1342 + $0x260] sm:$0xff]
        %v1420 = vld [vmem:[%s1342 + $0x268] sm:$0xff]
        %v1421 = vrot.slane %v813, 2
        %v1422 = vrot.slane %v815, 2
        %v1423 = vsel %vm674, %v1421, %v1422
        %v1424 = vrot.slane %v814, 2
        %v1425 = vrot.slane %v816, 2
        %v1426 = vsel %vm674, %v1424, %v1425
        %v1427 = vrot.slane %v817, 2
        %v1428 = vsel %vm674, %v1422, %v1427
        %v1429 = vrot.slane %v818, 2
        %v1430 = vsel %vm674, %v1425, %v1429
        %v1431 = vrot.slane %v819, 2
        %v1432 = vsel %vm674, %v1427, %v1431
        %v1433 = vrot.slane %v820, 2
        %v1434 = vsel %vm674, %v1429, %v1433
        %v1438 = vsel %vm1003, %v1426, 0
        %v1440 = vsel %vm1003, %v1430, 0
        %v1442 = vsel %vm1003, %v1434, 0
        %1444 = vmatprep.subr.mxu0 %v1344
        %1445 = vmatpush1.msra.mxu0 %v1343
        %1446 = vmatprep.subr.mxu0 %v1347
        %1447 = vmatpush1.msra.mxu0 %v1346
        %1448 = vmatprep.subr.mxu0 %v1350
        %1449 = vmatpush1.msra.mxu0 %v1349
        %1450 = vmatprep.subr.mxu0 %v1353
        %1451 = vmatpush1.msra.mxu0 %v1352
        %1452 = vmatprep.subr.mxu0 %v1356
        %1453 = vmatpush1.msra.mxu0 %v1355
        %1454 = vmatprep.subr.mxu0 %v1359
        %1455 = vmatpush1.msra.mxu0 %v1358
        %1456 = vmatprep.subr.mxu0 %v1362
        %1457 = vmatpush1.msra.mxu0 %v1361
        %1458 = vmatprep.subr.mxu0 %v1365
        %1459 = vmatpush1.msra.mxu0 %v1364
        %1460 = vmatprep.subr.mxu0 %v1368
        %1461 = vmatpush1.msra.mxu0 %v1367
        %1462 = vmatprep.subr.mxu0 %v1371
        %1463 = vmatpush1.msra.mxu0 %v1370
        %1464 = vmatprep.subr.mxu0 %v1374
        %1465 = vmatpush1.msra.mxu0 %v1373
        %1466 = vmatprep.subr.mxu0 %v1377
        %1467 = vmatpush1.msra.mxu0 %v1376
        %1468 = vmatprep.subr.mxu0 %v1380
        %1469 = vmatpush1.msra.mxu0 %v1379
        %1470 = vmatprep.subr.mxu0 %v1383
        %1471 = vmatpush1.msra.mxu0 %v1382
        %1472 = vmatprep.subr.mxu0 %v1386
        %1473 = vmatpush1.msra.mxu0 %v1385
        %1474 = vmatprep.subr.mxu0 %v1389
        %1475 = vmatpush1.msra.mxu0 %v1388
        %1476 = vmatprep.subr.mxu0 %v1392
        %1477 = vmatpush1.msra.mxu0 %v1391
        %1478 = vmatprep.subr.mxu0 %v1395
        %1479 = vmatpush1.msra.mxu0 %v1394
        %1480 = vmatprep.subr.mxu0 %v1398
        %1481 = vmatpush1.msra.mxu0 %v1397
        %1482 = vmatprep.subr.mxu0 %v1401
        %1483 = vmatpush1.msra.mxu0 %v1400
        %1484 = vmatprep.subr.mxu0 %v1404
        %1485 = vmatpush1.msra.mxu0 %v1403
        %1486 = vmatprep.subr.mxu0 %v1407
        %1487 = vmatpush1.msra.mxu0 %v1406
        %1488 = vmatprep.subr.mxu0 %v1410
        %1489 = vmatpush1.msra.mxu0 %v1409
        %1490 = vmatprep.subr.mxu0 %v1413
        %1491 = vmatpush1.msra.mxu0 %v1412
        %1492 = vmatprep.subr.mxu0 %v1416
        %1493 = vmatpush1.msra.mxu0 %v1415
        %1494 = vmatprep.subr.mxu0 %v1419
        %1495 = vmatpush1.msra.mxu0 %v1418
        %1496 = vmatprep.subr.mxu0 0.0
        %1497 = vmatpush1.msra.mxu0 0.0
        %1498 = vmatprep.subr.mxu0 0.0
        %1499 = vmatpush1.msra.mxu0 0.0
        %1500 = vmatprep.subr.mxu0 0.0
        %1501 = vmatpush1.msra.mxu0 0.0
        %1502 = vmatprep.subr.mxu0 0.0
        %1503 = vmatpush1.msra.mxu0 0.0
        %1504 = vmatprep.subr.mxu0 0.0
        %1505 = vmatpush1.msra.mxu0 0.0
        %1506 = vmatprep.subr.mxu0 0.0
        %1507 = vmatpush1.msra.mxu0 0.0
        %1508 = vmatprep.mubr.f32.mxu0 %v1438
        %1509 = vmatmul.mubr.f32.gmra.mrb[0].mxu0 %v1423
        %v1510 = vpop.f32.mrb[0].mxu0
        %v1511 = vadd.f32 0.0, %v1510
        %v1512 = vpop.f32.mrb[0].mxu0
        %v1513 = vadd.f32 0.0, %v1512
        %1514 = vmatprep.mubr.f32.mxu0 %v1440
        %1515 = vmatmul.mubr.f32.gmra.mrb[0].mxu0 %v1428
        %v1516 = vpop.f32.mrb[0].mxu0
        %v1517 = vadd.f32 0.0, %v1516
        %v1518 = vpop.f32.mrb[0].mxu0
        %v1519 = vadd.f32 0.0, %v1518
        %1520 = vmatprep.mubr.f32.mxu0 %v1442
        %1521 = vmatmul.mubr.f32.gmra.mrb[0].mxu0 %v1432
        %v1522 = vpop.f32.mrb[0].mxu0
        %v1523 = vadd.f32 0.0, %v1522
        %v1524 = vpop.f32.mrb[0].mxu0
        %v1525 = vadd.f32 0.0, %v1524
        %1526 = vdwg.mxu0
        %1527 = vmatprep.subr.mxu0 0.0
        %1528 = vmatpush1.msra.mxu0 %v1345
        %1529 = vmatprep.subr.mxu0 0.0
        %1530 = vmatpush1.msra.mxu0 %v1348
        %1531 = vmatprep.subr.mxu0 0.0
        %1532 = vmatpush1.msra.mxu0 %v1351
        %1533 = vmatprep.subr.mxu0 0.0
        %1534 = vmatpush1.msra.mxu0 %v1354
        %1535 = vmatprep.subr.mxu0 0.0
        %1536 = vmatpush1.msra.mxu0 %v1357
        %1537 = vmatprep.subr.mxu0 0.0
        %1538 = vmatpush1.msra.mxu0 %v1360
        %1539 = vmatprep.subr.mxu0 0.0
        %1540 = vmatpush1.msra.mxu0 %v1363
        %1541 = vmatprep.subr.mxu0 0.0
        %1542 = vmatpush1.msra.mxu0 %v1366
        %1543 = vmatprep.subr.mxu0 0.0
        %1544 = vmatpush1.msra.mxu0 %v1369
        %1545 = vmatprep.subr.mxu0 0.0
        %1546 = vmatpush1.msra.mxu0 %v1372
        %1547 = vmatprep.subr.mxu0 0.0
        %1548 = vmatpush1.msra.mxu0 %v1375
        %1549 = vmatprep.subr.mxu0 0.0
        %1550 = vmatpush1.msra.mxu0 %v1378
        %1551 = vmatprep.subr.mxu0 0.0
        %1552 = vmatpush1.msra.mxu0 %v1381
        %1553 = vmatprep.subr.mxu0 0.0
        %1554 = vmatpush1.msra.mxu0 %v1384
        %1555 = vmatprep.subr.mxu0 0.0
        %1556 = vmatpush1.msra.mxu0 %v1387
        %1557 = vmatprep.subr.mxu0 0.0
        %1558 = vmatpush1.msra.mxu0 %v1390
        %1559 = vmatprep.subr.mxu0 0.0
        %1560 = vmatpush1.msra.mxu0 %v1393
        %1561 = vmatprep.subr.mxu0 0.0
        %1562 = vmatpush1.msra.mxu0 %v1396
        %1563 = vmatprep.subr.mxu0 0.0
        %1564 = vmatpush1.msra.mxu0 %v1399
        %1565 = vmatprep.subr.mxu0 0.0
        %1566 = vmatpush1.msra.mxu0 %v1402
        %1567 = vmatprep.subr.mxu0 0.0
        %1568 = vmatpush1.msra.mxu0 %v1405
        %1569 = vmatprep.subr.mxu0 0.0
        %1570 = vmatpush1.msra.mxu0 %v1408
        %1571 = vmatprep.subr.mxu0 0.0
        %1572 = vmatpush1.msra.mxu0 %v1411
        %1573 = vmatprep.subr.mxu0 0.0
        %1574 = vmatpush1.msra.mxu0 %v1414
        %1575 = vmatprep.subr.mxu0 0.0
        %1576 = vmatpush1.msra.mxu0 %v1417
        %1577 = vmatprep.subr.mxu0 0.0
        %1578 = vmatpush1.msra.mxu0 %v1420
        %1579 = vmatprep.subr.mxu0 0.0
        %1580 = vmatpush1.msra.mxu0 0.0
        %1581 = vmatprep.subr.mxu0 0.0
        %1582 = vmatpush1.msra.mxu0 0.0
        %1583 = vmatprep.subr.mxu0 0.0
        %1584 = vmatpush1.msra.mxu0 0.0
        %1585 = vmatprep.subr.mxu0 0.0
        %1586 = vmatpush1.msra.mxu0 0.0
        %1587 = vmatprep.subr.mxu0 0.0
        %1588 = vmatpush1.msra.mxu0 0.0
        %1589 = vmatprep.subr.mxu0 0.0
        %1590 = vmatpush1.msra.mxu0 0.0
        %1591 = vmatprep.mubr.f32.mxu0 %v1438
        %1592 = vmatmul.mubr.f32.gmra.mrb[0].mxu0 %v1423
        %v1593 = vpop.f32.mrb[0].mxu0
        %v1594 = vadd.f32 0.0, %v1593
        %v1595 = vpop.f32.mrb[0].mxu0
        %1596 = vmatprep.mubr.f32.mxu0 %v1440
        %1597 = vmatmul.mubr.f32.gmra.mrb[0].mxu0 %v1428
        %v1598 = vpop.f32.mrb[0].mxu0
        %v1599 = vadd.f32 0.0, %v1598
        %v1600 = vpop.f32.mrb[0].mxu0
        %1601 = vmatprep.mubr.f32.mxu0 %v1442
        %1602 = vmatmul.mubr.f32.gmra.mrb[0].mxu0 %v1432
        %v1603 = vpop.f32.mrb[0].mxu0
        %v1604 = vadd.f32 0.0, %v1603
        %v1605 = vpop.f32.mrb[0].mxu0
        %1606 = vdwg.mxu0
        %v1607 = vadd.f32 %v1246, %v1511
        %v1608 = vadd.f32 %v1248, %v1513
        %v1609 = vadd.f32 %v1329, %v1594
        %v1610 = vadd.f32 %v1252, %v1517
        %v1611 = vadd.f32 %v1254, %v1519
        %v1612 = vadd.f32 %v1334, %v1599
        %v1613 = vadd.f32 %v1258, %v1523
        %v1614 = vadd.f32 %v1260, %v1525
        %v1615 = vadd.f32 %v1339, %v1604
        %v1616 = vld [vmem:[#allocation8] sm:$0x7]
        %v1618 = vlaneseq
        %v1619 = vshrl.u32 %v1618, 7
        %v1620 = vsub.s32 0, %v1619
        %v1621 = vrot.slane %v1616, %v1620
        %v1622 = vlaneseq
        %v1623 = vshrl.u32 %v1622, 7
        %v1624 = vsub.s32 1, %v1623
        %v1625 = vrot.slane %v1616, %v1624
        %v1626 = vlaneseq
        %v1627 = vshrl.u32 %v1626, 7
        %v1628 = vsub.s32 2, %v1627
        %v1629 = vrot.slane %v1616, %v1628
        %v1633 = vadd.f32 %v1607, %v1621
        %v1634 = vadd.f32 %v1608, %v1625
        %v1635 = vadd.f32 %v1609, %v1629
        %v1636 = vadd.f32 %v1610, %v1621
        %v1637 = vadd.f32 %v1611, %v1625
        %v1638 = vadd.f32 %v1612, %v1629
        %v1639 = vadd.f32 %v1613, %v1621
        %v1640 = vadd.f32 %v1614, %v1625
        %v1641 = vadd.f32 %v1615, %v1629
        %v1642 = vmax.f32 %v1633, 0.0
        %v1643 = vmax.f32 %v1634, 0.0
        %v1644 = vmax.f32 %v1635, 0.0
        %v1645 = vmax.f32 %v1636, 0.0
        %v1646 = vmax.f32 %v1637, 0.0
        %v1647 = vmax.f32 %v1638, 0.0
        %v1648 = vmax.f32 %v1639, 0.0
        %v1649 = vmax.f32 %v1640, 0.0
        %v1650 = vmax.f32 %v1641, 0.0
        %v1651 = vld [vmem:[#allocation11] sm:$0x1]
        %v1655 = vrot.slane %v1642, 1
        %v1656 = vrot.slane %v1643, 1
        %v1657 = vrot.slane %v1644, 1
        %v1661 = vmax.f32 %v1642, %v1655
        %v1662 = vmax.f32 %v1643, %v1656
        %v1663 = vmax.f32 %v1644, %v1657
        %1667 = vrot.lane.b32.xlu0 %v1661, 112
        %v1668 = vpop.permute.xlu0 %1667
        %1669 = vrot.lane.b32.xlu0 %v1662, 112
        %v1670 = vpop.permute.xlu0 %1669
        %1671 = vrot.lane.b32.xlu0 %v1663, 112
        %v1672 = vpop.permute.xlu0 %1671
        %vm1673 = vcmask 916480
        %v1674 = vsel %vm1673, %v1668, %v1670
        %v1675 = vsel %vm1673, %v1670, %v1672
        %v1679 = vmax.f32 %v1661, %v1674
        %v1680 = vmax.f32 %v1662, %v1675
        %v1681 = vmax.f32 %v1663, %v1672
        %v1682 = vld [vmem:[#allocation10] sm:$0xff]
        %v1683 = vld [vmem:[#allocation10 + $0x8] sm:$0xff]
        %v1684 = vld [vmem:[#allocation10 + $0x10] sm:$0xff]
        %v1685 = vld [vmem:[#allocation10 + $0x18] sm:$0xff]
        %v1686 = vld [vmem:[#allocation10 + $0x20] sm:$0xff]
        %v1687 = vld [vmem:[#allocation10 + $0x28] sm:$0xff]
        %v1688 = vld [vmem:[#allocation10 + $0x30] sm:$0xff]
        %v1689 = vld [vmem:[#allocation10 + $0x38] sm:$0xff]
        %v1690 = vld [vmem:[#allocation10 + $0x40] sm:$0xff]
        %v1691 = vld [vmem:[#allocation10 + $0x48] sm:$0xff]
        %v1692 = vld [vmem:[#allocation10 + $0x50] sm:$0xff]
        %v1693 = vld [vmem:[#allocation10 + $0x58] sm:$0xff]
        %v1694 = vld [vmem:[#allocation10 + $0x60] sm:$0xff]
        %v1695 = vld [vmem:[#allocation10 + $0x68] sm:$0xff]
        %v1696 = vld [vmem:[#allocation10 + $0x70] sm:$0xff]
        %v1697 = vld [vmem:[#allocation10 + $0x78] sm:$0xff]
        %v1698 = vld [vmem:[#allocation10 + $0x80] sm:$0xff]
        %v1699 = vld [vmem:[#allocation10 + $0x88] sm:$0xff]
        %v1700 = vld [vmem:[#allocation10 + $0x90] sm:$0xff]
        %v1701 = vld [vmem:[#allocation10 + $0x98] sm:$0xff]
        %v1702 = vld [vmem:[#allocation10 + $0xa0] sm:$0xff]
        %v1703 = vld [vmem:[#allocation10 + $0xa8] sm:$0xff]
        %v1704 = vld [vmem:[#allocation10 + $0xb0] sm:$0xff]
        %v1705 = vld [vmem:[#allocation10 + $0xb8] sm:$0xff]
        %v1706 = vld [vmem:[#allocation10 + $0xc0] sm:$0xff]
        %v1707 = vld [vmem:[#allocation10 + $0xc8] sm:$0xff]
        %v1708 = vld [vmem:[#allocation10 + $0xd0] sm:$0xff]
        %v1709 = vld [vmem:[#allocation10 + $0xd8] sm:$0xff]
        %v1710 = vld [vmem:[#allocation10 + $0xe0] sm:$0xff]
        %v1711 = vld [vmem:[#allocation10 + $0xe8] sm:$0xff]
        %v1712 = vld [vmem:[#allocation10 + $0xf0] sm:$0xff]
        %v1713 = vld [vmem:[#allocation10 + $0xf8] sm:$0xff]
        %v1714 = vld [vmem:[#allocation10 + $0x100] sm:$0xff]
        %v1715 = vld [vmem:[#allocation10 + $0x108] sm:$0xff]
        %v1716 = vld [vmem:[#allocation10 + $0x110] sm:$0xff]
        %v1717 = vld [vmem:[#allocation10 + $0x118] sm:$0xff]
        %v1718 = vld [vmem:[#allocation10 + $0x120] sm:$0xff]
        %v1719 = vld [vmem:[#allocation10 + $0x128] sm:$0xff]
        %v1720 = vld [vmem:[#allocation10 + $0x130] sm:$0xff]
        %v1721 = vld [vmem:[#allocation10 + $0x138] sm:$0xff]
        %v1722 = vld [vmem:[#allocation10 + $0x140] sm:$0xff]
        %v1723 = vld [vmem:[#allocation10 + $0x148] sm:$0xff]
        %v1724 = vld [vmem:[#allocation10 + $0x150] sm:$0xff]
        %v1725 = vld [vmem:[#allocation10 + $0x158] sm:$0xff]
        %v1726 = vld [vmem:[#allocation10 + $0x160] sm:$0xff]
        %v1727 = vld [vmem:[#allocation10 + $0x168] sm:$0xff]
        %v1729 = vsel %vm1673, %v1681, 0
        %1731 = vmatprep.subr.mxu0 0.0
        %1732 = vmatpush1.msra.mxu0 %v1682
        %1733 = vmatprep.subr.mxu0 0.0
        %1734 = vmatpush1.msra.mxu0 %v1683
        %1735 = vmatprep.subr.mxu0 0.0
        %1736 = vmatpush1.msra.mxu0 %v1684
        %1737 = vmatprep.subr.mxu0 0.0
        %1738 = vmatpush1.msra.mxu0 %v1685
        %1739 = vmatprep.subr.mxu0 0.0
        %1740 = vmatpush1.msra.mxu0 %v1686
        %1741 = vmatprep.subr.mxu0 0.0
        %1742 = vmatpush1.msra.mxu0 %v1687
        %1743 = vmatprep.subr.mxu0 0.0
        %1744 = vmatpush1.msra.mxu0 %v1688
        %1745 = vmatprep.subr.mxu0 0.0
        %1746 = vmatpush1.msra.mxu0 %v1689
        %1747 = vmatprep.subr.mxu0 0.0
        %1748 = vmatpush1.msra.mxu0 %v1690
        %1749 = vmatprep.subr.mxu0 0.0
        %1750 = vmatpush1.msra.mxu0 %v1691
        %1751 = vmatprep.subr.mxu0 0.0
        %1752 = vmatpush1.msra.mxu0 %v1692
        %1753 = vmatprep.subr.mxu0 0.0
        %1754 = vmatpush1.msra.mxu0 %v1693
        %1755 = vmatprep.subr.mxu0 0.0
        %1756 = vmatpush1.msra.mxu0 %v1694
        %1757 = vmatprep.subr.mxu0 0.0
        %1758 = vmatpush1.msra.mxu0 %v1695
        %1759 = vmatprep.subr.mxu0 0.0
        %1760 = vmatpush1.msra.mxu0 %v1696
        %1761 = vmatprep.subr.mxu0 0.0
        %1762 = vmatpush1.msra.mxu0 %v1697
        %1763 = vmatprep.subr.mxu0 0.0
        %1764 = vmatpush1.msra.mxu0 %v1698
        %1765 = vmatprep.subr.mxu0 0.0
        %1766 = vmatpush1.msra.mxu0 %v1699
        %1767 = vmatprep.subr.mxu0 0.0
        %1768 = vmatpush1.msra.mxu0 %v1700
        %1769 = vmatprep.subr.mxu0 0.0
        %1770 = vmatpush1.msra.mxu0 %v1701
        %1771 = vmatprep.subr.mxu0 0.0
        %1772 = vmatpush1.msra.mxu0 %v1702
        %1773 = vmatprep.subr.mxu0 0.0
        %1774 = vmatpush1.msra.mxu0 %v1703
        %1775 = vmatprep.subr.mxu0 0.0
        %1776 = vmatpush1.msra.mxu0 %v1704
        %1777 = vmatprep.subr.mxu0 0.0
        %1778 = vmatpush1.msra.mxu0 %v1705
        %1779 = vmatprep.subr.mxu0 0.0
        %1780 = vmatpush1.msra.mxu0 %v1706
        %1781 = vmatprep.subr.mxu0 0.0
        %1782 = vmatpush1.msra.mxu0 %v1707
        %1783 = vmatprep.subr.mxu0 0.0
        %1784 = vmatpush1.msra.mxu0 %v1708
        %1785 = vmatprep.subr.mxu0 0.0
        %1786 = vmatpush1.msra.mxu0 %v1709
        %1787 = vmatprep.subr.mxu0 0.0
        %1788 = vmatpush1.msra.mxu0 %v1710
        %1789 = vmatprep.subr.mxu0 0.0
        %1790 = vmatpush1.msra.mxu0 %v1711
        %1791 = vmatprep.subr.mxu0 0.0
        %1792 = vmatpush1.msra.mxu0 %v1712
        %1793 = vmatprep.subr.mxu0 0.0
        %1794 = vmatpush1.msra.mxu0 %v1713
        %1795 = vmatprep.mubr.f32.mxu0 %v1680
        %1796 = vmatmul.mubr.f32.gmra.mrb[0].mxu0 %v1679
        %v1797 = vpop.f32.mrb[0].mxu0
        %v1798 = vadd.f32 0.0, %v1797
        %v1799 = vpop.f32.mrb[0].mxu0
        %1800 = vdwg.mxu0
        %1801 = vmatprep.subr.mxu0 0.0
        %1802 = vmatpush1.msra.mxu0 %v1714
        %1803 = vmatprep.subr.mxu0 0.0
        %1804 = vmatpush1.msra.mxu0 %v1715
        %1805 = vmatprep.subr.mxu0 0.0
        %1806 = vmatpush1.msra.mxu0 %v1716
        %1807 = vmatprep.subr.mxu0 0.0
        %1808 = vmatpush1.msra.mxu0 %v1717
        %1809 = vmatprep.subr.mxu0 0.0
        %1810 = vmatpush1.msra.mxu0 %v1718
        %1811 = vmatprep.subr.mxu0 0.0
        %1812 = vmatpush1.msra.mxu0 %v1719
        %1813 = vmatprep.subr.mxu0 0.0
        %1814 = vmatpush1.msra.mxu0 %v1720
        %1815 = vmatprep.subr.mxu0 0.0
        %1816 = vmatpush1.msra.mxu0 %v1721
        %1817 = vmatprep.subr.mxu0 0.0
        %1818 = vmatpush1.msra.mxu0 %v1722
        %1819 = vmatprep.subr.mxu0 0.0
        %1820 = vmatpush1.msra.mxu0 %v1723
        %1821 = vmatprep.subr.mxu0 0.0
        %1822 = vmatpush1.msra.mxu0 %v1724
        %1823 = vmatprep.subr.mxu0 0.0
        %1824 = vmatpush1.msra.mxu0 %v1725
        %1825 = vmatprep.subr.mxu0 0.0
        %1826 = vmatpush1.msra.mxu0 %v1726
        %1827 = vmatprep.subr.mxu0 0.0
        %1828 = vmatpush1.msra.mxu0 %v1727
        %1829 = vmatprep.subr.mxu0 0.0
        %1830 = vmatpush1.msra.mxu0 0.0
        %1831 = vmatprep.subr.mxu0 0.0
        %1832 = vmatpush1.msra.mxu0 0.0
        %1833 = vmatprep.subr.mxu0 0.0
        %1834 = vmatpush1.msra.mxu0 0.0
        %1835 = vmatprep.subr.mxu0 0.0
        %1836 = vmatpush1.msra.mxu0 0.0
        %1837 = vmatprep.subr.mxu0 0.0
        %1838 = vmatpush1.msra.mxu0 0.0
        %1839 = vmatprep.subr.mxu0 0.0
        %1840 = vmatpush1.msra.mxu0 0.0
        %1841 = vmatprep.subr.mxu0 0.0
        %1842 = vmatpush1.msra.mxu0 0.0
        %1843 = vmatprep.subr.mxu0 0.0
        %1844 = vmatpush1.msra.mxu0 0.0
        %1845 = vmatprep.subr.mxu0 0.0
        %1846 = vmatpush1.msra.mxu0 0.0
        %1847 = vmatprep.subr.mxu0 0.0
        %1848 = vmatpush1.msra.mxu0 0.0
        %1849 = vmatprep.subr.mxu0 0.0
        %1850 = vmatpush1.msra.mxu0 0.0
        %1851 = vmatprep.subr.mxu0 0.0
        %1852 = vmatpush1.msra.mxu0 0.0
        %1853 = vmatprep.subr.mxu0 0.0
        %1854 = vmatpush1.msra.mxu0 0.0
        %1855 = vmatprep.subr.mxu0 0.0
        %1856 = vmatpush1.msra.mxu0 0.0
        %1857 = vmatprep.subr.mxu0 0.0
        %1858 = vmatpush1.msra.mxu0 0.0
        %1859 = vmatprep.subr.mxu0 0.0
        %1860 = vmatpush1.msra.mxu0 0.0
        %1861 = vmatprep.subr.mxu0 0.0
        %1862 = vmatpush1.msra.mxu0 0.0
        %1863 = vmatprep.subr.mxu0 0.0
        %1864 = vmatpush1.msra.mxu0 0.0
        %1865 = vmatprep.mubr.f32.mxu0 0.0
        %1866 = vmatmul.mubr.f32.gmra.mrb[0].mxu0 %v1729
        %v1867 = vpop.f32.mrb[0].mxu0
        %v1868 = vadd.f32 %v1798, %v1867
        %v1869 = vpop.f32.mrb[0].mxu0
        %1870 = vdwg.mxu0
        %v1871 = vadd.f32 %v1651, %v1868
        %s1872 = scalar_lea.vmem [#allocation10], 368
        %v1873 = vld [vmem:[%s1872] sm:$0xff]
        %v1874 = vld [vmem:[%s1872 + $0x8] sm:$0xff]
        %v1875 = vld [vmem:[%s1872 + $0x10] sm:$0xff]
        %v1876 = vld [vmem:[%s1872 + $0x18] sm:$0xff]
        %v1877 = vld [vmem:[%s1872 + $0x20] sm:$0xff]
        %v1878 = vld [vmem:[%s1872 + $0x28] sm:$0xff]
        %v1879 = vld [vmem:[%s1872 + $0x30] sm:$0xff]
        %v1880 = vld [vmem:[%s1872 + $0x38] sm:$0xff]
        %v1881 = vld [vmem:[%s1872 + $0x40] sm:$0xff]
        %v1882 = vld [vmem:[%s1872 + $0x48] sm:$0xff]
        %v1883 = vld [vmem:[%s1872 + $0x50] sm:$0xff]
        %v1884 = vld [vmem:[%s1872 + $0x58] sm:$0xff]
        %v1885 = vld [vmem:[%s1872 + $0x60] sm:$0xff]
        %v1886 = vld [vmem:[%s1872 + $0x68] sm:$0xff]
        %v1887 = vld [vmem:[%s1872 + $0x70] sm:$0xff]
        %v1888 = vld [vmem:[%s1872 + $0x78] sm:$0xff]
        %v1889 = vld [vmem:[%s1872 + $0x80] sm:$0xff]
        %v1890 = vld [vmem:[%s1872 + $0x88] sm:$0xff]
        %v1891 = vld [vmem:[%s1872 + $0x90] sm:$0xff]
        %v1892 = vld [vmem:[%s1872 + $0x98] sm:$0xff]
        %v1893 = vld [vmem:[%s1872 + $0xa0] sm:$0xff]
        %v1894 = vld [vmem:[%s1872 + $0xa8] sm:$0xff]
        %v1895 = vld [vmem:[%s1872 + $0xb0] sm:$0xff]
        %v1896 = vld [vmem:[%s1872 + $0xb8] sm:$0xff]
        %v1897 = vld [vmem:[%s1872 + $0xc0] sm:$0xff]
        %v1898 = vld [vmem:[%s1872 + $0xc8] sm:$0xff]
        %v1899 = vld [vmem:[%s1872 + $0xd0] sm:$0xff]
        %v1900 = vld [vmem:[%s1872 + $0xd8] sm:$0xff]
        %v1901 = vld [vmem:[%s1872 + $0xe0] sm:$0xff]
        %v1902 = vld [vmem:[%s1872 + $0xe8] sm:$0xff]
        %v1903 = vld [vmem:[%s1872 + $0xf0] sm:$0xff]
        %v1904 = vld [vmem:[%s1872 + $0xf8] sm:$0xff]
        %v1905 = vld [vmem:[%s1872 + $0x100] sm:$0xff]
        %v1906 = vld [vmem:[%s1872 + $0x108] sm:$0xff]
        %v1907 = vld [vmem:[%s1872 + $0x110] sm:$0xff]
        %v1908 = vld [vmem:[%s1872 + $0x118] sm:$0xff]
        %v1909 = vld [vmem:[%s1872 + $0x120] sm:$0xff]
        %v1910 = vld [vmem:[%s1872 + $0x128] sm:$0xff]
        %v1911 = vld [vmem:[%s1872 + $0x130] sm:$0xff]
        %v1912 = vld [vmem:[%s1872 + $0x138] sm:$0xff]
        %v1913 = vld [vmem:[%s1872 + $0x140] sm:$0xff]
        %v1914 = vld [vmem:[%s1872 + $0x148] sm:$0xff]
        %v1915 = vld [vmem:[%s1872 + $0x150] sm:$0xff]
        %v1916 = vld [vmem:[%s1872 + $0x158] sm:$0xff]
        %v1917 = vld [vmem:[%s1872 + $0x160] sm:$0xff]
        %v1918 = vld [vmem:[%s1872 + $0x168] sm:$0xff]
        %v1921 = vrot.slane %v1679, 2
        %v1922 = vrot.slane %v1680, 2
        %v1923 = vrot.slane %v1681, 2
        %v1926 = vsel %vm1673, %v1923, 0
        %1928 = vmatprep.subr.mxu0 0.0
        %1929 = vmatpush1.msra.mxu0 %v1873
        %1930 = vmatprep.subr.mxu0 0.0
        %1931 = vmatpush1.msra.mxu0 %v1874
        %1932 = vmatprep.subr.mxu0 0.0
        %1933 = vmatpush1.msra.mxu0 %v1875
        %1934 = vmatprep.subr.mxu0 0.0
        %1935 = vmatpush1.msra.mxu0 %v1876
        %1936 = vmatprep.subr.mxu0 0.0
        %1937 = vmatpush1.msra.mxu0 %v1877
        %1938 = vmatprep.subr.mxu0 0.0
        %1939 = vmatpush1.msra.mxu0 %v1878
        %1940 = vmatprep.subr.mxu0 0.0
        %1941 = vmatpush1.msra.mxu0 %v1879
        %1942 = vmatprep.subr.mxu0 0.0
        %1943 = vmatpush1.msra.mxu0 %v1880
        %1944 = vmatprep.subr.mxu0 0.0
        %1945 = vmatpush1.msra.mxu0 %v1881
        %1946 = vmatprep.subr.mxu0 0.0
        %1947 = vmatpush1.msra.mxu0 %v1882
        %1948 = vmatprep.subr.mxu0 0.0
        %1949 = vmatpush1.msra.mxu0 %v1883
        %1950 = vmatprep.subr.mxu0 0.0
        %1951 = vmatpush1.msra.mxu0 %v1884
        %1952 = vmatprep.subr.mxu0 0.0
        %1953 = vmatpush1.msra.mxu0 %v1885
        %1954 = vmatprep.subr.mxu0 0.0
        %1955 = vmatpush1.msra.mxu0 %v1886
        %1956 = vmatprep.subr.mxu0 0.0
        %1957 = vmatpush1.msra.mxu0 %v1887
        %1958 = vmatprep.subr.mxu0 0.0
        %1959 = vmatpush1.msra.mxu0 %v1888
        %1960 = vmatprep.subr.mxu0 0.0
        %1961 = vmatpush1.msra.mxu0 %v1889
        %1962 = vmatprep.subr.mxu0 0.0
        %1963 = vmatpush1.msra.mxu0 %v1890
        %1964 = vmatprep.subr.mxu0 0.0
        %1965 = vmatpush1.msra.mxu0 %v1891
        %1966 = vmatprep.subr.mxu0 0.0
        %1967 = vmatpush1.msra.mxu0 %v1892
        %1968 = vmatprep.subr.mxu0 0.0
        %1969 = vmatpush1.msra.mxu0 %v1893
        %1970 = vmatprep.subr.mxu0 0.0
        %1971 = vmatpush1.msra.mxu0 %v1894
        %1972 = vmatprep.subr.mxu0 0.0
        %1973 = vmatpush1.msra.mxu0 %v1895
        %1974 = vmatprep.subr.mxu0 0.0
        %1975 = vmatpush1.msra.mxu0 %v1896
        %1976 = vmatprep.subr.mxu0 0.0
        %1977 = vmatpush1.msra.mxu0 %v1897
        %1978 = vmatprep.subr.mxu0 0.0
        %1979 = vmatpush1.msra.mxu0 %v1898
        %1980 = vmatprep.subr.mxu0 0.0
        %1981 = vmatpush1.msra.mxu0 %v1899
        %1982 = vmatprep.subr.mxu0 0.0
        %1983 = vmatpush1.msra.mxu0 %v1900
        %1984 = vmatprep.subr.mxu0 0.0
        %1985 = vmatpush1.msra.mxu0 %v1901
        %1986 = vmatprep.subr.mxu0 0.0
        %1987 = vmatpush1.msra.mxu0 %v1902
        %1988 = vmatprep.subr.mxu0 0.0
        %1989 = vmatpush1.msra.mxu0 %v1903
        %1990 = vmatprep.subr.mxu0 0.0
        %1991 = vmatpush1.msra.mxu0 %v1904
        %1992 = vmatprep.mubr.f32.mxu0 %v1922
        %1993 = vmatmul.mubr.f32.gmra.mrb[0].mxu0 %v1921
        %v1994 = vpop.f32.mrb[0].mxu0
        %v1995 = vadd.f32 0.0, %v1994
        %v1996 = vpop.f32.mrb[0].mxu0
        %1997 = vdwg.mxu0
        %1998 = vmatprep.subr.mxu0 0.0
        %1999 = vmatpush1.msra.mxu0 %v1905
        %2000 = vmatprep.subr.mxu0 0.0
        %2001 = vmatpush1.msra.mxu0 %v1906
        %2002 = vmatprep.subr.mxu0 0.0
        %2003 = vmatpush1.msra.mxu0 %v1907
        %2004 = vmatprep.subr.mxu0 0.0
        %2005 = vmatpush1.msra.mxu0 %v1908
        %2006 = vmatprep.subr.mxu0 0.0
        %2007 = vmatpush1.msra.mxu0 %v1909
        %2008 = vmatprep.subr.mxu0 0.0
        %2009 = vmatpush1.msra.mxu0 %v1910
        %2010 = vmatprep.subr.mxu0 0.0
        %2011 = vmatpush1.msra.mxu0 %v1911
        %2012 = vmatprep.subr.mxu0 0.0
        %2013 = vmatpush1.msra.mxu0 %v1912
        %2014 = vmatprep.subr.mxu0 0.0
        %2015 = vmatpush1.msra.mxu0 %v1913
        %2016 = vmatprep.subr.mxu0 0.0
        %2017 = vmatpush1.msra.mxu0 %v1914
        %2018 = vmatprep.subr.mxu0 0.0
        %2019 = vmatpush1.msra.mxu0 %v1915
        %2020 = vmatprep.subr.mxu0 0.0
        %2021 = vmatpush1.msra.mxu0 %v1916
        %2022 = vmatprep.subr.mxu0 0.0
        %2023 = vmatpush1.msra.mxu0 %v1917
        %2024 = vmatprep.subr.mxu0 0.0
        %2025 = vmatpush1.msra.mxu0 %v1918
        %2026 = vmatprep.subr.mxu0 0.0
        %2027 = vmatpush1.msra.mxu0 0.0
        %2028 = vmatprep.subr.mxu0 0.0
        %2029 = vmatpush1.msra.mxu0 0.0
        %2030 = vmatprep.subr.mxu0 0.0
        %2031 = vmatpush1.msra.mxu0 0.0
        %2032 = vmatprep.subr.mxu0 0.0
        %2033 = vmatpush1.msra.mxu0 0.0
        %2034 = vmatprep.subr.mxu0 0.0
        %2035 = vmatpush1.msra.mxu0 0.0
        %2036 = vmatprep.subr.mxu0 0.0
        %2037 = vmatpush1.msra.mxu0 0.0
        %2038 = vmatprep.subr.mxu0 0.0
        %2039 = vmatpush1.msra.mxu0 0.0
        %2040 = vmatprep.subr.mxu0 0.0
        %2041 = vmatpush1.msra.mxu0 0.0
        %2042 = vmatprep.subr.mxu0 0.0
        %2043 = vmatpush1.msra.mxu0 0.0
        %2044 = vmatprep.subr.mxu0 0.0
        %2045 = vmatpush1.msra.mxu0 0.0
        %2046 = vmatprep.subr.mxu0 0.0
        %2047 = vmatpush1.msra.mxu0 0.0
        %2048 = vmatprep.subr.mxu0 0.0
        %2049 = vmatpush1.msra.mxu0 0.0
        %2050 = vmatprep.subr.mxu0 0.0
        %2051 = vmatpush1.msra.mxu0 0.0
        %2052 = vmatprep.subr.mxu0 0.0
        %2053 = vmatpush1.msra.mxu0 0.0
        %2054 = vmatprep.subr.mxu0 0.0
        %2055 = vmatpush1.msra.mxu0 0.0
        %2056 = vmatprep.subr.mxu0 0.0
        %2057 = vmatpush1.msra.mxu0 0.0
        %2058 = vmatprep.subr.mxu0 0.0
        %2059 = vmatpush1.msra.mxu0 0.0
        %2060 = vmatprep.subr.mxu0 0.0
        %2061 = vmatpush1.msra.mxu0 0.0
        %2062 = vmatprep.mubr.f32.mxu0 0.0
        %2063 = vmatmul.mubr.f32.gmra.mrb[0].mxu0 %v1926
        %v2064 = vpop.f32.mrb[0].mxu0
        %v2065 = vadd.f32 %v1995, %v2064
        %v2066 = vpop.f32.mrb[0].mxu0
        %2067 = vdwg.mxu0
        %v2068 = vadd.f32 %v1871, %v2065
        %s2069 = scalar_lea.vmem [#allocation10], 736
        %v2070 = vld [vmem:[%s2069] sm:$0xff]
        %v2071 = vld [vmem:[%s2069 + $0x8] sm:$0xff]
        %v2072 = vld [vmem:[%s2069 + $0x10] sm:$0xff]
        %v2073 = vld [vmem:[%s2069 + $0x18] sm:$0xff]
        %v2074 = vld [vmem:[%s2069 + $0x20] sm:$0xff]
        %v2075 = vld [vmem:[%s2069 + $0x28] sm:$0xff]
        %v2076 = vld [vmem:[%s2069 + $0x30] sm:$0xff]
        %v2077 = vld [vmem:[%s2069 + $0x38] sm:$0xff]
        %v2078 = vld [vmem:[%s2069 + $0x40] sm:$0xff]
        %v2079 = vld [vmem:[%s2069 + $0x48] sm:$0xff]
        %v2080 = vld [vmem:[%s2069 + $0x50] sm:$0xff]
        %v2081 = vld [vmem:[%s2069 + $0x58] sm:$0xff]
        %v2082 = vld [vmem:[%s2069 + $0x60] sm:$0xff]
        %v2083 = vld [vmem:[%s2069 + $0x68] sm:$0xff]
        %v2084 = vld [vmem:[%s2069 + $0x70] sm:$0xff]
        %v2085 = vld [vmem:[%s2069 + $0x78] sm:$0xff]
        %v2086 = vld [vmem:[%s2069 + $0x80] sm:$0xff]
        %v2087 = vld [vmem:[%s2069 + $0x88] sm:$0xff]
        %v2088 = vld [vmem:[%s2069 + $0x90] sm:$0xff]
        %v2089 = vld [vmem:[%s2069 + $0x98] sm:$0xff]
        %v2090 = vld [vmem:[%s2069 + $0xa0] sm:$0xff]
        %v2091 = vld [vmem:[%s2069 + $0xa8] sm:$0xff]
        %v2092 = vld [vmem:[%s2069 + $0xb0] sm:$0xff]
        %v2093 = vld [vmem:[%s2069 + $0xb8] sm:$0xff]
        %v2094 = vld [vmem:[%s2069 + $0xc0] sm:$0xff]
        %v2095 = vld [vmem:[%s2069 + $0xc8] sm:$0xff]
        %v2096 = vld [vmem:[%s2069 + $0xd0] sm:$0xff]
        %v2097 = vld [vmem:[%s2069 + $0xd8] sm:$0xff]
        %v2098 = vld [vmem:[%s2069 + $0xe0] sm:$0xff]
        %v2099 = vld [vmem:[%s2069 + $0xe8] sm:$0xff]
        %v2100 = vld [vmem:[%s2069 + $0xf0] sm:$0xff]
        %v2101 = vld [vmem:[%s2069 + $0xf8] sm:$0xff]
        %v2102 = vld [vmem:[%s2069 + $0x100] sm:$0xff]
        %v2103 = vld [vmem:[%s2069 + $0x108] sm:$0xff]
        %v2104 = vld [vmem:[%s2069 + $0x110] sm:$0xff]
        %v2105 = vld [vmem:[%s2069 + $0x118] sm:$0xff]
        %v2106 = vld [vmem:[%s2069 + $0x120] sm:$0xff]
        %v2107 = vld [vmem:[%s2069 + $0x128] sm:$0xff]
        %v2108 = vld [vmem:[%s2069 + $0x130] sm:$0xff]
        %v2109 = vld [vmem:[%s2069 + $0x138] sm:$0xff]
        %v2110 = vld [vmem:[%s2069 + $0x140] sm:$0xff]
        %v2111 = vld [vmem:[%s2069 + $0x148] sm:$0xff]
        %v2112 = vld [vmem:[%s2069 + $0x150] sm:$0xff]
        %v2113 = vld [vmem:[%s2069 + $0x158] sm:$0xff]
        %v2114 = vld [vmem:[%s2069 + $0x160] sm:$0xff]
        %v2115 = vld [vmem:[%s2069 + $0x168] sm:$0xff]
        %v2116 = vrot.slane %v1679, 4
        %v2117 = vrot.slane %v1680, 4
        %v2118 = vrot.slane %v1681, 4
        %v2121 = vsel %vm1673, %v2118, 0
        %2123 = vmatprep.subr.mxu0 0.0
        %2124 = vmatpush1.msra.mxu0 %v2070
        %2125 = vmatprep.subr.mxu0 0.0
        %2126 = vmatpush1.msra.mxu0 %v2071
        %2127 = vmatprep.subr.mxu0 0.0
        %2128 = vmatpush1.msra.mxu0 %v2072
        %2129 = vmatprep.subr.mxu0 0.0
        %2130 = vmatpush1.msra.mxu0 %v2073
        %2131 = vmatprep.subr.mxu0 0.0
        %2132 = vmatpush1.msra.mxu0 %v2074
        %2133 = vmatprep.subr.mxu0 0.0
        %2134 = vmatpush1.msra.mxu0 %v2075
        %2135 = vmatprep.subr.mxu0 0.0
        %2136 = vmatpush1.msra.mxu0 %v2076
        %2137 = vmatprep.subr.mxu0 0.0
        %2138 = vmatpush1.msra.mxu0 %v2077
        %2139 = vmatprep.subr.mxu0 0.0
        %2140 = vmatpush1.msra.mxu0 %v2078
        %2141 = vmatprep.subr.mxu0 0.0
        %2142 = vmatpush1.msra.mxu0 %v2079
        %2143 = vmatprep.subr.mxu0 0.0
        %2144 = vmatpush1.msra.mxu0 %v2080
        %2145 = vmatprep.subr.mxu0 0.0
        %2146 = vmatpush1.msra.mxu0 %v2081
        %2147 = vmatprep.subr.mxu0 0.0
        %2148 = vmatpush1.msra.mxu0 %v2082
        %2149 = vmatprep.subr.mxu0 0.0
        %2150 = vmatpush1.msra.mxu0 %v2083
        %2151 = vmatprep.subr.mxu0 0.0
        %2152 = vmatpush1.msra.mxu0 %v2084
        %2153 = vmatprep.subr.mxu0 0.0
        %2154 = vmatpush1.msra.mxu0 %v2085
        %2155 = vmatprep.subr.mxu0 0.0
        %2156 = vmatpush1.msra.mxu0 %v2086
        %2157 = vmatprep.subr.mxu0 0.0
        %2158 = vmatpush1.msra.mxu0 %v2087
        %2159 = vmatprep.subr.mxu0 0.0
        %2160 = vmatpush1.msra.mxu0 %v2088
        %2161 = vmatprep.subr.mxu0 0.0
        %2162 = vmatpush1.msra.mxu0 %v2089
        %2163 = vmatprep.subr.mxu0 0.0
        %2164 = vmatpush1.msra.mxu0 %v2090
        %2165 = vmatprep.subr.mxu0 0.0
        %2166 = vmatpush1.msra.mxu0 %v2091
        %2167 = vmatprep.subr.mxu0 0.0
        %2168 = vmatpush1.msra.mxu0 %v2092
        %2169 = vmatprep.subr.mxu0 0.0
        %2170 = vmatpush1.msra.mxu0 %v2093
        %2171 = vmatprep.subr.mxu0 0.0
        %2172 = vmatpush1.msra.mxu0 %v2094
        %2173 = vmatprep.subr.mxu0 0.0
        %2174 = vmatpush1.msra.mxu0 %v2095
        %2175 = vmatprep.subr.mxu0 0.0
        %2176 = vmatpush1.msra.mxu0 %v2096
        %2177 = vmatprep.subr.mxu0 0.0
        %2178 = vmatpush1.msra.mxu0 %v2097
        %2179 = vmatprep.subr.mxu0 0.0
        %2180 = vmatpush1.msra.mxu0 %v2098
        %2181 = vmatprep.subr.mxu0 0.0
        %2182 = vmatpush1.msra.mxu0 %v2099
        %2183 = vmatprep.subr.mxu0 0.0
        %2184 = vmatpush1.msra.mxu0 %v2100
        %2185 = vmatprep.subr.mxu0 0.0
        %2186 = vmatpush1.msra.mxu0 %v2101
        %2187 = vmatprep.mubr.f32.mxu0 %v2117
        %2188 = vmatmul.mubr.f32.gmra.mrb[0].mxu0 %v2116
        %v2189 = vpop.f32.mrb[0].mxu0
        %v2190 = vadd.f32 0.0, %v2189
        %v2191 = vpop.f32.mrb[0].mxu0
        %2192 = vdwg.mxu0
        %2193 = vmatprep.subr.mxu0 0.0
        %2194 = vmatpush1.msra.mxu0 %v2102
        %2195 = vmatprep.subr.mxu0 0.0
        %2196 = vmatpush1.msra.mxu0 %v2103
        %2197 = vmatprep.subr.mxu0 0.0
        %2198 = vmatpush1.msra.mxu0 %v2104
        %2199 = vmatprep.subr.mxu0 0.0
        %2200 = vmatpush1.msra.mxu0 %v2105
        %2201 = vmatprep.subr.mxu0 0.0
        %2202 = vmatpush1.msra.mxu0 %v2106
        %2203 = vmatprep.subr.mxu0 0.0
        %2204 = vmatpush1.msra.mxu0 %v2107
        %2205 = vmatprep.subr.mxu0 0.0
        %2206 = vmatpush1.msra.mxu0 %v2108
        %2207 = vmatprep.subr.mxu0 0.0
        %2208 = vmatpush1.msra.mxu0 %v2109
        %2209 = vmatprep.subr.mxu0 0.0
        %2210 = vmatpush1.msra.mxu0 %v2110
        %2211 = vmatprep.subr.mxu0 0.0
        %2212 = vmatpush1.msra.mxu0 %v2111
        %2213 = vmatprep.subr.mxu0 0.0
        %2214 = vmatpush1.msra.mxu0 %v2112
        %2215 = vmatprep.subr.mxu0 0.0
        %2216 = vmatpush1.msra.mxu0 %v2113
        %2217 = vmatprep.subr.mxu0 0.0
        %2218 = vmatpush1.msra.mxu0 %v2114
        %2219 = vmatprep.subr.mxu0 0.0
        %2220 = vmatpush1.msra.mxu0 %v2115
        %2221 = vmatprep.subr.mxu0 0.0
        %2222 = vmatpush1.msra.mxu0 0.0
        %2223 = vmatprep.subr.mxu0 0.0
        %2224 = vmatpush1.msra.mxu0 0.0
        %2225 = vmatprep.subr.mxu0 0.0
        %2226 = vmatpush1.msra.mxu0 0.0
        %2227 = vmatprep.subr.mxu0 0.0
        %2228 = vmatpush1.msra.mxu0 0.0
        %2229 = vmatprep.subr.mxu0 0.0
        %2230 = vmatpush1.msra.mxu0 0.0
        %2231 = vmatprep.subr.mxu0 0.0
        %2232 = vmatpush1.msra.mxu0 0.0
        %2233 = vmatprep.subr.mxu0 0.0
        %2234 = vmatpush1.msra.mxu0 0.0
        %2235 = vmatprep.subr.mxu0 0.0
        %2236 = vmatpush1.msra.mxu0 0.0
        %2237 = vmatprep.subr.mxu0 0.0
        %2238 = vmatpush1.msra.mxu0 0.0
        %2239 = vmatprep.subr.mxu0 0.0
        %2240 = vmatpush1.msra.mxu0 0.0
        %2241 = vmatprep.subr.mxu0 0.0
        %2242 = vmatpush1.msra.mxu0 0.0
        %2243 = vmatprep.subr.mxu0 0.0
        %2244 = vmatpush1.msra.mxu0 0.0
        %2245 = vmatprep.subr.mxu0 0.0
        %2246 = vmatpush1.msra.mxu0 0.0
        %2247 = vmatprep.subr.mxu0 0.0
        %2248 = vmatpush1.msra.mxu0 0.0
        %2249 = vmatprep.subr.mxu0 0.0
        %2250 = vmatpush1.msra.mxu0 0.0
        %2251 = vmatprep.subr.mxu0 0.0
        %2252 = vmatpush1.msra.mxu0 0.0
        %2253 = vmatprep.subr.mxu0 0.0
        %2254 = vmatpush1.msra.mxu0 0.0
        %2255 = vmatprep.subr.mxu0 0.0
        %2256 = vmatpush1.msra.mxu0 0.0
        %2257 = vmatprep.mubr.f32.mxu0 0.0
        %2258 = vmatmul.mubr.f32.gmra.mrb[0].mxu0 %v2121
        %v2259 = vpop.f32.mrb[0].mxu0
        %v2260 = vadd.f32 %v2190, %v2259
        %v2261 = vpop.f32.mrb[0].mxu0
        %2262 = vdwg.mxu0
        %v2263 = vadd.f32 %v2068, %v2260
        %s2264 = scalar_lea.vmem [#allocation10], 1104
        %v2265 = vld [vmem:[%s2264] sm:$0xff]
        %v2266 = vld [vmem:[%s2264 + $0x8] sm:$0xff]
        %v2267 = vld [vmem:[%s2264 + $0x10] sm:$0xff]
        %v2268 = vld [vmem:[%s2264 + $0x18] sm:$0xff]
        %v2269 = vld [vmem:[%s2264 + $0x20] sm:$0xff]
        %v2270 = vld [vmem:[%s2264 + $0x28] sm:$0xff]
        %v2271 = vld [vmem:[%s2264 + $0x30] sm:$0xff]
        %v2272 = vld [vmem:[%s2264 + $0x38] sm:$0xff]
        %v2273 = vld [vmem:[%s2264 + $0x40] sm:$0xff]
        %v2274 = vld [vmem:[%s2264 + $0x48] sm:$0xff]
        %v2275 = vld [vmem:[%s2264 + $0x50] sm:$0xff]
        %v2276 = vld [vmem:[%s2264 + $0x58] sm:$0xff]
        %v2277 = vld [vmem:[%s2264 + $0x60] sm:$0xff]
        %v2278 = vld [vmem:[%s2264 + $0x68] sm:$0xff]
        %v2279 = vld [vmem:[%s2264 + $0x70] sm:$0xff]
        %v2280 = vld [vmem:[%s2264 + $0x78] sm:$0xff]
        %v2281 = vld [vmem:[%s2264 + $0x80] sm:$0xff]
        %v2282 = vld [vmem:[%s2264 + $0x88] sm:$0xff]
        %v2283 = vld [vmem:[%s2264 + $0x90] sm:$0xff]
        %v2284 = vld [vmem:[%s2264 + $0x98] sm:$0xff]
        %v2285 = vld [vmem:[%s2264 + $0xa0] sm:$0xff]
        %v2286 = vld [vmem:[%s2264 + $0xa8] sm:$0xff]
        %v2287 = vld [vmem:[%s2264 + $0xb0] sm:$0xff]
        %v2288 = vld [vmem:[%s2264 + $0xb8] sm:$0xff]
        %v2289 = vld [vmem:[%s2264 + $0xc0] sm:$0xff]
        %v2290 = vld [vmem:[%s2264 + $0xc8] sm:$0xff]
        %v2291 = vld [vmem:[%s2264 + $0xd0] sm:$0xff]
        %v2292 = vld [vmem:[%s2264 + $0xd8] sm:$0xff]
        %v2293 = vld [vmem:[%s2264 + $0xe0] sm:$0xff]
        %v2294 = vld [vmem:[%s2264 + $0xe8] sm:$0xff]
        %v2295 = vld [vmem:[%s2264 + $0xf0] sm:$0xff]
        %v2296 = vld [vmem:[%s2264 + $0xf8] sm:$0xff]
        %v2297 = vld [vmem:[%s2264 + $0x100] sm:$0xff]
        %v2298 = vld [vmem:[%s2264 + $0x108] sm:$0xff]
        %v2299 = vld [vmem:[%s2264 + $0x110] sm:$0xff]
        %v2300 = vld [vmem:[%s2264 + $0x118] sm:$0xff]
        %v2301 = vld [vmem:[%s2264 + $0x120] sm:$0xff]
        %v2302 = vld [vmem:[%s2264 + $0x128] sm:$0xff]
        %v2303 = vld [vmem:[%s2264 + $0x130] sm:$0xff]
        %v2304 = vld [vmem:[%s2264 + $0x138] sm:$0xff]
        %v2305 = vld [vmem:[%s2264 + $0x140] sm:$0xff]
        %v2306 = vld [vmem:[%s2264 + $0x148] sm:$0xff]
        %v2307 = vld [vmem:[%s2264 + $0x150] sm:$0xff]
        %v2308 = vld [vmem:[%s2264 + $0x158] sm:$0xff]
        %v2309 = vld [vmem:[%s2264 + $0x160] sm:$0xff]
        %v2310 = vld [vmem:[%s2264 + $0x168] sm:$0xff]
        %v2311 = vrot.slane %v1679, 6
        %v2312 = vrot.slane %v1680, 6
        %v2313 = vrot.slane %v1681, 6
        %v2316 = vsel %vm1673, %v2313, 0
        %2318 = vmatprep.subr.mxu0 0.0
        %2319 = vmatpush1.msra.mxu0 %v2265
        %2320 = vmatprep.subr.mxu0 0.0
        %2321 = vmatpush1.msra.mxu0 %v2266
        %2322 = vmatprep.subr.mxu0 0.0
        %2323 = vmatpush1.msra.mxu0 %v2267
        %2324 = vmatprep.subr.mxu0 0.0
        %2325 = vmatpush1.msra.mxu0 %v2268
        %2326 = vmatprep.subr.mxu0 0.0
        %2327 = vmatpush1.msra.mxu0 %v2269
        %2328 = vmatprep.subr.mxu0 0.0
        %2329 = vmatpush1.msra.mxu0 %v2270
        %2330 = vmatprep.subr.mxu0 0.0
        %2331 = vmatpush1.msra.mxu0 %v2271
        %2332 = vmatprep.subr.mxu0 0.0
        %2333 = vmatpush1.msra.mxu0 %v2272
        %2334 = vmatprep.subr.mxu0 0.0
        %2335 = vmatpush1.msra.mxu0 %v2273
        %2336 = vmatprep.subr.mxu0 0.0
        %2337 = vmatpush1.msra.mxu0 %v2274
        %2338 = vmatprep.subr.mxu0 0.0
        %2339 = vmatpush1.msra.mxu0 %v2275
        %2340 = vmatprep.subr.mxu0 0.0
        %2341 = vmatpush1.msra.mxu0 %v2276
        %2342 = vmatprep.subr.mxu0 0.0
        %2343 = vmatpush1.msra.mxu0 %v2277
        %2344 = vmatprep.subr.mxu0 0.0
        %2345 = vmatpush1.msra.mxu0 %v2278
        %2346 = vmatprep.subr.mxu0 0.0
        %2347 = vmatpush1.msra.mxu0 %v2279
        %2348 = vmatprep.subr.mxu0 0.0
        %2349 = vmatpush1.msra.mxu0 %v2280
        %2350 = vmatprep.subr.mxu0 0.0
        %2351 = vmatpush1.msra.mxu0 %v2281
        %2352 = vmatprep.subr.mxu0 0.0
        %2353 = vmatpush1.msra.mxu0 %v2282
        %2354 = vmatprep.subr.mxu0 0.0
        %2355 = vmatpush1.msra.mxu0 %v2283
        %2356 = vmatprep.subr.mxu0 0.0
        %2357 = vmatpush1.msra.mxu0 %v2284
        %2358 = vmatprep.subr.mxu0 0.0
        %2359 = vmatpush1.msra.mxu0 %v2285
        %2360 = vmatprep.subr.mxu0 0.0
        %2361 = vmatpush1.msra.mxu0 %v2286
        %2362 = vmatprep.subr.mxu0 0.0
        %2363 = vmatpush1.msra.mxu0 %v2287
        %2364 = vmatprep.subr.mxu0 0.0
        %2365 = vmatpush1.msra.mxu0 %v2288
        %2366 = vmatprep.subr.mxu0 0.0
        %2367 = vmatpush1.msra.mxu0 %v2289
        %2368 = vmatprep.subr.mxu0 0.0
        %2369 = vmatpush1.msra.mxu0 %v2290
        %2370 = vmatprep.subr.mxu0 0.0
        %2371 = vmatpush1.msra.mxu0 %v2291
        %2372 = vmatprep.subr.mxu0 0.0
        %2373 = vmatpush1.msra.mxu0 %v2292
        %2374 = vmatprep.subr.mxu0 0.0
        %2375 = vmatpush1.msra.mxu0 %v2293
        %2376 = vmatprep.subr.mxu0 0.0
        %2377 = vmatpush1.msra.mxu0 %v2294
        %2378 = vmatprep.subr.mxu0 0.0
        %2379 = vmatpush1.msra.mxu0 %v2295
        %2380 = vmatprep.subr.mxu0 0.0
        %2381 = vmatpush1.msra.mxu0 %v2296
        %2382 = vmatprep.mubr.f32.mxu0 %v2312
        %2383 = vmatmul.mubr.f32.gmra.mrb[0].mxu0 %v2311
        %v2384 = vpop.f32.mrb[0].mxu0
        %v2385 = vadd.f32 0.0, %v2384
        %v2386 = vpop.f32.mrb[0].mxu0
        %2387 = vdwg.mxu0
        %2388 = vmatprep.subr.mxu0 0.0
        %2389 = vmatpush1.msra.mxu0 %v2297
        %2390 = vmatprep.subr.mxu0 0.0
        %2391 = vmatpush1.msra.mxu0 %v2298
        %2392 = vmatprep.subr.mxu0 0.0
        %2393 = vmatpush1.msra.mxu0 %v2299
        %2394 = vmatprep.subr.mxu0 0.0
        %2395 = vmatpush1.msra.mxu0 %v2300
        %2396 = vmatprep.subr.mxu0 0.0
        %2397 = vmatpush1.msra.mxu0 %v2301
        %2398 = vmatprep.subr.mxu0 0.0
        %2399 = vmatpush1.msra.mxu0 %v2302
        %2400 = vmatprep.subr.mxu0 0.0
        %2401 = vmatpush1.msra.mxu0 %v2303
        %2402 = vmatprep.subr.mxu0 0.0
        %2403 = vmatpush1.msra.mxu0 %v2304
        %2404 = vmatprep.subr.mxu0 0.0
        %2405 = vmatpush1.msra.mxu0 %v2305
        %2406 = vmatprep.subr.mxu0 0.0
        %2407 = vmatpush1.msra.mxu0 %v2306
        %2408 = vmatprep.subr.mxu0 0.0
        %2409 = vmatpush1.msra.mxu0 %v2307
        %2410 = vmatprep.subr.mxu0 0.0
        %2411 = vmatpush1.msra.mxu0 %v2308
        %2412 = vmatprep.subr.mxu0 0.0
        %2413 = vmatpush1.msra.mxu0 %v2309
        %2414 = vmatprep.subr.mxu0 0.0
        %2415 = vmatpush1.msra.mxu0 %v2310
        %2416 = vmatprep.subr.mxu0 0.0
        %2417 = vmatpush1.msra.mxu0 0.0
        %2418 = vmatprep.subr.mxu0 0.0
        %2419 = vmatpush1.msra.mxu0 0.0
        %2420 = vmatprep.subr.mxu0 0.0
        %2421 = vmatpush1.msra.mxu0 0.0
        %2422 = vmatprep.subr.mxu0 0.0
        %2423 = vmatpush1.msra.mxu0 0.0
        %2424 = vmatprep.subr.mxu0 0.0
        %2425 = vmatpush1.msra.mxu0 0.0
        %2426 = vmatprep.subr.mxu0 0.0
        %2427 = vmatpush1.msra.mxu0 0.0
        %2428 = vmatprep.subr.mxu0 0.0
        %2429 = vmatpush1.msra.mxu0 0.0
        %2430 = vmatprep.subr.mxu0 0.0
        %2431 = vmatpush1.msra.mxu0 0.0
        %2432 = vmatprep.subr.mxu0 0.0
        %2433 = vmatpush1.msra.mxu0 0.0
        %2434 = vmatprep.subr.mxu0 0.0
        %2435 = vmatpush1.msra.mxu0 0.0
        %2436 = vmatprep.subr.mxu0 0.0
        %2437 = vmatpush1.msra.mxu0 0.0
        %2438 = vmatprep.subr.mxu0 0.0
        %2439 = vmatpush1.msra.mxu0 0.0
        %2440 = vmatprep.subr.mxu0 0.0
        %2441 = vmatpush1.msra.mxu0 0.0
        %2442 = vmatprep.subr.mxu0 0.0
        %2443 = vmatpush1.msra.mxu0 0.0
        %2444 = vmatprep.subr.mxu0 0.0
        %2445 = vmatpush1.msra.mxu0 0.0
        %2446 = vmatprep.subr.mxu0 0.0
        %2447 = vmatpush1.msra.mxu0 0.0
        %2448 = vmatprep.subr.mxu0 0.0
        %2449 = vmatpush1.msra.mxu0 0.0
        %2450 = vmatprep.subr.mxu0 0.0
        %2451 = vmatpush1.msra.mxu0 0.0
        %2452 = vmatprep.mubr.f32.mxu0 0.0
        %2453 = vmatmul.mubr.f32.gmra.mrb[0].mxu0 %v2316
        %v2454 = vpop.f32.mrb[0].mxu0
        %v2455 = vadd.f32 %v2385, %v2454
        %v2456 = vpop.f32.mrb[0].mxu0
        %2457 = vdwg.mxu0
        %v2458 = vadd.f32 %v2263, %v2455
        %v2462 = vrot.slane %v1645, 1
        %v2463 = vrot.slane %v1646, 1
        %v2464 = vrot.slane %v1647, 1
        %v2468 = vmax.f32 %v1645, %v2462
        %v2469 = vmax.f32 %v1646, %v2463
        %v2470 = vmax.f32 %v1647, %v2464
        %2474 = vrot.lane.b32.xlu0 %v2468, 112
        %v2475 = vpop.permute.xlu0 %2474
        %2476 = vrot.lane.b32.xlu0 %v2469, 112
        %v2477 = vpop.permute.xlu0 %2476
        %2478 = vrot.lane.b32.xlu0 %v2470, 112
        %v2479 = vpop.permute.xlu0 %2478
        %v2480 = vsel %vm1673, %v2475, %v2477
        %v2481 = vsel %vm1673, %v2477, %v2479
        %v2485 = vmax.f32 %v2468, %v2480
        %v2486 = vmax.f32 %v2469, %v2481
        %v2487 = vmax.f32 %v2470, %v2479
        %s2488 = scalar_lea.vmem [#allocation10], 1472
        %v2489 = vld [vmem:[%s2488] sm:$0xff]
        %v2490 = vld [vmem:[%s2488 + $0x8] sm:$0xff]
        %v2491 = vld [vmem:[%s2488 + $0x10] sm:$0xff]
        %v2492 = vld [vmem:[%s2488 + $0x18] sm:$0xff]
        %v2493 = vld [vmem:[%s2488 + $0x20] sm:$0xff]
        %v2494 = vld [vmem:[%s2488 + $0x28] sm:$0xff]
        %v2495 = vld [vmem:[%s2488 + $0x30] sm:$0xff]
        %v2496 = vld [vmem:[%s2488 + $0x38] sm:$0xff]
        %v2497 = vld [vmem:[%s2488 + $0x40] sm:$0xff]
        %v2498 = vld [vmem:[%s2488 + $0x48] sm:$0xff]
        %v2499 = vld [vmem:[%s2488 + $0x50] sm:$0xff]
        %v2500 = vld [vmem:[%s2488 + $0x58] sm:$0xff]
        %v2501 = vld [vmem:[%s2488 + $0x60] sm:$0xff]
        %v2502 = vld [vmem:[%s2488 + $0x68] sm:$0xff]
        %v2503 = vld [vmem:[%s2488 + $0x70] sm:$0xff]
        %v2504 = vld [vmem:[%s2488 + $0x78] sm:$0xff]
        %v2505 = vld [vmem:[%s2488 + $0x80] sm:$0xff]
        %v2506 = vld [vmem:[%s2488 + $0x88] sm:$0xff]
        %v2507 = vld [vmem:[%s2488 + $0x90] sm:$0xff]
        %v2508 = vld [vmem:[%s2488 + $0x98] sm:$0xff]
        %v2509 = vld [vmem:[%s2488 + $0xa0] sm:$0xff]
        %v2510 = vld [vmem:[%s2488 + $0xa8] sm:$0xff]
        %v2511 = vld [vmem:[%s2488 + $0xb0] sm:$0xff]
        %v2512 = vld [vmem:[%s2488 + $0xb8] sm:$0xff]
        %v2513 = vld [vmem:[%s2488 + $0xc0] sm:$0xff]
        %v2514 = vld [vmem:[%s2488 + $0xc8] sm:$0xff]
        %v2515 = vld [vmem:[%s2488 + $0xd0] sm:$0xff]
        %v2516 = vld [vmem:[%s2488 + $0xd8] sm:$0xff]
        %v2517 = vld [vmem:[%s2488 + $0xe0] sm:$0xff]
        %v2518 = vld [vmem:[%s2488 + $0xe8] sm:$0xff]
        %v2519 = vld [vmem:[%s2488 + $0xf0] sm:$0xff]
        %v2520 = vld [vmem:[%s2488 + $0xf8] sm:$0xff]
        %v2521 = vld [vmem:[%s2488 + $0x100] sm:$0xff]
        %v2522 = vld [vmem:[%s2488 + $0x108] sm:$0xff]
        %v2523 = vld [vmem:[%s2488 + $0x110] sm:$0xff]
        %v2524 = vld [vmem:[%s2488 + $0x118] sm:$0xff]
        %v2525 = vld [vmem:[%s2488 + $0x120] sm:$0xff]
        %v2526 = vld [vmem:[%s2488 + $0x128] sm:$0xff]
        %v2527 = vld [vmem:[%s2488 + $0x130] sm:$0xff]
        %v2528 = vld [vmem:[%s2488 + $0x138] sm:$0xff]
        %v2529 = vld [vmem:[%s2488 + $0x140] sm:$0xff]
        %v2530 = vld [vmem:[%s2488 + $0x148] sm:$0xff]
        %v2531 = vld [vmem:[%s2488 + $0x150] sm:$0xff]
        %v2532 = vld [vmem:[%s2488 + $0x158] sm:$0xff]
        %v2533 = vld [vmem:[%s2488 + $0x160] sm:$0xff]
        %v2534 = vld [vmem:[%s2488 + $0x168] sm:$0xff]
        %v2536 = vsel %vm1673, %v2487, 0
        %2538 = vmatprep.subr.mxu0 0.0
        %2539 = vmatpush1.msra.mxu0 %v2489
        %2540 = vmatprep.subr.mxu0 0.0
        %2541 = vmatpush1.msra.mxu0 %v2490
        %2542 = vmatprep.subr.mxu0 0.0
        %2543 = vmatpush1.msra.mxu0 %v2491
        %2544 = vmatprep.subr.mxu0 0.0
        %2545 = vmatpush1.msra.mxu0 %v2492
        %2546 = vmatprep.subr.mxu0 0.0
        %2547 = vmatpush1.msra.mxu0 %v2493
        %2548 = vmatprep.subr.mxu0 0.0
        %2549 = vmatpush1.msra.mxu0 %v2494
        %2550 = vmatprep.subr.mxu0 0.0
        %2551 = vmatpush1.msra.mxu0 %v2495
        %2552 = vmatprep.subr.mxu0 0.0
        %2553 = vmatpush1.msra.mxu0 %v2496
        %2554 = vmatprep.subr.mxu0 0.0
        %2555 = vmatpush1.msra.mxu0 %v2497
        %2556 = vmatprep.subr.mxu0 0.0
        %2557 = vmatpush1.msra.mxu0 %v2498
        %2558 = vmatprep.subr.mxu0 0.0
        %2559 = vmatpush1.msra.mxu0 %v2499
        %2560 = vmatprep.subr.mxu0 0.0
        %2561 = vmatpush1.msra.mxu0 %v2500
        %2562 = vmatprep.subr.mxu0 0.0
        %2563 = vmatpush1.msra.mxu0 %v2501
        %2564 = vmatprep.subr.mxu0 0.0
        %2565 = vmatpush1.msra.mxu0 %v2502
        %2566 = vmatprep.subr.mxu0 0.0
        %2567 = vmatpush1.msra.mxu0 %v2503
        %2568 = vmatprep.subr.mxu0 0.0
        %2569 = vmatpush1.msra.mxu0 %v2504
        %2570 = vmatprep.subr.mxu0 0.0
        %2571 = vmatpush1.msra.mxu0 %v2505
        %2572 = vmatprep.subr.mxu0 0.0
        %2573 = vmatpush1.msra.mxu0 %v2506
        %2574 = vmatprep.subr.mxu0 0.0
        %2575 = vmatpush1.msra.mxu0 %v2507
        %2576 = vmatprep.subr.mxu0 0.0
        %2577 = vmatpush1.msra.mxu0 %v2508
        %2578 = vmatprep.subr.mxu0 0.0
        %2579 = vmatpush1.msra.mxu0 %v2509
        %2580 = vmatprep.subr.mxu0 0.0
        %2581 = vmatpush1.msra.mxu0 %v2510
        %2582 = vmatprep.subr.mxu0 0.0
        %2583 = vmatpush1.msra.mxu0 %v2511
        %2584 = vmatprep.subr.mxu0 0.0
        %2585 = vmatpush1.msra.mxu0 %v2512
        %2586 = vmatprep.subr.mxu0 0.0
        %2587 = vmatpush1.msra.mxu0 %v2513
        %2588 = vmatprep.subr.mxu0 0.0
        %2589 = vmatpush1.msra.mxu0 %v2514
        %2590 = vmatprep.subr.mxu0 0.0
        %2591 = vmatpush1.msra.mxu0 %v2515
        %2592 = vmatprep.subr.mxu0 0.0
        %2593 = vmatpush1.msra.mxu0 %v2516
        %2594 = vmatprep.subr.mxu0 0.0
        %2595 = vmatpush1.msra.mxu0 %v2517
        %2596 = vmatprep.subr.mxu0 0.0
        %2597 = vmatpush1.msra.mxu0 %v2518
        %2598 = vmatprep.subr.mxu0 0.0
        %2599 = vmatpush1.msra.mxu0 %v2519
        %2600 = vmatprep.subr.mxu0 0.0
        %2601 = vmatpush1.msra.mxu0 %v2520
        %2602 = vmatprep.mubr.f32.mxu0 %v2486
        %2603 = vmatmul.mubr.f32.gmra.mrb[0].mxu0 %v2485
        %v2604 = vpop.f32.mrb[0].mxu0
        %v2605 = vadd.f32 0.0, %v2604
        %v2606 = vpop.f32.mrb[0].mxu0
        %2607 = vdwg.mxu0
        %2608 = vmatprep.subr.mxu0 0.0
        %2609 = vmatpush1.msra.mxu0 %v2521
        %2610 = vmatprep.subr.mxu0 0.0
        %2611 = vmatpush1.msra.mxu0 %v2522
        %2612 = vmatprep.subr.mxu0 0.0
        %2613 = vmatpush1.msra.mxu0 %v2523
        %2614 = vmatprep.subr.mxu0 0.0
        %2615 = vmatpush1.msra.mxu0 %v2524
        %2616 = vmatprep.subr.mxu0 0.0
        %2617 = vmatpush1.msra.mxu0 %v2525
        %2618 = vmatprep.subr.mxu0 0.0
        %2619 = vmatpush1.msra.mxu0 %v2526
        %2620 = vmatprep.subr.mxu0 0.0
        %2621 = vmatpush1.msra.mxu0 %v2527
        %2622 = vmatprep.subr.mxu0 0.0
        %2623 = vmatpush1.msra.mxu0 %v2528
        %2624 = vmatprep.subr.mxu0 0.0
        %2625 = vmatpush1.msra.mxu0 %v2529
        %2626 = vmatprep.subr.mxu0 0.0
        %2627 = vmatpush1.msra.mxu0 %v2530
        %2628 = vmatprep.subr.mxu0 0.0
        %2629 = vmatpush1.msra.mxu0 %v2531
        %2630 = vmatprep.subr.mxu0 0.0
        %2631 = vmatpush1.msra.mxu0 %v2532
        %2632 = vmatprep.subr.mxu0 0.0
        %2633 = vmatpush1.msra.mxu0 %v2533
        %2634 = vmatprep.subr.mxu0 0.0
        %2635 = vmatpush1.msra.mxu0 %v2534
        %2636 = vmatprep.subr.mxu0 0.0
        %2637 = vmatpush1.msra.mxu0 0.0
        %2638 = vmatprep.subr.mxu0 0.0
        %2639 = vmatpush1.msra.mxu0 0.0
        %2640 = vmatprep.subr.mxu0 0.0
        %2641 = vmatpush1.msra.mxu0 0.0
        %2642 = vmatprep.subr.mxu0 0.0
        %2643 = vmatpush1.msra.mxu0 0.0
        %2644 = vmatprep.subr.mxu0 0.0
        %2645 = vmatpush1.msra.mxu0 0.0
        %2646 = vmatprep.subr.mxu0 0.0
        %2647 = vmatpush1.msra.mxu0 0.0
        %2648 = vmatprep.subr.mxu0 0.0
        %2649 = vmatpush1.msra.mxu0 0.0
        %2650 = vmatprep.subr.mxu0 0.0
        %2651 = vmatpush1.msra.mxu0 0.0
        %2652 = vmatprep.subr.mxu0 0.0
        %2653 = vmatpush1.msra.mxu0 0.0
        %2654 = vmatprep.subr.mxu0 0.0
        %2655 = vmatpush1.msra.mxu0 0.0
        %2656 = vmatprep.subr.mxu0 0.0
        %2657 = vmatpush1.msra.mxu0 0.0
        %2658 = vmatprep.subr.mxu0 0.0
        %2659 = vmatpush1.msra.mxu0 0.0
        %2660 = vmatprep.subr.mxu0 0.0
        %2661 = vmatpush1.msra.mxu0 0.0
        %2662 = vmatprep.subr.mxu0 0.0
        %2663 = vmatpush1.msra.mxu0 0.0
        %2664 = vmatprep.subr.mxu0 0.0
        %2665 = vmatpush1.msra.mxu0 0.0
        %2666 = vmatprep.subr.mxu0 0.0
        %2667 = vmatpush1.msra.mxu0 0.0
        %2668 = vmatprep.subr.mxu0 0.0
        %2669 = vmatpush1.msra.mxu0 0.0
        %2670 = vmatprep.subr.mxu0 0.0
        %2671 = vmatpush1.msra.mxu0 0.0
        %2672 = vmatprep.mubr.f32.mxu0 0.0
        %2673 = vmatmul.mubr.f32.gmra.mrb[0].mxu0 %v2536
        %v2674 = vpop.f32.mrb[0].mxu0
        %v2675 = vadd.f32 %v2605, %v2674
        %v2676 = vpop.f32.mrb[0].mxu0
        %2677 = vdwg.mxu0
        %v2678 = vadd.f32 %v2458, %v2675
        %s2679 = scalar_lea.vmem [#allocation10], 1840
        %v2680 = vld [vmem:[%s2679] sm:$0xff]
        %v2681 = vld [vmem:[%s2679 + $0x8] sm:$0xff]
        %v2682 = vld [vmem:[%s2679 + $0x10] sm:$0xff]
        %v2683 = vld [vmem:[%s2679 + $0x18] sm:$0xff]
        %v2684 = vld [vmem:[%s2679 + $0x20] sm:$0xff]
        %v2685 = vld [vmem:[%s2679 + $0x28] sm:$0xff]
        %v2686 = vld [vmem:[%s2679 + $0x30] sm:$0xff]
        %v2687 = vld [vmem:[%s2679 + $0x38] sm:$0xff]
        %v2688 = vld [vmem:[%s2679 + $0x40] sm:$0xff]
        %v2689 = vld [vmem:[%s2679 + $0x48] sm:$0xff]
        %v2690 = vld [vmem:[%s2679 + $0x50] sm:$0xff]
        %v2691 = vld [vmem:[%s2679 + $0x58] sm:$0xff]
        %v2692 = vld [vmem:[%s2679 + $0x60] sm:$0xff]
        %v2693 = vld [vmem:[%s2679 + $0x68] sm:$0xff]
        %v2694 = vld [vmem:[%s2679 + $0x70] sm:$0xff]
        %v2695 = vld [vmem:[%s2679 + $0x78] sm:$0xff]
        %v2696 = vld [vmem:[%s2679 + $0x80] sm:$0xff]
        %v2697 = vld [vmem:[%s2679 + $0x88] sm:$0xff]
        %v2698 = vld [vmem:[%s2679 + $0x90] sm:$0xff]
        %v2699 = vld [vmem:[%s2679 + $0x98] sm:$0xff]
        %v2700 = vld [vmem:[%s2679 + $0xa0] sm:$0xff]
        %v2701 = vld [vmem:[%s2679 + $0xa8] sm:$0xff]
        %v2702 = vld [vmem:[%s2679 + $0xb0] sm:$0xff]
        %v2703 = vld [vmem:[%s2679 + $0xb8] sm:$0xff]
        %v2704 = vld [vmem:[%s2679 + $0xc0] sm:$0xff]
        %v2705 = vld [vmem:[%s2679 + $0xc8] sm:$0xff]
        %v2706 = vld [vmem:[%s2679 + $0xd0] sm:$0xff]
        %v2707 = vld [vmem:[%s2679 + $0xd8] sm:$0xff]
        %v2708 = vld [vmem:[%s2679 + $0xe0] sm:$0xff]
        %v2709 = vld [vmem:[%s2679 + $0xe8] sm:$0xff]
        %v2710 = vld [vmem:[%s2679 + $0xf0] sm:$0xff]
        %v2711 = vld [vmem:[%s2679 + $0xf8] sm:$0xff]
        %v2712 = vld [vmem:[%s2679 + $0x100] sm:$0xff]
        %v2713 = vld [vmem:[%s2679 + $0x108] sm:$0xff]
        %v2714 = vld [vmem:[%s2679 + $0x110] sm:$0xff]
        %v2715 = vld [vmem:[%s2679 + $0x118] sm:$0xff]
        %v2716 = vld [vmem:[%s2679 + $0x120] sm:$0xff]
        %v2717 = vld [vmem:[%s2679 + $0x128] sm:$0xff]
        %v2718 = vld [vmem:[%s2679 + $0x130] sm:$0xff]
        %v2719 = vld [vmem:[%s2679 + $0x138] sm:$0xff]
        %v2720 = vld [vmem:[%s2679 + $0x140] sm:$0xff]
        %v2721 = vld [vmem:[%s2679 + $0x148] sm:$0xff]
        %v2722 = vld [vmem:[%s2679 + $0x150] sm:$0xff]
        %v2723 = vld [vmem:[%s2679 + $0x158] sm:$0xff]
        %v2724 = vld [vmem:[%s2679 + $0x160] sm:$0xff]
        %v2725 = vld [vmem:[%s2679 + $0x168] sm:$0xff]
        %v2728 = vrot.slane %v2485, 2
        %v2729 = vrot.slane %v2486, 2
        %v2730 = vrot.slane %v2487, 2
        %v2733 = vsel %vm1673, %v2730, 0
        %2735 = vmatprep.subr.mxu0 0.0
        %2736 = vmatpush1.msra.mxu0 %v2680
        %2737 = vmatprep.subr.mxu0 0.0
        %2738 = vmatpush1.msra.mxu0 %v2681
        %2739 = vmatprep.subr.mxu0 0.0
        %2740 = vmatpush1.msra.mxu0 %v2682
        %2741 = vmatprep.subr.mxu0 0.0
        %2742 = vmatpush1.msra.mxu0 %v2683
        %2743 = vmatprep.subr.mxu0 0.0
        %2744 = vmatpush1.msra.mxu0 %v2684
        %2745 = vmatprep.subr.mxu0 0.0
        %2746 = vmatpush1.msra.mxu0 %v2685
        %2747 = vmatprep.subr.mxu0 0.0
        %2748 = vmatpush1.msra.mxu0 %v2686
        %2749 = vmatprep.subr.mxu0 0.0
        %2750 = vmatpush1.msra.mxu0 %v2687
        %2751 = vmatprep.subr.mxu0 0.0
        %2752 = vmatpush1.msra.mxu0 %v2688
        %2753 = vmatprep.subr.mxu0 0.0
        %2754 = vmatpush1.msra.mxu0 %v2689
        %2755 = vmatprep.subr.mxu0 0.0
        %2756 = vmatpush1.msra.mxu0 %v2690
        %2757 = vmatprep.subr.mxu0 0.0
        %2758 = vmatpush1.msra.mxu0 %v2691
        %2759 = vmatprep.subr.mxu0 0.0
        %2760 = vmatpush1.msra.mxu0 %v2692
        %2761 = vmatprep.subr.mxu0 0.0
        %2762 = vmatpush1.msra.mxu0 %v2693
        %2763 = vmatprep.subr.mxu0 0.0
        %2764 = vmatpush1.msra.mxu0 %v2694
        %2765 = vmatprep.subr.mxu0 0.0
        %2766 = vmatpush1.msra.mxu0 %v2695
        %2767 = vmatprep.subr.mxu0 0.0
        %2768 = vmatpush1.msra.mxu0 %v2696
        %2769 = vmatprep.subr.mxu0 0.0
        %2770 = vmatpush1.msra.mxu0 %v2697
        %2771 = vmatprep.subr.mxu0 0.0
        %2772 = vmatpush1.msra.mxu0 %v2698
        %2773 = vmatprep.subr.mxu0 0.0
        %2774 = vmatpush1.msra.mxu0 %v2699
        %2775 = vmatprep.subr.mxu0 0.0
        %2776 = vmatpush1.msra.mxu0 %v2700
        %2777 = vmatprep.subr.mxu0 0.0
        %2778 = vmatpush1.msra.mxu0 %v2701
        %2779 = vmatprep.subr.mxu0 0.0
        %2780 = vmatpush1.msra.mxu0 %v2702
        %2781 = vmatprep.subr.mxu0 0.0
        %2782 = vmatpush1.msra.mxu0 %v2703
        %2783 = vmatprep.subr.mxu0 0.0
        %2784 = vmatpush1.msra.mxu0 %v2704
        %2785 = vmatprep.subr.mxu0 0.0
        %2786 = vmatpush1.msra.mxu0 %v2705
        %2787 = vmatprep.subr.mxu0 0.0
        %2788 = vmatpush1.msra.mxu0 %v2706
        %2789 = vmatprep.subr.mxu0 0.0
        %2790 = vmatpush1.msra.mxu0 %v2707
        %2791 = vmatprep.subr.mxu0 0.0
        %2792 = vmatpush1.msra.mxu0 %v2708
        %2793 = vmatprep.subr.mxu0 0.0
        %2794 = vmatpush1.msra.mxu0 %v2709
        %2795 = vmatprep.subr.mxu0 0.0
        %2796 = vmatpush1.msra.mxu0 %v2710
        %2797 = vmatprep.subr.mxu0 0.0
        %2798 = vmatpush1.msra.mxu0 %v2711
        %2799 = vmatprep.mubr.f32.mxu0 %v2729
        %2800 = vmatmul.mubr.f32.gmra.mrb[0].mxu0 %v2728
        %v2801 = vpop.f32.mrb[0].mxu0
        %v2802 = vadd.f32 0.0, %v2801
        %v2803 = vpop.f32.mrb[0].mxu0
        %2804 = vdwg.mxu0
        %2805 = vmatprep.subr.mxu0 0.0
        %2806 = vmatpush1.msra.mxu0 %v2712
        %2807 = vmatprep.subr.mxu0 0.0
        %2808 = vmatpush1.msra.mxu0 %v2713
        %2809 = vmatprep.subr.mxu0 0.0
        %2810 = vmatpush1.msra.mxu0 %v2714
        %2811 = vmatprep.subr.mxu0 0.0
        %2812 = vmatpush1.msra.mxu0 %v2715
        %2813 = vmatprep.subr.mxu0 0.0
        %2814 = vmatpush1.msra.mxu0 %v2716
        %2815 = vmatprep.subr.mxu0 0.0
        %2816 = vmatpush1.msra.mxu0 %v2717
        %2817 = vmatprep.subr.mxu0 0.0
        %2818 = vmatpush1.msra.mxu0 %v2718
        %2819 = vmatprep.subr.mxu0 0.0
        %2820 = vmatpush1.msra.mxu0 %v2719
        %2821 = vmatprep.subr.mxu0 0.0
        %2822 = vmatpush1.msra.mxu0 %v2720
        %2823 = vmatprep.subr.mxu0 0.0
        %2824 = vmatpush1.msra.mxu0 %v2721
        %2825 = vmatprep.subr.mxu0 0.0
        %2826 = vmatpush1.msra.mxu0 %v2722
        %2827 = vmatprep.subr.mxu0 0.0
        %2828 = vmatpush1.msra.mxu0 %v2723
        %2829 = vmatprep.subr.mxu0 0.0
        %2830 = vmatpush1.msra.mxu0 %v2724
        %2831 = vmatprep.subr.mxu0 0.0
        %2832 = vmatpush1.msra.mxu0 %v2725
        %2833 = vmatprep.subr.mxu0 0.0
        %2834 = vmatpush1.msra.mxu0 0.0
        %2835 = vmatprep.subr.mxu0 0.0
        %2836 = vmatpush1.msra.mxu0 0.0
        %2837 = vmatprep.subr.mxu0 0.0
        %2838 = vmatpush1.msra.mxu0 0.0
        %2839 = vmatprep.subr.mxu0 0.0
        %2840 = vmatpush1.msra.mxu0 0.0
        %2841 = vmatprep.subr.mxu0 0.0
        %2842 = vmatpush1.msra.mxu0 0.0
        %2843 = vmatprep.subr.mxu0 0.0
        %2844 = vmatpush1.msra.mxu0 0.0
        %2845 = vmatprep.subr.mxu0 0.0
        %2846 = vmatpush1.msra.mxu0 0.0
        %2847 = vmatprep.subr.mxu0 0.0
        %2848 = vmatpush1.msra.mxu0 0.0
        %2849 = vmatprep.subr.mxu0 0.0
        %2850 = vmatpush1.msra.mxu0 0.0
        %2851 = vmatprep.subr.mxu0 0.0
        %2852 = vmatpush1.msra.mxu0 0.0
        %2853 = vmatprep.subr.mxu0 0.0
        %2854 = vmatpush1.msra.mxu0 0.0
        %2855 = vmatprep.subr.mxu0 0.0
        %2856 = vmatpush1.msra.mxu0 0.0
        %2857 = vmatprep.subr.mxu0 0.0
        %2858 = vmatpush1.msra.mxu0 0.0
        %2859 = vmatprep.subr.mxu0 0.0
        %2860 = vmatpush1.msra.mxu0 0.0
        %2861 = vmatprep.subr.mxu0 0.0
        %2862 = vmatpush1.msra.mxu0 0.0
        %2863 = vmatprep.subr.mxu0 0.0
        %2864 = vmatpush1.msra.mxu0 0.0
        %2865 = vmatprep.subr.mxu0 0.0
        %2866 = vmatpush1.msra.mxu0 0.0
        %2867 = vmatprep.subr.mxu0 0.0
        %2868 = vmatpush1.msra.mxu0 0.0
        %2869 = vmatprep.mubr.f32.mxu0 0.0
        %2870 = vmatmul.mubr.f32.gmra.mrb[0].mxu0 %v2733
        %v2871 = vpop.f32.mrb[0].mxu0
        %v2872 = vadd.f32 %v2802, %v2871
        %v2873 = vpop.f32.mrb[0].mxu0
        %2874 = vdwg.mxu0
        %v2875 = vadd.f32 %v2678, %v2872
        %s2876 = scalar_lea.vmem [#allocation10], 2208
        %v2877 = vld [vmem:[%s2876] sm:$0xff]
        %v2878 = vld [vmem:[%s2876 + $0x8] sm:$0xff]
        %v2879 = vld [vmem:[%s2876 + $0x10] sm:$0xff]
        %v2880 = vld [vmem:[%s2876 + $0x18] sm:$0xff]
        %v2881 = vld [vmem:[%s2876 + $0x20] sm:$0xff]
        %v2882 = vld [vmem:[%s2876 + $0x28] sm:$0xff]
        %v2883 = vld [vmem:[%s2876 + $0x30] sm:$0xff]
        %v2884 = vld [vmem:[%s2876 + $0x38] sm:$0xff]
        %v2885 = vld [vmem:[%s2876 + $0x40] sm:$0xff]
        %v2886 = vld [vmem:[%s2876 + $0x48] sm:$0xff]
        %v2887 = vld [vmem:[%s2876 + $0x50] sm:$0xff]
        %v2888 = vld [vmem:[%s2876 + $0x58] sm:$0xff]
        %v2889 = vld [vmem:[%s2876 + $0x60] sm:$0xff]
        %v2890 = vld [vmem:[%s2876 + $0x68] sm:$0xff]
        %v2891 = vld [vmem:[%s2876 + $0x70] sm:$0xff]
        %v2892 = vld [vmem:[%s2876 + $0x78] sm:$0xff]
        %v2893 = vld [vmem:[%s2876 + $0x80] sm:$0xff]
        %v2894 = vld [vmem:[%s2876 + $0x88] sm:$0xff]
        %v2895 = vld [vmem:[%s2876 + $0x90] sm:$0xff]
        %v2896 = vld [vmem:[%s2876 + $0x98] sm:$0xff]
        %v2897 = vld [vmem:[%s2876 + $0xa0] sm:$0xff]
        %v2898 = vld [vmem:[%s2876 + $0xa8] sm:$0xff]
        %v2899 = vld [vmem:[%s2876 + $0xb0] sm:$0xff]
        %v2900 = vld [vmem:[%s2876 + $0xb8] sm:$0xff]
        %v2901 = vld [vmem:[%s2876 + $0xc0] sm:$0xff]
        %v2902 = vld [vmem:[%s2876 + $0xc8] sm:$0xff]
        %v2903 = vld [vmem:[%s2876 + $0xd0] sm:$0xff]
        %v2904 = vld [vmem:[%s2876 + $0xd8] sm:$0xff]
        %v2905 = vld [vmem:[%s2876 + $0xe0] sm:$0xff]
        %v2906 = vld [vmem:[%s2876 + $0xe8] sm:$0xff]
        %v2907 = vld [vmem:[%s2876 + $0xf0] sm:$0xff]
        %v2908 = vld [vmem:[%s2876 + $0xf8] sm:$0xff]
        %v2909 = vld [vmem:[%s2876 + $0x100] sm:$0xff]
        %v2910 = vld [vmem:[%s2876 + $0x108] sm:$0xff]
        %v2911 = vld [vmem:[%s2876 + $0x110] sm:$0xff]
        %v2912 = vld [vmem:[%s2876 + $0x118] sm:$0xff]
        %v2913 = vld [vmem:[%s2876 + $0x120] sm:$0xff]
        %v2914 = vld [vmem:[%s2876 + $0x128] sm:$0xff]
        %v2915 = vld [vmem:[%s2876 + $0x130] sm:$0xff]
        %v2916 = vld [vmem:[%s2876 + $0x138] sm:$0xff]
        %v2917 = vld [vmem:[%s2876 + $0x140] sm:$0xff]
        %v2918 = vld [vmem:[%s2876 + $0x148] sm:$0xff]
        %v2919 = vld [vmem:[%s2876 + $0x150] sm:$0xff]
        %v2920 = vld [vmem:[%s2876 + $0x158] sm:$0xff]
        %v2921 = vld [vmem:[%s2876 + $0x160] sm:$0xff]
        %v2922 = vld [vmem:[%s2876 + $0x168] sm:$0xff]
        %v2923 = vrot.slane %v2485, 4
        %v2924 = vrot.slane %v2486, 4
        %v2925 = vrot.slane %v2487, 4
        %v2928 = vsel %vm1673, %v2925, 0
        %2930 = vmatprep.subr.mxu0 0.0
        %2931 = vmatpush1.msra.mxu0 %v2877
        %2932 = vmatprep.subr.mxu0 0.0
        %2933 = vmatpush1.msra.mxu0 %v2878
        %2934 = vmatprep.subr.mxu0 0.0
        %2935 = vmatpush1.msra.mxu0 %v2879
        %2936 = vmatprep.subr.mxu0 0.0
        %2937 = vmatpush1.msra.mxu0 %v2880
        %2938 = vmatprep.subr.mxu0 0.0
        %2939 = vmatpush1.msra.mxu0 %v2881
        %2940 = vmatprep.subr.mxu0 0.0
        %2941 = vmatpush1.msra.mxu0 %v2882
        %2942 = vmatprep.subr.mxu0 0.0
        %2943 = vmatpush1.msra.mxu0 %v2883
        %2944 = vmatprep.subr.mxu0 0.0
        %2945 = vmatpush1.msra.mxu0 %v2884
        %2946 = vmatprep.subr.mxu0 0.0
        %2947 = vmatpush1.msra.mxu0 %v2885
        %2948 = vmatprep.subr.mxu0 0.0
        %2949 = vmatpush1.msra.mxu0 %v2886
        %2950 = vmatprep.subr.mxu0 0.0
        %2951 = vmatpush1.msra.mxu0 %v2887
        %2952 = vmatprep.subr.mxu0 0.0
        %2953 = vmatpush1.msra.mxu0 %v2888
        %2954 = vmatprep.subr.mxu0 0.0
        %2955 = vmatpush1.msra.mxu0 %v2889
        %2956 = vmatprep.subr.mxu0 0.0
        %2957 = vmatpush1.msra.mxu0 %v2890
        %2958 = vmatprep.subr.mxu0 0.0
        %2959 = vmatpush1.msra.mxu0 %v2891
        %2960 = vmatprep.subr.mxu0 0.0
        %2961 = vmatpush1.msra.mxu0 %v2892
        %2962 = vmatprep.subr.mxu0 0.0
        %2963 = vmatpush1.msra.mxu0 %v2893
        %2964 = vmatprep.subr.mxu0 0.0
        %2965 = vmatpush1.msra.mxu0 %v2894
        %2966 = vmatprep.subr.mxu0 0.0
        %2967 = vmatpush1.msra.mxu0 %v2895
        %2968 = vmatprep.subr.mxu0 0.0
        %2969 = vmatpush1.msra.mxu0 %v2896
        %2970 = vmatprep.subr.mxu0 0.0
        %2971 = vmatpush1.msra.mxu0 %v2897
        %2972 = vmatprep.subr.mxu0 0.0
        %2973 = vmatpush1.msra.mxu0 %v2898
        %2974 = vmatprep.subr.mxu0 0.0
        %2975 = vmatpush1.msra.mxu0 %v2899
        %2976 = vmatprep.subr.mxu0 0.0
        %2977 = vmatpush1.msra.mxu0 %v2900
        %2978 = vmatprep.subr.mxu0 0.0
        %2979 = vmatpush1.msra.mxu0 %v2901
        %2980 = vmatprep.subr.mxu0 0.0
        %2981 = vmatpush1.msra.mxu0 %v2902
        %2982 = vmatprep.subr.mxu0 0.0
        %2983 = vmatpush1.msra.mxu0 %v2903
        %2984 = vmatprep.subr.mxu0 0.0
        %2985 = vmatpush1.msra.mxu0 %v2904
        %2986 = vmatprep.subr.mxu0 0.0
        %2987 = vmatpush1.msra.mxu0 %v2905
        %2988 = vmatprep.subr.mxu0 0.0
        %2989 = vmatpush1.msra.mxu0 %v2906
        %2990 = vmatprep.subr.mxu0 0.0
        %2991 = vmatpush1.msra.mxu0 %v2907
        %2992 = vmatprep.subr.mxu0 0.0
        %2993 = vmatpush1.msra.mxu0 %v2908
        %2994 = vmatprep.mubr.f32.mxu0 %v2924
        %2995 = vmatmul.mubr.f32.gmra.mrb[0].mxu0 %v2923
        %v2996 = vpop.f32.mrb[0].mxu0
        %v2997 = vadd.f32 0.0, %v2996
        %v2998 = vpop.f32.mrb[0].mxu0
        %2999 = vdwg.mxu0
        %3000 = vmatprep.subr.mxu0 0.0
        %3001 = vmatpush1.msra.mxu0 %v2909
        %3002 = vmatprep.subr.mxu0 0.0
        %3003 = vmatpush1.msra.mxu0 %v2910
        %3004 = vmatprep.subr.mxu0 0.0
        %3005 = vmatpush1.msra.mxu0 %v2911
        %3006 = vmatprep.subr.mxu0 0.0
        %3007 = vmatpush1.msra.mxu0 %v2912
        %3008 = vmatprep.subr.mxu0 0.0
        %3009 = vmatpush1.msra.mxu0 %v2913
        %3010 = vmatprep.subr.mxu0 0.0
        %3011 = vmatpush1.msra.mxu0 %v2914
        %3012 = vmatprep.subr.mxu0 0.0
        %3013 = vmatpush1.msra.mxu0 %v2915
        %3014 = vmatprep.subr.mxu0 0.0
        %3015 = vmatpush1.msra.mxu0 %v2916
        %3016 = vmatprep.subr.mxu0 0.0
        %3017 = vmatpush1.msra.mxu0 %v2917
        %3018 = vmatprep.subr.mxu0 0.0
        %3019 = vmatpush1.msra.mxu0 %v2918
        %3020 = vmatprep.subr.mxu0 0.0
        %3021 = vmatpush1.msra.mxu0 %v2919
        %3022 = vmatprep.subr.mxu0 0.0
        %3023 = vmatpush1.msra.mxu0 %v2920
        %3024 = vmatprep.subr.mxu0 0.0
        %3025 = vmatpush1.msra.mxu0 %v2921
        %3026 = vmatprep.subr.mxu0 0.0
        %3027 = vmatpush1.msra.mxu0 %v2922
        %3028 = vmatprep.subr.mxu0 0.0
        %3029 = vmatpush1.msra.mxu0 0.0
        %3030 = vmatprep.subr.mxu0 0.0
        %3031 = vmatpush1.msra.mxu0 0.0
        %3032 = vmatprep.subr.mxu0 0.0
        %3033 = vmatpush1.msra.mxu0 0.0
        %3034 = vmatprep.subr.mxu0 0.0
        %3035 = vmatpush1.msra.mxu0 0.0
        %3036 = vmatprep.subr.mxu0 0.0
        %3037 = vmatpush1.msra.mxu0 0.0
        %3038 = vmatprep.subr.mxu0 0.0
        %3039 = vmatpush1.msra.mxu0 0.0
        %3040 = vmatprep.subr.mxu0 0.0
        %3041 = vmatpush1.msra.mxu0 0.0
        %3042 = vmatprep.subr.mxu0 0.0
        %3043 = vmatpush1.msra.mxu0 0.0
        %3044 = vmatprep.subr.mxu0 0.0
        %3045 = vmatpush1.msra.mxu0 0.0
        %3046 = vmatprep.subr.mxu0 0.0
        %3047 = vmatpush1.msra.mxu0 0.0
        %3048 = vmatprep.subr.mxu0 0.0
        %3049 = vmatpush1.msra.mxu0 0.0
        %3050 = vmatprep.subr.mxu0 0.0
        %3051 = vmatpush1.msra.mxu0 0.0
        %3052 = vmatprep.subr.mxu0 0.0
        %3053 = vmatpush1.msra.mxu0 0.0
        %3054 = vmatprep.subr.mxu0 0.0
        %3055 = vmatpush1.msra.mxu0 0.0
        %3056 = vmatprep.subr.mxu0 0.0
        %3057 = vmatpush1.msra.mxu0 0.0
        %3058 = vmatprep.subr.mxu0 0.0
        %3059 = vmatpush1.msra.mxu0 0.0
        %3060 = vmatprep.subr.mxu0 0.0
        %3061 = vmatpush1.msra.mxu0 0.0
        %3062 = vmatprep.subr.mxu0 0.0
        %3063 = vmatpush1.msra.mxu0 0.0
        %3064 = vmatprep.mubr.f32.mxu0 0.0
        %3065 = vmatmul.mubr.f32.gmra.mrb[0].mxu0 %v2928
        %v3066 = vpop.f32.mrb[0].mxu0
        %v3067 = vadd.f32 %v2997, %v3066
        %v3068 = vpop.f32.mrb[0].mxu0
        %3069 = vdwg.mxu0
        %v3070 = vadd.f32 %v2875, %v3067
        %s3071 = scalar_lea.vmem [#allocation10], 2576
        %v3072 = vld [vmem:[%s3071] sm:$0xff]
        %v3073 = vld [vmem:[%s3071 + $0x8] sm:$0xff]
        %v3074 = vld [vmem:[%s3071 + $0x10] sm:$0xff]
        %v3075 = vld [vmem:[%s3071 + $0x18] sm:$0xff]
        %v3076 = vld [vmem:[%s3071 + $0x20] sm:$0xff]
        %v3077 = vld [vmem:[%s3071 + $0x28] sm:$0xff]
        %v3078 = vld [vmem:[%s3071 + $0x30] sm:$0xff]
        %v3079 = vld [vmem:[%s3071 + $0x38] sm:$0xff]
        %v3080 = vld [vmem:[%s3071 + $0x40] sm:$0xff]
        %v3081 = vld [vmem:[%s3071 + $0x48] sm:$0xff]
        %v3082 = vld [vmem:[%s3071 + $0x50] sm:$0xff]
        %v3083 = vld [vmem:[%s3071 + $0x58] sm:$0xff]
        %v3084 = vld [vmem:[%s3071 + $0x60] sm:$0xff]
        %v3085 = vld [vmem:[%s3071 + $0x68] sm:$0xff]
        %v3086 = vld [vmem:[%s3071 + $0x70] sm:$0xff]
        %v3087 = vld [vmem:[%s3071 + $0x78] sm:$0xff]
        %v3088 = vld [vmem:[%s3071 + $0x80] sm:$0xff]
        %v3089 = vld [vmem:[%s3071 + $0x88] sm:$0xff]
        %v3090 = vld [vmem:[%s3071 + $0x90] sm:$0xff]
        %v3091 = vld [vmem:[%s3071 + $0x98] sm:$0xff]
        %v3092 = vld [vmem:[%s3071 + $0xa0] sm:$0xff]
        %v3093 = vld [vmem:[%s3071 + $0xa8] sm:$0xff]
        %v3094 = vld [vmem:[%s3071 + $0xb0] sm:$0xff]
        %v3095 = vld [vmem:[%s3071 + $0xb8] sm:$0xff]
        %v3096 = vld [vmem:[%s3071 + $0xc0] sm:$0xff]
        %v3097 = vld [vmem:[%s3071 + $0xc8] sm:$0xff]
        %v3098 = vld [vmem:[%s3071 + $0xd0] sm:$0xff]
        %v3099 = vld [vmem:[%s3071 + $0xd8] sm:$0xff]
        %v3100 = vld [vmem:[%s3071 + $0xe0] sm:$0xff]
        %v3101 = vld [vmem:[%s3071 + $0xe8] sm:$0xff]
        %v3102 = vld [vmem:[%s3071 + $0xf0] sm:$0xff]
        %v3103 = vld [vmem:[%s3071 + $0xf8] sm:$0xff]
        %v3104 = vld [vmem:[%s3071 + $0x100] sm:$0xff]
        %v3105 = vld [vmem:[%s3071 + $0x108] sm:$0xff]
        %v3106 = vld [vmem:[%s3071 + $0x110] sm:$0xff]
        %v3107 = vld [vmem:[%s3071 + $0x118] sm:$0xff]
        %v3108 = vld [vmem:[%s3071 + $0x120] sm:$0xff]
        %v3109 = vld [vmem:[%s3071 + $0x128] sm:$0xff]
        %v3110 = vld [vmem:[%s3071 + $0x130] sm:$0xff]
        %v3111 = vld [vmem:[%s3071 + $0x138] sm:$0xff]
        %v3112 = vld [vmem:[%s3071 + $0x140] sm:$0xff]
        %v3113 = vld [vmem:[%s3071 + $0x148] sm:$0xff]
        %v3114 = vld [vmem:[%s3071 + $0x150] sm:$0xff]
        %v3115 = vld [vmem:[%s3071 + $0x158] sm:$0xff]
        %v3116 = vld [vmem:[%s3071 + $0x160] sm:$0xff]
        %v3117 = vld [vmem:[%s3071 + $0x168] sm:$0xff]
        %v3118 = vrot.slane %v2485, 6
        %v3119 = vrot.slane %v2486, 6
        %v3120 = vrot.slane %v2487, 6
        %v3123 = vsel %vm1673, %v3120, 0
        %3125 = vmatprep.subr.mxu0 0.0
        %3126 = vmatpush1.msra.mxu0 %v3072
        %3127 = vmatprep.subr.mxu0 0.0
        %3128 = vmatpush1.msra.mxu0 %v3073
        %3129 = vmatprep.subr.mxu0 0.0
        %3130 = vmatpush1.msra.mxu0 %v3074
        %3131 = vmatprep.subr.mxu0 0.0
        %3132 = vmatpush1.msra.mxu0 %v3075
        %3133 = vmatprep.subr.mxu0 0.0
        %3134 = vmatpush1.msra.mxu0 %v3076
        %3135 = vmatprep.subr.mxu0 0.0
        %3136 = vmatpush1.msra.mxu0 %v3077
        %3137 = vmatprep.subr.mxu0 0.0
        %3138 = vmatpush1.msra.mxu0 %v3078
        %3139 = vmatprep.subr.mxu0 0.0
        %3140 = vmatpush1.msra.mxu0 %v3079
        %3141 = vmatprep.subr.mxu0 0.0
        %3142 = vmatpush1.msra.mxu0 %v3080
        %3143 = vmatprep.subr.mxu0 0.0
        %3144 = vmatpush1.msra.mxu0 %v3081
        %3145 = vmatprep.subr.mxu0 0.0
        %3146 = vmatpush1.msra.mxu0 %v3082
        %3147 = vmatprep.subr.mxu0 0.0
        %3148 = vmatpush1.msra.mxu0 %v3083
        %3149 = vmatprep.subr.mxu0 0.0
        %3150 = vmatpush1.msra.mxu0 %v3084
        %3151 = vmatprep.subr.mxu0 0.0
        %3152 = vmatpush1.msra.mxu0 %v3085
        %3153 = vmatprep.subr.mxu0 0.0
        %3154 = vmatpush1.msra.mxu0 %v3086
        %3155 = vmatprep.subr.mxu0 0.0
        %3156 = vmatpush1.msra.mxu0 %v3087
        %3157 = vmatprep.subr.mxu0 0.0
        %3158 = vmatpush1.msra.mxu0 %v3088
        %3159 = vmatprep.subr.mxu0 0.0
        %3160 = vmatpush1.msra.mxu0 %v3089
        %3161 = vmatprep.subr.mxu0 0.0
        %3162 = vmatpush1.msra.mxu0 %v3090
        %3163 = vmatprep.subr.mxu0 0.0
        %3164 = vmatpush1.msra.mxu0 %v3091
        %3165 = vmatprep.subr.mxu0 0.0
        %3166 = vmatpush1.msra.mxu0 %v3092
        %3167 = vmatprep.subr.mxu0 0.0
        %3168 = vmatpush1.msra.mxu0 %v3093
        %3169 = vmatprep.subr.mxu0 0.0
        %3170 = vmatpush1.msra.mxu0 %v3094
        %3171 = vmatprep.subr.mxu0 0.0
        %3172 = vmatpush1.msra.mxu0 %v3095
        %3173 = vmatprep.subr.mxu0 0.0
        %3174 = vmatpush1.msra.mxu0 %v3096
        %3175 = vmatprep.subr.mxu0 0.0
        %3176 = vmatpush1.msra.mxu0 %v3097
        %3177 = vmatprep.subr.mxu0 0.0
        %3178 = vmatpush1.msra.mxu0 %v3098
        %3179 = vmatprep.subr.mxu0 0.0
        %3180 = vmatpush1.msra.mxu0 %v3099
        %3181 = vmatprep.subr.mxu0 0.0
        %3182 = vmatpush1.msra.mxu0 %v3100
        %3183 = vmatprep.subr.mxu0 0.0
        %3184 = vmatpush1.msra.mxu0 %v3101
        %3185 = vmatprep.subr.mxu0 0.0
        %3186 = vmatpush1.msra.mxu0 %v3102
        %3187 = vmatprep.subr.mxu0 0.0
        %3188 = vmatpush1.msra.mxu0 %v3103
        %3189 = vmatprep.mubr.f32.mxu0 %v3119
        %3190 = vmatmul.mubr.f32.gmra.mrb[0].mxu0 %v3118
        %v3191 = vpop.f32.mrb[0].mxu0
        %v3192 = vadd.f32 0.0, %v3191
        %v3193 = vpop.f32.mrb[0].mxu0
        %3194 = vdwg.mxu0
        %3195 = vmatprep.subr.mxu0 0.0
        %3196 = vmatpush1.msra.mxu0 %v3104
        %3197 = vmatprep.subr.mxu0 0.0
        %3198 = vmatpush1.msra.mxu0 %v3105
        %3199 = vmatprep.subr.mxu0 0.0
        %3200 = vmatpush1.msra.mxu0 %v3106
        %3201 = vmatprep.subr.mxu0 0.0
        %3202 = vmatpush1.msra.mxu0 %v3107
        %3203 = vmatprep.subr.mxu0 0.0
        %3204 = vmatpush1.msra.mxu0 %v3108
        %3205 = vmatprep.subr.mxu0 0.0
        %3206 = vmatpush1.msra.mxu0 %v3109
        %3207 = vmatprep.subr.mxu0 0.0
        %3208 = vmatpush1.msra.mxu0 %v3110
        %3209 = vmatprep.subr.mxu0 0.0
        %3210 = vmatpush1.msra.mxu0 %v3111
        %3211 = vmatprep.subr.mxu0 0.0
        %3212 = vmatpush1.msra.mxu0 %v3112
        %3213 = vmatprep.subr.mxu0 0.0
        %3214 = vmatpush1.msra.mxu0 %v3113
        %3215 = vmatprep.subr.mxu0 0.0
        %3216 = vmatpush1.msra.mxu0 %v3114
        %3217 = vmatprep.subr.mxu0 0.0
        %3218 = vmatpush1.msra.mxu0 %v3115
        %3219 = vmatprep.subr.mxu0 0.0
        %3220 = vmatpush1.msra.mxu0 %v3116
        %3221 = vmatprep.subr.mxu0 0.0
        %3222 = vmatpush1.msra.mxu0 %v3117
        %3223 = vmatprep.subr.mxu0 0.0
        %3224 = vmatpush1.msra.mxu0 0.0
        %3225 = vmatprep.subr.mxu0 0.0
        %3226 = vmatpush1.msra.mxu0 0.0
        %3227 = vmatprep.subr.mxu0 0.0
        %3228 = vmatpush1.msra.mxu0 0.0
        %3229 = vmatprep.subr.mxu0 0.0
        %3230 = vmatpush1.msra.mxu0 0.0
        %3231 = vmatprep.subr.mxu0 0.0
        %3232 = vmatpush1.msra.mxu0 0.0
        %3233 = vmatprep.subr.mxu0 0.0
        %3234 = vmatpush1.msra.mxu0 0.0
        %3235 = vmatprep.subr.mxu0 0.0
        %3236 = vmatpush1.msra.mxu0 0.0
        %3237 = vmatprep.subr.mxu0 0.0
        %3238 = vmatpush1.msra.mxu0 0.0
        %3239 = vmatprep.subr.mxu0 0.0
        %3240 = vmatpush1.msra.mxu0 0.0
        %3241 = vmatprep.subr.mxu0 0.0
        %3242 = vmatpush1.msra.mxu0 0.0
        %3243 = vmatprep.subr.mxu0 0.0
        %3244 = vmatpush1.msra.mxu0 0.0
        %3245 = vmatprep.subr.mxu0 0.0
        %3246 = vmatpush1.msra.mxu0 0.0
        %3247 = vmatprep.subr.mxu0 0.0
        %3248 = vmatpush1.msra.mxu0 0.0
        %3249 = vmatprep.subr.mxu0 0.0
        %3250 = vmatpush1.msra.mxu0 0.0
        %3251 = vmatprep.subr.mxu0 0.0
        %3252 = vmatpush1.msra.mxu0 0.0
        %3253 = vmatprep.subr.mxu0 0.0
        %3254 = vmatpush1.msra.mxu0 0.0
        %3255 = vmatprep.subr.mxu0 0.0
        %3256 = vmatpush1.msra.mxu0 0.0
        %3257 = vmatprep.subr.mxu0 0.0
        %3258 = vmatpush1.msra.mxu0 0.0
        %3259 = vmatprep.mubr.f32.mxu0 0.0
        %3260 = vmatmul.mubr.f32.gmra.mrb[0].mxu0 %v3123
        %v3261 = vpop.f32.mrb[0].mxu0
        %v3262 = vadd.f32 %v3192, %v3261
        %v3263 = vpop.f32.mrb[0].mxu0
        %3264 = vdwg.mxu0
        %v3265 = vadd.f32 %v3070, %v3262
        %v3269 = vrot.slane %v1648, 1
        %v3270 = vrot.slane %v1649, 1
        %v3271 = vrot.slane %v1650, 1
        %v3275 = vmax.f32 %v1648, %v3269
        %v3276 = vmax.f32 %v1649, %v3270
        %v3277 = vmax.f32 %v1650, %v3271
        %3281 = vrot.lane.b32.xlu0 %v3275, 112
        %v3282 = vpop.permute.xlu0 %3281
        %3283 = vrot.lane.b32.xlu0 %v3276, 112
        %v3284 = vpop.permute.xlu0 %3283
        %3285 = vrot.lane.b32.xlu0 %v3277, 112
        %v3286 = vpop.permute.xlu0 %3285
        %v3287 = vsel %vm1673, %v3282, %v3284
        %v3288 = vsel %vm1673, %v3284, %v3286
        %v3292 = vmax.f32 %v3275, %v3287
        %v3293 = vmax.f32 %v3276, %v3288
        %v3294 = vmax.f32 %v3277, %v3286
        %s3295 = scalar_lea.vmem [#allocation10], 2944
        %v3296 = vld [vmem:[%s3295] sm:$0xff]
        %v3297 = vld [vmem:[%s3295 + $0x8] sm:$0xff]
        %v3298 = vld [vmem:[%s3295 + $0x10] sm:$0xff]
        %v3299 = vld [vmem:[%s3295 + $0x18] sm:$0xff]
        %v3300 = vld [vmem:[%s3295 + $0x20] sm:$0xff]
        %v3301 = vld [vmem:[%s3295 + $0x28] sm:$0xff]
        %v3302 = vld [vmem:[%s3295 + $0x30] sm:$0xff]
        %v3303 = vld [vmem:[%s3295 + $0x38] sm:$0xff]
        %v3304 = vld [vmem:[%s3295 + $0x40] sm:$0xff]
        %v3305 = vld [vmem:[%s3295 + $0x48] sm:$0xff]
        %v3306 = vld [vmem:[%s3295 + $0x50] sm:$0xff]
        %v3307 = vld [vmem:[%s3295 + $0x58] sm:$0xff]
        %v3308 = vld [vmem:[%s3295 + $0x60] sm:$0xff]
        %v3309 = vld [vmem:[%s3295 + $0x68] sm:$0xff]
        %v3310 = vld [vmem:[%s3295 + $0x70] sm:$0xff]
        %v3311 = vld [vmem:[%s3295 + $0x78] sm:$0xff]
        %v3312 = vld [vmem:[%s3295 + $0x80] sm:$0xff]
        %v3313 = vld [vmem:[%s3295 + $0x88] sm:$0xff]
        %v3314 = vld [vmem:[%s3295 + $0x90] sm:$0xff]
        %v3315 = vld [vmem:[%s3295 + $0x98] sm:$0xff]
        %v3316 = vld [vmem:[%s3295 + $0xa0] sm:$0xff]
        %v3317 = vld [vmem:[%s3295 + $0xa8] sm:$0xff]
        %v3318 = vld [vmem:[%s3295 + $0xb0] sm:$0xff]
        %v3319 = vld [vmem:[%s3295 + $0xb8] sm:$0xff]
        %v3320 = vld [vmem:[%s3295 + $0xc0] sm:$0xff]
        %v3321 = vld [vmem:[%s3295 + $0xc8] sm:$0xff]
        %v3322 = vld [vmem:[%s3295 + $0xd0] sm:$0xff]
        %v3323 = vld [vmem:[%s3295 + $0xd8] sm:$0xff]
        %v3324 = vld [vmem:[%s3295 + $0xe0] sm:$0xff]
        %v3325 = vld [vmem:[%s3295 + $0xe8] sm:$0xff]
        %v3326 = vld [vmem:[%s3295 + $0xf0] sm:$0xff]
        %v3327 = vld [vmem:[%s3295 + $0xf8] sm:$0xff]
        %v3328 = vld [vmem:[%s3295 + $0x100] sm:$0xff]
        %v3329 = vld [vmem:[%s3295 + $0x108] sm:$0xff]
        %v3330 = vld [vmem:[%s3295 + $0x110] sm:$0xff]
        %v3331 = vld [vmem:[%s3295 + $0x118] sm:$0xff]
        %v3332 = vld [vmem:[%s3295 + $0x120] sm:$0xff]
        %v3333 = vld [vmem:[%s3295 + $0x128] sm:$0xff]
        %v3334 = vld [vmem:[%s3295 + $0x130] sm:$0xff]
        %v3335 = vld [vmem:[%s3295 + $0x138] sm:$0xff]
        %v3336 = vld [vmem:[%s3295 + $0x140] sm:$0xff]
        %v3337 = vld [vmem:[%s3295 + $0x148] sm:$0xff]
        %v3338 = vld [vmem:[%s3295 + $0x150] sm:$0xff]
        %v3339 = vld [vmem:[%s3295 + $0x158] sm:$0xff]
        %v3340 = vld [vmem:[%s3295 + $0x160] sm:$0xff]
        %v3341 = vld [vmem:[%s3295 + $0x168] sm:$0xff]
        %v3343 = vsel %vm1673, %v3294, 0
        %3345 = vmatprep.subr.mxu0 0.0
        %3346 = vmatpush1.msra.mxu0 %v3296
        %3347 = vmatprep.subr.mxu0 0.0
        %3348 = vmatpush1.msra.mxu0 %v3297
        %3349 = vmatprep.subr.mxu0 0.0
        %3350 = vmatpush1.msra.mxu0 %v3298
        %3351 = vmatprep.subr.mxu0 0.0
        %3352 = vmatpush1.msra.mxu0 %v3299
        %3353 = vmatprep.subr.mxu0 0.0
        %3354 = vmatpush1.msra.mxu0 %v3300
        %3355 = vmatprep.subr.mxu0 0.0
        %3356 = vmatpush1.msra.mxu0 %v3301
        %3357 = vmatprep.subr.mxu0 0.0
        %3358 = vmatpush1.msra.mxu0 %v3302
        %3359 = vmatprep.subr.mxu0 0.0
        %3360 = vmatpush1.msra.mxu0 %v3303
        %3361 = vmatprep.subr.mxu0 0.0
        %3362 = vmatpush1.msra.mxu0 %v3304
        %3363 = vmatprep.subr.mxu0 0.0
        %3364 = vmatpush1.msra.mxu0 %v3305
        %3365 = vmatprep.subr.mxu0 0.0
        %3366 = vmatpush1.msra.mxu0 %v3306
        %3367 = vmatprep.subr.mxu0 0.0
        %3368 = vmatpush1.msra.mxu0 %v3307
        %3369 = vmatprep.subr.mxu0 0.0
        %3370 = vmatpush1.msra.mxu0 %v3308
        %3371 = vmatprep.subr.mxu0 0.0
        %3372 = vmatpush1.msra.mxu0 %v3309
        %3373 = vmatprep.subr.mxu0 0.0
        %3374 = vmatpush1.msra.mxu0 %v3310
        %3375 = vmatprep.subr.mxu0 0.0
        %3376 = vmatpush1.msra.mxu0 %v3311
        %3377 = vmatprep.subr.mxu0 0.0
        %3378 = vmatpush1.msra.mxu0 %v3312
        %3379 = vmatprep.subr.mxu0 0.0
        %3380 = vmatpush1.msra.mxu0 %v3313
        %3381 = vmatprep.subr.mxu0 0.0
        %3382 = vmatpush1.msra.mxu0 %v3314
        %3383 = vmatprep.subr.mxu0 0.0
        %3384 = vmatpush1.msra.mxu0 %v3315
        %3385 = vmatprep.subr.mxu0 0.0
        %3386 = vmatpush1.msra.mxu0 %v3316
        %3387 = vmatprep.subr.mxu0 0.0
        %3388 = vmatpush1.msra.mxu0 %v3317
        %3389 = vmatprep.subr.mxu0 0.0
        %3390 = vmatpush1.msra.mxu0 %v3318
        %3391 = vmatprep.subr.mxu0 0.0
        %3392 = vmatpush1.msra.mxu0 %v3319
        %3393 = vmatprep.subr.mxu0 0.0
        %3394 = vmatpush1.msra.mxu0 %v3320
        %3395 = vmatprep.subr.mxu0 0.0
        %3396 = vmatpush1.msra.mxu0 %v3321
        %3397 = vmatprep.subr.mxu0 0.0
        %3398 = vmatpush1.msra.mxu0 %v3322
        %3399 = vmatprep.subr.mxu0 0.0
        %3400 = vmatpush1.msra.mxu0 %v3323
        %3401 = vmatprep.subr.mxu0 0.0
        %3402 = vmatpush1.msra.mxu0 %v3324
        %3403 = vmatprep.subr.mxu0 0.0
        %3404 = vmatpush1.msra.mxu0 %v3325
        %3405 = vmatprep.subr.mxu0 0.0
        %3406 = vmatpush1.msra.mxu0 %v3326
        %3407 = vmatprep.subr.mxu0 0.0
        %3408 = vmatpush1.msra.mxu0 %v3327
        %3409 = vmatprep.mubr.f32.mxu0 %v3293
        %3410 = vmatmul.mubr.f32.gmra.mrb[0].mxu0 %v3292
        %v3411 = vpop.f32.mrb[0].mxu0
        %v3412 = vadd.f32 0.0, %v3411
        %v3413 = vpop.f32.mrb[0].mxu0
        %3414 = vdwg.mxu0
        %3415 = vmatprep.subr.mxu0 0.0
        %3416 = vmatpush1.msra.mxu0 %v3328
        %3417 = vmatprep.subr.mxu0 0.0
        %3418 = vmatpush1.msra.mxu0 %v3329
        %3419 = vmatprep.subr.mxu0 0.0
        %3420 = vmatpush1.msra.mxu0 %v3330
        %3421 = vmatprep.subr.mxu0 0.0
        %3422 = vmatpush1.msra.mxu0 %v3331
        %3423 = vmatprep.subr.mxu0 0.0
        %3424 = vmatpush1.msra.mxu0 %v3332
        %3425 = vmatprep.subr.mxu0 0.0
        %3426 = vmatpush1.msra.mxu0 %v3333
        %3427 = vmatprep.subr.mxu0 0.0
        %3428 = vmatpush1.msra.mxu0 %v3334
        %3429 = vmatprep.subr.mxu0 0.0
        %3430 = vmatpush1.msra.mxu0 %v3335
        %3431 = vmatprep.subr.mxu0 0.0
        %3432 = vmatpush1.msra.mxu0 %v3336
        %3433 = vmatprep.subr.mxu0 0.0
        %3434 = vmatpush1.msra.mxu0 %v3337
        %3435 = vmatprep.subr.mxu0 0.0
        %3436 = vmatpush1.msra.mxu0 %v3338
        %3437 = vmatprep.subr.mxu0 0.0
        %3438 = vmatpush1.msra.mxu0 %v3339
        %3439 = vmatprep.subr.mxu0 0.0
        %3440 = vmatpush1.msra.mxu0 %v3340
        %3441 = vmatprep.subr.mxu0 0.0
        %3442 = vmatpush1.msra.mxu0 %v3341
        %3443 = vmatprep.subr.mxu0 0.0
        %3444 = vmatpush1.msra.mxu0 0.0
        %3445 = vmatprep.subr.mxu0 0.0
        %3446 = vmatpush1.msra.mxu0 0.0
        %3447 = vmatprep.subr.mxu0 0.0
        %3448 = vmatpush1.msra.mxu0 0.0
        %3449 = vmatprep.subr.mxu0 0.0
        %3450 = vmatpush1.msra.mxu0 0.0
        %3451 = vmatprep.subr.mxu0 0.0
        %3452 = vmatpush1.msra.mxu0 0.0
        %3453 = vmatprep.subr.mxu0 0.0
        %3454 = vmatpush1.msra.mxu0 0.0
        %3455 = vmatprep.subr.mxu0 0.0
        %3456 = vmatpush1.msra.mxu0 0.0
        %3457 = vmatprep.subr.mxu0 0.0
        %3458 = vmatpush1.msra.mxu0 0.0
        %3459 = vmatprep.subr.mxu0 0.0
        %3460 = vmatpush1.msra.mxu0 0.0
        %3461 = vmatprep.subr.mxu0 0.0
        %3462 = vmatpush1.msra.mxu0 0.0
        %3463 = vmatprep.subr.mxu0 0.0
        %3464 = vmatpush1.msra.mxu0 0.0
        %3465 = vmatprep.subr.mxu0 0.0
        %3466 = vmatpush1.msra.mxu0 0.0
        %3467 = vmatprep.subr.mxu0 0.0
        %3468 = vmatpush1.msra.mxu0 0.0
        %3469 = vmatprep.subr.mxu0 0.0
        %3470 = vmatpush1.msra.mxu0 0.0
        %3471 = vmatprep.subr.mxu0 0.0
        %3472 = vmatpush1.msra.mxu0 0.0
        %3473 = vmatprep.subr.mxu0 0.0
        %3474 = vmatpush1.msra.mxu0 0.0
        %3475 = vmatprep.subr.mxu0 0.0
        %3476 = vmatpush1.msra.mxu0 0.0
        %3477 = vmatprep.subr.mxu0 0.0
        %3478 = vmatpush1.msra.mxu0 0.0
        %3479 = vmatprep.mubr.f32.mxu0 0.0
        %3480 = vmatmul.mubr.f32.gmra.mrb[0].mxu0 %v3343
        %v3481 = vpop.f32.mrb[0].mxu0
        %v3482 = vadd.f32 %v3412, %v3481
        %v3483 = vpop.f32.mrb[0].mxu0
        %3484 = vdwg.mxu0
        %v3485 = vadd.f32 %v3265, %v3482
        %s3486 = scalar_lea.vmem [#allocation10], 3312
        %v3487 = vld [vmem:[%s3486] sm:$0xff]
        %v3488 = vld [vmem:[%s3486 + $0x8] sm:$0xff]
        %v3489 = vld [vmem:[%s3486 + $0x10] sm:$0xff]
        %v3490 = vld [vmem:[%s3486 + $0x18] sm:$0xff]
        %v3491 = vld [vmem:[%s3486 + $0x20] sm:$0xff]
        %v3492 = vld [vmem:[%s3486 + $0x28] sm:$0xff]
        %v3493 = vld [vmem:[%s3486 + $0x30] sm:$0xff]
        %v3494 = vld [vmem:[%s3486 + $0x38] sm:$0xff]
        %v3495 = vld [vmem:[%s3486 + $0x40] sm:$0xff]
        %v3496 = vld [vmem:[%s3486 + $0x48] sm:$0xff]
        %v3497 = vld [vmem:[%s3486 + $0x50] sm:$0xff]
        %v3498 = vld [vmem:[%s3486 + $0x58] sm:$0xff]
        %v3499 = vld [vmem:[%s3486 + $0x60] sm:$0xff]
        %v3500 = vld [vmem:[%s3486 + $0x68] sm:$0xff]
        %v3501 = vld [vmem:[%s3486 + $0x70] sm:$0xff]
        %v3502 = vld [vmem:[%s3486 + $0x78] sm:$0xff]
        %v3503 = vld [vmem:[%s3486 + $0x80] sm:$0xff]
        %v3504 = vld [vmem:[%s3486 + $0x88] sm:$0xff]
        %v3505 = vld [vmem:[%s3486 + $0x90] sm:$0xff]
        %v3506 = vld [vmem:[%s3486 + $0x98] sm:$0xff]
        %v3507 = vld [vmem:[%s3486 + $0xa0] sm:$0xff]
        %v3508 = vld [vmem:[%s3486 + $0xa8] sm:$0xff]
        %v3509 = vld [vmem:[%s3486 + $0xb0] sm:$0xff]
        %v3510 = vld [vmem:[%s3486 + $0xb8] sm:$0xff]
        %v3511 = vld [vmem:[%s3486 + $0xc0] sm:$0xff]
        %v3512 = vld [vmem:[%s3486 + $0xc8] sm:$0xff]
        %v3513 = vld [vmem:[%s3486 + $0xd0] sm:$0xff]
        %v3514 = vld [vmem:[%s3486 + $0xd8] sm:$0xff]
        %v3515 = vld [vmem:[%s3486 + $0xe0] sm:$0xff]
        %v3516 = vld [vmem:[%s3486 + $0xe8] sm:$0xff]
        %v3517 = vld [vmem:[%s3486 + $0xf0] sm:$0xff]
        %v3518 = vld [vmem:[%s3486 + $0xf8] sm:$0xff]
        %v3519 = vld [vmem:[%s3486 + $0x100] sm:$0xff]
        %v3520 = vld [vmem:[%s3486 + $0x108] sm:$0xff]
        %v3521 = vld [vmem:[%s3486 + $0x110] sm:$0xff]
        %v3522 = vld [vmem:[%s3486 + $0x118] sm:$0xff]
        %v3523 = vld [vmem:[%s3486 + $0x120] sm:$0xff]
        %v3524 = vld [vmem:[%s3486 + $0x128] sm:$0xff]
        %v3525 = vld [vmem:[%s3486 + $0x130] sm:$0xff]
        %v3526 = vld [vmem:[%s3486 + $0x138] sm:$0xff]
        %v3527 = vld [vmem:[%s3486 + $0x140] sm:$0xff]
        %v3528 = vld [vmem:[%s3486 + $0x148] sm:$0xff]
        %v3529 = vld [vmem:[%s3486 + $0x150] sm:$0xff]
        %v3530 = vld [vmem:[%s3486 + $0x158] sm:$0xff]
        %v3531 = vld [vmem:[%s3486 + $0x160] sm:$0xff]
        %v3532 = vld [vmem:[%s3486 + $0x168] sm:$0xff]
        %v3535 = vrot.slane %v3292, 2
        %v3536 = vrot.slane %v3293, 2
        %v3537 = vrot.slane %v3294, 2
        %v3540 = vsel %vm1673, %v3537, 0
        %3542 = vmatprep.subr.mxu0 0.0
        %3543 = vmatpush1.msra.mxu0 %v3487
        %3544 = vmatprep.subr.mxu0 0.0
        %3545 = vmatpush1.msra.mxu0 %v3488
        %3546 = vmatprep.subr.mxu0 0.0
        %3547 = vmatpush1.msra.mxu0 %v3489
        %3548 = vmatprep.subr.mxu0 0.0
        %3549 = vmatpush1.msra.mxu0 %v3490
        %3550 = vmatprep.subr.mxu0 0.0
        %3551 = vmatpush1.msra.mxu0 %v3491
        %3552 = vmatprep.subr.mxu0 0.0
        %3553 = vmatpush1.msra.mxu0 %v3492
        %3554 = vmatprep.subr.mxu0 0.0
        %3555 = vmatpush1.msra.mxu0 %v3493
        %3556 = vmatprep.subr.mxu0 0.0
        %3557 = vmatpush1.msra.mxu0 %v3494
        %3558 = vmatprep.subr.mxu0 0.0
        %3559 = vmatpush1.msra.mxu0 %v3495
        %3560 = vmatprep.subr.mxu0 0.0
        %3561 = vmatpush1.msra.mxu0 %v3496
        %3562 = vmatprep.subr.mxu0 0.0
        %3563 = vmatpush1.msra.mxu0 %v3497
        %3564 = vmatprep.subr.mxu0 0.0
        %3565 = vmatpush1.msra.mxu0 %v3498
        %3566 = vmatprep.subr.mxu0 0.0
        %3567 = vmatpush1.msra.mxu0 %v3499
        %3568 = vmatprep.subr.mxu0 0.0
        %3569 = vmatpush1.msra.mxu0 %v3500
        %3570 = vmatprep.subr.mxu0 0.0
        %3571 = vmatpush1.msra.mxu0 %v3501
        %3572 = vmatprep.subr.mxu0 0.0
        %3573 = vmatpush1.msra.mxu0 %v3502
        %3574 = vmatprep.subr.mxu0 0.0
        %3575 = vmatpush1.msra.mxu0 %v3503
        %3576 = vmatprep.subr.mxu0 0.0
        %3577 = vmatpush1.msra.mxu0 %v3504
        %3578 = vmatprep.subr.mxu0 0.0
        %3579 = vmatpush1.msra.mxu0 %v3505
        %3580 = vmatprep.subr.mxu0 0.0
        %3581 = vmatpush1.msra.mxu0 %v3506
        %3582 = vmatprep.subr.mxu0 0.0
        %3583 = vmatpush1.msra.mxu0 %v3507
        %3584 = vmatprep.subr.mxu0 0.0
        %3585 = vmatpush1.msra.mxu0 %v3508
        %3586 = vmatprep.subr.mxu0 0.0
        %3587 = vmatpush1.msra.mxu0 %v3509
        %3588 = vmatprep.subr.mxu0 0.0
        %3589 = vmatpush1.msra.mxu0 %v3510
        %3590 = vmatprep.subr.mxu0 0.0
        %3591 = vmatpush1.msra.mxu0 %v3511
        %3592 = vmatprep.subr.mxu0 0.0
        %3593 = vmatpush1.msra.mxu0 %v3512
        %3594 = vmatprep.subr.mxu0 0.0
        %3595 = vmatpush1.msra.mxu0 %v3513
        %3596 = vmatprep.subr.mxu0 0.0
        %3597 = vmatpush1.msra.mxu0 %v3514
        %3598 = vmatprep.subr.mxu0 0.0
        %3599 = vmatpush1.msra.mxu0 %v3515
        %3600 = vmatprep.subr.mxu0 0.0
        %3601 = vmatpush1.msra.mxu0 %v3516
        %3602 = vmatprep.subr.mxu0 0.0
        %3603 = vmatpush1.msra.mxu0 %v3517
        %3604 = vmatprep.subr.mxu0 0.0
        %3605 = vmatpush1.msra.mxu0 %v3518
        %3606 = vmatprep.mubr.f32.mxu0 %v3536
        %3607 = vmatmul.mubr.f32.gmra.mrb[0].mxu0 %v3535
        %v3608 = vpop.f32.mrb[0].mxu0
        %v3609 = vadd.f32 0.0, %v3608
        %v3610 = vpop.f32.mrb[0].mxu0
        %3611 = vdwg.mxu0
        %3612 = vmatprep.subr.mxu0 0.0
        %3613 = vmatpush1.msra.mxu0 %v3519
        %3614 = vmatprep.subr.mxu0 0.0
        %3615 = vmatpush1.msra.mxu0 %v3520
        %3616 = vmatprep.subr.mxu0 0.0
        %3617 = vmatpush1.msra.mxu0 %v3521
        %3618 = vmatprep.subr.mxu0 0.0
        %3619 = vmatpush1.msra.mxu0 %v3522
        %3620 = vmatprep.subr.mxu0 0.0
        %3621 = vmatpush1.msra.mxu0 %v3523
        %3622 = vmatprep.subr.mxu0 0.0
        %3623 = vmatpush1.msra.mxu0 %v3524
        %3624 = vmatprep.subr.mxu0 0.0
        %3625 = vmatpush1.msra.mxu0 %v3525
        %3626 = vmatprep.subr.mxu0 0.0
        %3627 = vmatpush1.msra.mxu0 %v3526
        %3628 = vmatprep.subr.mxu0 0.0
        %3629 = vmatpush1.msra.mxu0 %v3527
        %3630 = vmatprep.subr.mxu0 0.0
        %3631 = vmatpush1.msra.mxu0 %v3528
        %3632 = vmatprep.subr.mxu0 0.0
        %3633 = vmatpush1.msra.mxu0 %v3529
        %3634 = vmatprep.subr.mxu0 0.0
        %3635 = vmatpush1.msra.mxu0 %v3530
        %3636 = vmatprep.subr.mxu0 0.0
        %3637 = vmatpush1.msra.mxu0 %v3531
        %3638 = vmatprep.subr.mxu0 0.0
        %3639 = vmatpush1.msra.mxu0 %v3532
        %3640 = vmatprep.subr.mxu0 0.0
        %3641 = vmatpush1.msra.mxu0 0.0
        %3642 = vmatprep.subr.mxu0 0.0
        %3643 = vmatpush1.msra.mxu0 0.0
        %3644 = vmatprep.subr.mxu0 0.0
        %3645 = vmatpush1.msra.mxu0 0.0
        %3646 = vmatprep.subr.mxu0 0.0
        %3647 = vmatpush1.msra.mxu0 0.0
        %3648 = vmatprep.subr.mxu0 0.0
        %3649 = vmatpush1.msra.mxu0 0.0
        %3650 = vmatprep.subr.mxu0 0.0
        %3651 = vmatpush1.msra.mxu0 0.0
        %3652 = vmatprep.subr.mxu0 0.0
        %3653 = vmatpush1.msra.mxu0 0.0
        %3654 = vmatprep.subr.mxu0 0.0
        %3655 = vmatpush1.msra.mxu0 0.0
        %3656 = vmatprep.subr.mxu0 0.0
        %3657 = vmatpush1.msra.mxu0 0.0
        %3658 = vmatprep.subr.mxu0 0.0
        %3659 = vmatpush1.msra.mxu0 0.0
        %3660 = vmatprep.subr.mxu0 0.0
        %3661 = vmatpush1.msra.mxu0 0.0
        %3662 = vmatprep.subr.mxu0 0.0
        %3663 = vmatpush1.msra.mxu0 0.0
        %3664 = vmatprep.subr.mxu0 0.0
        %3665 = vmatpush1.msra.mxu0 0.0
        %3666 = vmatprep.subr.mxu0 0.0
        %3667 = vmatpush1.msra.mxu0 0.0
        %3668 = vmatprep.subr.mxu0 0.0
        %3669 = vmatpush1.msra.mxu0 0.0
        %3670 = vmatprep.subr.mxu0 0.0
        %3671 = vmatpush1.msra.mxu0 0.0
        %3672 = vmatprep.subr.mxu0 0.0
        %3673 = vmatpush1.msra.mxu0 0.0
        %3674 = vmatprep.subr.mxu0 0.0
        %3675 = vmatpush1.msra.mxu0 0.0
        %3676 = vmatprep.mubr.f32.mxu0 0.0
        %3677 = vmatmul.mubr.f32.gmra.mrb[0].mxu0 %v3540
        %v3678 = vpop.f32.mrb[0].mxu0
        %v3679 = vadd.f32 %v3609, %v3678
        %v3680 = vpop.f32.mrb[0].mxu0
        %3681 = vdwg.mxu0
        %v3682 = vadd.f32 %v3485, %v3679
        %s3683 = scalar_lea.vmem [#allocation10], 3680
        %v3684 = vld [vmem:[%s3683] sm:$0xff]
        %v3685 = vld [vmem:[%s3683 + $0x8] sm:$0xff]
        %v3686 = vld [vmem:[%s3683 + $0x10] sm:$0xff]
        %v3687 = vld [vmem:[%s3683 + $0x18] sm:$0xff]
        %v3688 = vld [vmem:[%s3683 + $0x20] sm:$0xff]
        %v3689 = vld [vmem:[%s3683 + $0x28] sm:$0xff]
        %v3690 = vld [vmem:[%s3683 + $0x30] sm:$0xff]
        %v3691 = vld [vmem:[%s3683 + $0x38] sm:$0xff]
        %v3692 = vld [vmem:[%s3683 + $0x40] sm:$0xff]
        %v3693 = vld [vmem:[%s3683 + $0x48] sm:$0xff]
        %v3694 = vld [vmem:[%s3683 + $0x50] sm:$0xff]
        %v3695 = vld [vmem:[%s3683 + $0x58] sm:$0xff]
        %v3696 = vld [vmem:[%s3683 + $0x60] sm:$0xff]
        %v3697 = vld [vmem:[%s3683 + $0x68] sm:$0xff]
        %v3698 = vld [vmem:[%s3683 + $0x70] sm:$0xff]
        %v3699 = vld [vmem:[%s3683 + $0x78] sm:$0xff]
        %v3700 = vld [vmem:[%s3683 + $0x80] sm:$0xff]
        %v3701 = vld [vmem:[%s3683 + $0x88] sm:$0xff]
        %v3702 = vld [vmem:[%s3683 + $0x90] sm:$0xff]
        %v3703 = vld [vmem:[%s3683 + $0x98] sm:$0xff]
        %v3704 = vld [vmem:[%s3683 + $0xa0] sm:$0xff]
        %v3705 = vld [vmem:[%s3683 + $0xa8] sm:$0xff]
        %v3706 = vld [vmem:[%s3683 + $0xb0] sm:$0xff]
        %v3707 = vld [vmem:[%s3683 + $0xb8] sm:$0xff]
        %v3708 = vld [vmem:[%s3683 + $0xc0] sm:$0xff]
        %v3709 = vld [vmem:[%s3683 + $0xc8] sm:$0xff]
        %v3710 = vld [vmem:[%s3683 + $0xd0] sm:$0xff]
        %v3711 = vld [vmem:[%s3683 + $0xd8] sm:$0xff]
        %v3712 = vld [vmem:[%s3683 + $0xe0] sm:$0xff]
        %v3713 = vld [vmem:[%s3683 + $0xe8] sm:$0xff]
        %v3714 = vld [vmem:[%s3683 + $0xf0] sm:$0xff]
        %v3715 = vld [vmem:[%s3683 + $0xf8] sm:$0xff]
        %v3716 = vld [vmem:[%s3683 + $0x100] sm:$0xff]
        %v3717 = vld [vmem:[%s3683 + $0x108] sm:$0xff]
        %v3718 = vld [vmem:[%s3683 + $0x110] sm:$0xff]
        %v3719 = vld [vmem:[%s3683 + $0x118] sm:$0xff]
        %v3720 = vld [vmem:[%s3683 + $0x120] sm:$0xff]
        %v3721 = vld [vmem:[%s3683 + $0x128] sm:$0xff]
        %v3722 = vld [vmem:[%s3683 + $0x130] sm:$0xff]
        %v3723 = vld [vmem:[%s3683 + $0x138] sm:$0xff]
        %v3724 = vld [vmem:[%s3683 + $0x140] sm:$0xff]
        %v3725 = vld [vmem:[%s3683 + $0x148] sm:$0xff]
        %v3726 = vld [vmem:[%s3683 + $0x150] sm:$0xff]
        %v3727 = vld [vmem:[%s3683 + $0x158] sm:$0xff]
        %v3728 = vld [vmem:[%s3683 + $0x160] sm:$0xff]
        %v3729 = vld [vmem:[%s3683 + $0x168] sm:$0xff]
        %v3730 = vrot.slane %v3292, 4
        %v3731 = vrot.slane %v3293, 4
        %v3732 = vrot.slane %v3294, 4
        %v3735 = vsel %vm1673, %v3732, 0
        %3737 = vmatprep.subr.mxu0 0.0
        %3738 = vmatpush1.msra.mxu0 %v3684
        %3739 = vmatprep.subr.mxu0 0.0
        %3740 = vmatpush1.msra.mxu0 %v3685
        %3741 = vmatprep.subr.mxu0 0.0
        %3742 = vmatpush1.msra.mxu0 %v3686
        %3743 = vmatprep.subr.mxu0 0.0
        %3744 = vmatpush1.msra.mxu0 %v3687
        %3745 = vmatprep.subr.mxu0 0.0
        %3746 = vmatpush1.msra.mxu0 %v3688
        %3747 = vmatprep.subr.mxu0 0.0
        %3748 = vmatpush1.msra.mxu0 %v3689
        %3749 = vmatprep.subr.mxu0 0.0
        %3750 = vmatpush1.msra.mxu0 %v3690
        %3751 = vmatprep.subr.mxu0 0.0
        %3752 = vmatpush1.msra.mxu0 %v3691
        %3753 = vmatprep.subr.mxu0 0.0
        %3754 = vmatpush1.msra.mxu0 %v3692
        %3755 = vmatprep.subr.mxu0 0.0
        %3756 = vmatpush1.msra.mxu0 %v3693
        %3757 = vmatprep.subr.mxu0 0.0
        %3758 = vmatpush1.msra.mxu0 %v3694
        %3759 = vmatprep.subr.mxu0 0.0
        %3760 = vmatpush1.msra.mxu0 %v3695
        %3761 = vmatprep.subr.mxu0 0.0
        %3762 = vmatpush1.msra.mxu0 %v3696
        %3763 = vmatprep.subr.mxu0 0.0
        %3764 = vmatpush1.msra.mxu0 %v3697
        %3765 = vmatprep.subr.mxu0 0.0
        %3766 = vmatpush1.msra.mxu0 %v3698
        %3767 = vmatprep.subr.mxu0 0.0
        %3768 = vmatpush1.msra.mxu0 %v3699
        %3769 = vmatprep.subr.mxu0 0.0
        %3770 = vmatpush1.msra.mxu0 %v3700
        %3771 = vmatprep.subr.mxu0 0.0
        %3772 = vmatpush1.msra.mxu0 %v3701
        %3773 = vmatprep.subr.mxu0 0.0
        %3774 = vmatpush1.msra.mxu0 %v3702
        %3775 = vmatprep.subr.mxu0 0.0
        %3776 = vmatpush1.msra.mxu0 %v3703
        %3777 = vmatprep.subr.mxu0 0.0
        %3778 = vmatpush1.msra.mxu0 %v3704
        %3779 = vmatprep.subr.mxu0 0.0
        %3780 = vmatpush1.msra.mxu0 %v3705
        %3781 = vmatprep.subr.mxu0 0.0
        %3782 = vmatpush1.msra.mxu0 %v3706
        %3783 = vmatprep.subr.mxu0 0.0
        %3784 = vmatpush1.msra.mxu0 %v3707
        %3785 = vmatprep.subr.mxu0 0.0
        %3786 = vmatpush1.msra.mxu0 %v3708
        %3787 = vmatprep.subr.mxu0 0.0
        %3788 = vmatpush1.msra.mxu0 %v3709
        %3789 = vmatprep.subr.mxu0 0.0
        %3790 = vmatpush1.msra.mxu0 %v3710
        %3791 = vmatprep.subr.mxu0 0.0
        %3792 = vmatpush1.msra.mxu0 %v3711
        %3793 = vmatprep.subr.mxu0 0.0
        %3794 = vmatpush1.msra.mxu0 %v3712
        %3795 = vmatprep.subr.mxu0 0.0
        %3796 = vmatpush1.msra.mxu0 %v3713
        %3797 = vmatprep.subr.mxu0 0.0
        %3798 = vmatpush1.msra.mxu0 %v3714
        %3799 = vmatprep.subr.mxu0 0.0
        %3800 = vmatpush1.msra.mxu0 %v3715
        %3801 = vmatprep.mubr.f32.mxu0 %v3731
        %3802 = vmatmul.mubr.f32.gmra.mrb[0].mxu0 %v3730
        %v3803 = vpop.f32.mrb[0].mxu0
        %v3804 = vadd.f32 0.0, %v3803
        %v3805 = vpop.f32.mrb[0].mxu0
        %3806 = vdwg.mxu0
        %3807 = vmatprep.subr.mxu0 0.0
        %3808 = vmatpush1.msra.mxu0 %v3716
        %3809 = vmatprep.subr.mxu0 0.0
        %3810 = vmatpush1.msra.mxu0 %v3717
        %3811 = vmatprep.subr.mxu0 0.0
        %3812 = vmatpush1.msra.mxu0 %v3718
        %3813 = vmatprep.subr.mxu0 0.0
        %3814 = vmatpush1.msra.mxu0 %v3719
        %3815 = vmatprep.subr.mxu0 0.0
        %3816 = vmatpush1.msra.mxu0 %v3720
        %3817 = vmatprep.subr.mxu0 0.0
        %3818 = vmatpush1.msra.mxu0 %v3721
        %3819 = vmatprep.subr.mxu0 0.0
        %3820 = vmatpush1.msra.mxu0 %v3722
        %3821 = vmatprep.subr.mxu0 0.0
        %3822 = vmatpush1.msra.mxu0 %v3723
        %3823 = vmatprep.subr.mxu0 0.0
        %3824 = vmatpush1.msra.mxu0 %v3724
        %3825 = vmatprep.subr.mxu0 0.0
        %3826 = vmatpush1.msra.mxu0 %v3725
        %3827 = vmatprep.subr.mxu0 0.0
        %3828 = vmatpush1.msra.mxu0 %v3726
        %3829 = vmatprep.subr.mxu0 0.0
        %3830 = vmatpush1.msra.mxu0 %v3727
        %3831 = vmatprep.subr.mxu0 0.0
        %3832 = vmatpush1.msra.mxu0 %v3728
        %3833 = vmatprep.subr.mxu0 0.0
        %3834 = vmatpush1.msra.mxu0 %v3729
        %3835 = vmatprep.subr.mxu0 0.0
        %3836 = vmatpush1.msra.mxu0 0.0
        %3837 = vmatprep.subr.mxu0 0.0
        %3838 = vmatpush1.msra.mxu0 0.0
        %3839 = vmatprep.subr.mxu0 0.0
        %3840 = vmatpush1.msra.mxu0 0.0
        %3841 = vmatprep.subr.mxu0 0.0
        %3842 = vmatpush1.msra.mxu0 0.0
        %3843 = vmatprep.subr.mxu0 0.0
        %3844 = vmatpush1.msra.mxu0 0.0
        %3845 = vmatprep.subr.mxu0 0.0
        %3846 = vmatpush1.msra.mxu0 0.0
        %3847 = vmatprep.subr.mxu0 0.0
        %3848 = vmatpush1.msra.mxu0 0.0
        %3849 = vmatprep.subr.mxu0 0.0
        %3850 = vmatpush1.msra.mxu0 0.0
        %3851 = vmatprep.subr.mxu0 0.0
        %3852 = vmatpush1.msra.mxu0 0.0
        %3853 = vmatprep.subr.mxu0 0.0
        %3854 = vmatpush1.msra.mxu0 0.0
        %3855 = vmatprep.subr.mxu0 0.0
        %3856 = vmatpush1.msra.mxu0 0.0
        %3857 = vmatprep.subr.mxu0 0.0
        %3858 = vmatpush1.msra.mxu0 0.0
        %3859 = vmatprep.subr.mxu0 0.0
        %3860 = vmatpush1.msra.mxu0 0.0
        %3861 = vmatprep.subr.mxu0 0.0
        %3862 = vmatpush1.msra.mxu0 0.0
        %3863 = vmatprep.subr.mxu0 0.0
        %3864 = vmatpush1.msra.mxu0 0.0
        %3865 = vmatprep.subr.mxu0 0.0
        %3866 = vmatpush1.msra.mxu0 0.0
        %3867 = vmatprep.subr.mxu0 0.0
        %3868 = vmatpush1.msra.mxu0 0.0
        %3869 = vmatprep.subr.mxu0 0.0
        %3870 = vmatpush1.msra.mxu0 0.0
        %3871 = vmatprep.mubr.f32.mxu0 0.0
        %3872 = vmatmul.mubr.f32.gmra.mrb[0].mxu0 %v3735
        %v3873 = vpop.f32.mrb[0].mxu0
        %v3874 = vadd.f32 %v3804, %v3873
        %v3875 = vpop.f32.mrb[0].mxu0
        %3876 = vdwg.mxu0
        %v3877 = vadd.f32 %v3682, %v3874
        %s3878 = scalar_lea.vmem [#allocation10], 4048
        %v3879 = vld [vmem:[%s3878] sm:$0xff]
        %v3880 = vld [vmem:[%s3878 + $0x8] sm:$0xff]
        %v3881 = vld [vmem:[%s3878 + $0x10] sm:$0xff]
        %v3882 = vld [vmem:[%s3878 + $0x18] sm:$0xff]
        %v3883 = vld [vmem:[%s3878 + $0x20] sm:$0xff]
        %v3884 = vld [vmem:[%s3878 + $0x28] sm:$0xff]
        %v3885 = vld [vmem:[%s3878 + $0x30] sm:$0xff]
        %v3886 = vld [vmem:[%s3878 + $0x38] sm:$0xff]
        %v3887 = vld [vmem:[%s3878 + $0x40] sm:$0xff]
        %v3888 = vld [vmem:[%s3878 + $0x48] sm:$0xff]
        %v3889 = vld [vmem:[%s3878 + $0x50] sm:$0xff]
        %v3890 = vld [vmem:[%s3878 + $0x58] sm:$0xff]
        %v3891 = vld [vmem:[%s3878 + $0x60] sm:$0xff]
        %v3892 = vld [vmem:[%s3878 + $0x68] sm:$0xff]
        %v3893 = vld [vmem:[%s3878 + $0x70] sm:$0xff]
        %v3894 = vld [vmem:[%s3878 + $0x78] sm:$0xff]
        %v3895 = vld [vmem:[%s3878 + $0x80] sm:$0xff]
        %v3896 = vld [vmem:[%s3878 + $0x88] sm:$0xff]
        %v3897 = vld [vmem:[%s3878 + $0x90] sm:$0xff]
        %v3898 = vld [vmem:[%s3878 + $0x98] sm:$0xff]
        %v3899 = vld [vmem:[%s3878 + $0xa0] sm:$0xff]
        %v3900 = vld [vmem:[%s3878 + $0xa8] sm:$0xff]
        %v3901 = vld [vmem:[%s3878 + $0xb0] sm:$0xff]
        %v3902 = vld [vmem:[%s3878 + $0xb8] sm:$0xff]
        %v3903 = vld [vmem:[%s3878 + $0xc0] sm:$0xff]
        %v3904 = vld [vmem:[%s3878 + $0xc8] sm:$0xff]
        %v3905 = vld [vmem:[%s3878 + $0xd0] sm:$0xff]
        %v3906 = vld [vmem:[%s3878 + $0xd8] sm:$0xff]
        %v3907 = vld [vmem:[%s3878 + $0xe0] sm:$0xff]
        %v3908 = vld [vmem:[%s3878 + $0xe8] sm:$0xff]
        %v3909 = vld [vmem:[%s3878 + $0xf0] sm:$0xff]
        %v3910 = vld [vmem:[%s3878 + $0xf8] sm:$0xff]
        %v3911 = vld [vmem:[%s3878 + $0x100] sm:$0xff]
        %v3912 = vld [vmem:[%s3878 + $0x108] sm:$0xff]
        %v3913 = vld [vmem:[%s3878 + $0x110] sm:$0xff]
        %v3914 = vld [vmem:[%s3878 + $0x118] sm:$0xff]
        %v3915 = vld [vmem:[%s3878 + $0x120] sm:$0xff]
        %v3916 = vld [vmem:[%s3878 + $0x128] sm:$0xff]
        %v3917 = vld [vmem:[%s3878 + $0x130] sm:$0xff]
        %v3918 = vld [vmem:[%s3878 + $0x138] sm:$0xff]
        %v3919 = vld [vmem:[%s3878 + $0x140] sm:$0xff]
        %v3920 = vld [vmem:[%s3878 + $0x148] sm:$0xff]
        %v3921 = vld [vmem:[%s3878 + $0x150] sm:$0xff]
        %v3922 = vld [vmem:[%s3878 + $0x158] sm:$0xff]
        %v3923 = vld [vmem:[%s3878 + $0x160] sm:$0xff]
        %v3924 = vld [vmem:[%s3878 + $0x168] sm:$0xff]
        %v3925 = vrot.slane %v3292, 6
        %v3926 = vrot.slane %v3293, 6
        %v3927 = vrot.slane %v3294, 6
        %v3930 = vsel %vm1673, %v3927, 0
        %3932 = vmatprep.subr.mxu0 0.0
        %3933 = vmatpush1.msra.mxu0 %v3879
        %3934 = vmatprep.subr.mxu0 0.0
        %3935 = vmatpush1.msra.mxu0 %v3880
        %3936 = vmatprep.subr.mxu0 0.0
        %3937 = vmatpush1.msra.mxu0 %v3881
        %3938 = vmatprep.subr.mxu0 0.0
        %3939 = vmatpush1.msra.mxu0 %v3882
        %3940 = vmatprep.subr.mxu0 0.0
        %3941 = vmatpush1.msra.mxu0 %v3883
        %3942 = vmatprep.subr.mxu0 0.0
        %3943 = vmatpush1.msra.mxu0 %v3884
        %3944 = vmatprep.subr.mxu0 0.0
        %3945 = vmatpush1.msra.mxu0 %v3885
        %3946 = vmatprep.subr.mxu0 0.0
        %3947 = vmatpush1.msra.mxu0 %v3886
        %3948 = vmatprep.subr.mxu0 0.0
        %3949 = vmatpush1.msra.mxu0 %v3887
        %3950 = vmatprep.subr.mxu0 0.0
        %3951 = vmatpush1.msra.mxu0 %v3888
        %3952 = vmatprep.subr.mxu0 0.0
        %3953 = vmatpush1.msra.mxu0 %v3889
        %3954 = vmatprep.subr.mxu0 0.0
        %3955 = vmatpush1.msra.mxu0 %v3890
        %3956 = vmatprep.subr.mxu0 0.0
        %3957 = vmatpush1.msra.mxu0 %v3891
        %3958 = vmatprep.subr.mxu0 0.0
        %3959 = vmatpush1.msra.mxu0 %v3892
        %3960 = vmatprep.subr.mxu0 0.0
        %3961 = vmatpush1.msra.mxu0 %v3893
        %3962 = vmatprep.subr.mxu0 0.0
        %3963 = vmatpush1.msra.mxu0 %v3894
        %3964 = vmatprep.subr.mxu0 0.0
        %3965 = vmatpush1.msra.mxu0 %v3895
        %3966 = vmatprep.subr.mxu0 0.0
        %3967 = vmatpush1.msra.mxu0 %v3896
        %3968 = vmatprep.subr.mxu0 0.0
        %3969 = vmatpush1.msra.mxu0 %v3897
        %3970 = vmatprep.subr.mxu0 0.0
        %3971 = vmatpush1.msra.mxu0 %v3898
        %3972 = vmatprep.subr.mxu0 0.0
        %3973 = vmatpush1.msra.mxu0 %v3899
        %3974 = vmatprep.subr.mxu0 0.0
        %3975 = vmatpush1.msra.mxu0 %v3900
        %3976 = vmatprep.subr.mxu0 0.0
        %3977 = vmatpush1.msra.mxu0 %v3901
        %3978 = vmatprep.subr.mxu0 0.0
        %3979 = vmatpush1.msra.mxu0 %v3902
        %3980 = vmatprep.subr.mxu0 0.0
        %3981 = vmatpush1.msra.mxu0 %v3903
        %3982 = vmatprep.subr.mxu0 0.0
        %3983 = vmatpush1.msra.mxu0 %v3904
        %3984 = vmatprep.subr.mxu0 0.0
        %3985 = vmatpush1.msra.mxu0 %v3905
        %3986 = vmatprep.subr.mxu0 0.0
        %3987 = vmatpush1.msra.mxu0 %v3906
        %3988 = vmatprep.subr.mxu0 0.0
        %3989 = vmatpush1.msra.mxu0 %v3907
        %3990 = vmatprep.subr.mxu0 0.0
        %3991 = vmatpush1.msra.mxu0 %v3908
        %3992 = vmatprep.subr.mxu0 0.0
        %3993 = vmatpush1.msra.mxu0 %v3909
        %3994 = vmatprep.subr.mxu0 0.0
        %3995 = vmatpush1.msra.mxu0 %v3910
        %3996 = vmatprep.mubr.f32.mxu0 %v3926
        %3997 = vmatmul.mubr.f32.gmra.mrb[0].mxu0 %v3925
        %v3998 = vpop.f32.mrb[0].mxu0
        %v3999 = vadd.f32 0.0, %v3998
        %v4000 = vpop.f32.mrb[0].mxu0
        %4001 = vdwg.mxu0
        %4002 = vmatprep.subr.mxu0 0.0
        %4003 = vmatpush1.msra.mxu0 %v3911
        %4004 = vmatprep.subr.mxu0 0.0
        %4005 = vmatpush1.msra.mxu0 %v3912
        %4006 = vmatprep.subr.mxu0 0.0
        %4007 = vmatpush1.msra.mxu0 %v3913
        %4008 = vmatprep.subr.mxu0 0.0
        %4009 = vmatpush1.msra.mxu0 %v3914
        %4010 = vmatprep.subr.mxu0 0.0
        %4011 = vmatpush1.msra.mxu0 %v3915
        %4012 = vmatprep.subr.mxu0 0.0
        %4013 = vmatpush1.msra.mxu0 %v3916
        %4014 = vmatprep.subr.mxu0 0.0
        %4015 = vmatpush1.msra.mxu0 %v3917
        %4016 = vmatprep.subr.mxu0 0.0
        %4017 = vmatpush1.msra.mxu0 %v3918
        %4018 = vmatprep.subr.mxu0 0.0
        %4019 = vmatpush1.msra.mxu0 %v3919
        %4020 = vmatprep.subr.mxu0 0.0
        %4021 = vmatpush1.msra.mxu0 %v3920
        %4022 = vmatprep.subr.mxu0 0.0
        %4023 = vmatpush1.msra.mxu0 %v3921
        %4024 = vmatprep.subr.mxu0 0.0
        %4025 = vmatpush1.msra.mxu0 %v3922
        %4026 = vmatprep.subr.mxu0 0.0
        %4027 = vmatpush1.msra.mxu0 %v3923
        %4028 = vmatprep.subr.mxu0 0.0
        %4029 = vmatpush1.msra.mxu0 %v3924
        %4030 = vmatprep.subr.mxu0 0.0
        %4031 = vmatpush1.msra.mxu0 0.0
        %4032 = vmatprep.subr.mxu0 0.0
        %4033 = vmatpush1.msra.mxu0 0.0
        %4034 = vmatprep.subr.mxu0 0.0
        %4035 = vmatpush1.msra.mxu0 0.0
        %4036 = vmatprep.subr.mxu0 0.0
        %4037 = vmatpush1.msra.mxu0 0.0
        %4038 = vmatprep.subr.mxu0 0.0
        %4039 = vmatpush1.msra.mxu0 0.0
        %4040 = vmatprep.subr.mxu0 0.0
        %4041 = vmatpush1.msra.mxu0 0.0
        %4042 = vmatprep.subr.mxu0 0.0
        %4043 = vmatpush1.msra.mxu0 0.0
        %4044 = vmatprep.subr.mxu0 0.0
        %4045 = vmatpush1.msra.mxu0 0.0
        %4046 = vmatprep.subr.mxu0 0.0
        %4047 = vmatpush1.msra.mxu0 0.0
        %4048 = vmatprep.subr.mxu0 0.0
        %4049 = vmatpush1.msra.mxu0 0.0
        %4050 = vmatprep.subr.mxu0 0.0
        %4051 = vmatpush1.msra.mxu0 0.0
        %4052 = vmatprep.subr.mxu0 0.0
        %4053 = vmatpush1.msra.mxu0 0.0
        %4054 = vmatprep.subr.mxu0 0.0
        %4055 = vmatpush1.msra.mxu0 0.0
        %4056 = vmatprep.subr.mxu0 0.0
        %4057 = vmatpush1.msra.mxu0 0.0
        %4058 = vmatprep.subr.mxu0 0.0
        %4059 = vmatpush1.msra.mxu0 0.0
        %4060 = vmatprep.subr.mxu0 0.0
        %4061 = vmatpush1.msra.mxu0 0.0
        %4062 = vmatprep.subr.mxu0 0.0
        %4063 = vmatpush1.msra.mxu0 0.0
        %4064 = vmatprep.subr.mxu0 0.0
        %4065 = vmatpush1.msra.mxu0 0.0
        %4066 = vmatprep.mubr.f32.mxu0 0.0
        %4067 = vmatmul.mubr.f32.gmra.mrb[0].mxu0 %v3930
        %v4068 = vpop.f32.mrb[0].mxu0
        %v4069 = vadd.f32 %v3999, %v4068
        %v4070 = vpop.f32.mrb[0].mxu0
        %4071 = vdwg.mxu0
        %v4072 = vadd.f32 %v3877, %v4069
        %v4073 = vmax.f32 %v4072, 0.0
        %v4074 = vld [vmem:[%s7] sm:$0xff]
        %v4075 = vld [vmem:[%s7 + $0x8] sm:$0xff]
        %v4076 = vld [vmem:[%s7 + $0x10] sm:$0xff]
        %v4077 = vld [vmem:[%s7 + $0x18] sm:$0xff]
        %v4078 = vld [vmem:[%s7 + $0x20] sm:$0xff]
        %v4079 = vld [vmem:[%s7 + $0x28] sm:$0xff]
        %v4080 = vld [vmem:[%s7 + $0x30] sm:$0xff]
        %v4081 = vld [vmem:[%s7 + $0x38] sm:$0xff]
        %v4082 = vld [vmem:[%s7 + $0x40] sm:$0xff]
        %v4083 = vld [vmem:[%s7 + $0x48] sm:$0xff]
        %v4084 = vld [vmem:[%s7 + $0x50] sm:$0xff]
        %v4085 = vld [vmem:[%s7 + $0x58] sm:$0xff]
        %v4086 = vld [vmem:[%s7 + $0x60] sm:$0xff]
        %v4087 = vld [vmem:[%s7 + $0x68] sm:$0xff]
        %v4088 = vld [vmem:[%s7 + $0x70] sm:$0xff]
        %v4089 = vld [vmem:[%s7 + $0x78] sm:$0xff]
        %v4090 = vld [vmem:[#allocation13] sm:$0x1]
        %4091 = vmatprep.subr.mxu0 0.0
        %4092 = vmatpush1.msra.mxu0 %v4074
        %4093 = vmatprep.subr.mxu0 0.0
        %4094 = vmatpush1.msra.mxu0 %v4075
        %4095 = vmatprep.subr.mxu0 0.0
        %4096 = vmatpush1.msra.mxu0 %v4076
        %4097 = vmatprep.subr.mxu0 0.0
        %4098 = vmatpush1.msra.mxu0 %v4077
        %4099 = vmatprep.subr.mxu0 0.0
        %4100 = vmatpush1.msra.mxu0 %v4078
        %4101 = vmatprep.subr.mxu0 0.0
        %4102 = vmatpush1.msra.mxu0 %v4079
        %4103 = vmatprep.subr.mxu0 0.0
        %4104 = vmatpush1.msra.mxu0 %v4080
        %4105 = vmatprep.subr.mxu0 0.0
        %4106 = vmatpush1.msra.mxu0 %v4081
        %4107 = vmatprep.subr.mxu0 0.0
        %4108 = vmatpush1.msra.mxu0 %v4082
        %4109 = vmatprep.subr.mxu0 0.0
        %4110 = vmatpush1.msra.mxu0 %v4083
        %4111 = vmatprep.subr.mxu0 0.0
        %4112 = vmatpush1.msra.mxu0 %v4084
        %4113 = vmatprep.subr.mxu0 0.0
        %4114 = vmatpush1.msra.mxu0 %v4085
        %4115 = vmatprep.subr.mxu0 0.0
        %4116 = vmatpush1.msra.mxu0 %v4086
        %4117 = vmatprep.subr.mxu0 0.0
        %4118 = vmatpush1.msra.mxu0 %v4087
        %4119 = vmatprep.subr.mxu0 0.0
        %4120 = vmatpush1.msra.mxu0 %v4088
        %4121 = vmatprep.subr.mxu0 0.0
        %4122 = vmatpush1.msra.mxu0 %v4089
        %4123 = vmatprep.subr.mxu0 0.0
        %4124 = vmatpush1.msra.mxu0 0.0
        %4125 = vmatprep.subr.mxu0 0.0
        %4126 = vmatpush1.msra.mxu0 0.0
        %4127 = vmatprep.subr.mxu0 0.0
        %4128 = vmatpush1.msra.mxu0 0.0
        %4129 = vmatprep.subr.mxu0 0.0
        %4130 = vmatpush1.msra.mxu0 0.0
        %4131 = vmatprep.subr.mxu0 0.0
        %4132 = vmatpush1.msra.mxu0 0.0
        %4133 = vmatprep.subr.mxu0 0.0
        %4134 = vmatpush1.msra.mxu0 0.0
        %4135 = vmatprep.subr.mxu0 0.0
        %4136 = vmatpush1.msra.mxu0 0.0
        %4137 = vmatprep.subr.mxu0 0.0
        %4138 = vmatpush1.msra.mxu0 0.0
        %4139 = vmatprep.subr.mxu0 0.0
        %4140 = vmatpush1.msra.mxu0 0.0
        %4141 = vmatprep.subr.mxu0 0.0
        %4142 = vmatpush1.msra.mxu0 0.0
        %4143 = vmatprep.subr.mxu0 0.0
        %4144 = vmatpush1.msra.mxu0 0.0
        %4145 = vmatprep.subr.mxu0 0.0
        %4146 = vmatpush1.msra.mxu0 0.0
        %4147 = vmatprep.subr.mxu0 0.0
        %4148 = vmatpush1.msra.mxu0 0.0
        %4149 = vmatprep.subr.mxu0 0.0
        %4150 = vmatpush1.msra.mxu0 0.0
        %4151 = vmatprep.subr.mxu0 0.0
        %4152 = vmatpush1.msra.mxu0 0.0
        %4153 = vmatprep.subr.mxu0 0.0
        %4154 = vmatpush1.msra.mxu0 0.0
        %4155 = vmatprep.mubr.f32.mxu0 0.0
        %4156 = vmatmul.mubr.f32.gmra.mrb[0].mxu0 %v4073
        %v4157 = vpop.f32.mrb[0].mxu0
        %v4158 = vadd.f32 %v4090, %v4157
        %v4159 = vpop.f32.mrb[0].mxu0
        %4160 = vdwg.mxu0
        %vm4161 = vcmask 73728
        %4162 = vst.msk [vmem:[%s418] sm:$0x1] %vm4161, %v4158
        %s4163 = sand.u32 %s229, 1
        %s4164 = scalar_lea.sflag [#allocation4], %s4163
        %s4165 = sand.u32 %s229, 1
        %s4166 = scalar_lea.vmem [#allocation14], %s4165
        // Predicated region
        $region85: #{net_forward.1} parent=55 // pred_check
          %p4167 = pneg %p239
        $region86: #{net_forward.1} parent=55 // pred_check_branch
          %4169 = sbr.rel (%p4167) target = $region88
        $region87: #{net_forward.1} parent=55 // pred_region
          %s4171 = ssub.s32 16, 16
          %4172 = vsyncadd %s4164, %s4171
          %s4173 = smul.addr %s27, 16
          %s4174 = scalar_lea.hbm %s9, %s4173
          %s4176 = sshll.u32 %s4166, 4
          %s4177 = int_to_ptr.vmem [resolvable:$true] %s4176
          %4179 = dma.vmem_to_hbm [thread:$0]  %s4177, 16, %s4174, %s4164
        $region88: #{net_forward.1} parent=55 // pred_fallthru
          _
      $region56: #{net_forward.1} parent=5 // pred_fallthru
        _
      %p4180 = scmp.le.s32.totalorder 2, %s22
      // Predicated region
      $region89: #{net_forward.1} parent=5 // pred_check
        %p4181 = pneg %p4180
      $region90: #{net_forward.1} parent=5 // pred_check_branch
        %4183 = sbr.rel (%p4181) target = $region92
      $region91: #{net_forward.1} parent=5 // pred_region
        %s4184 = ssub.s32 %s22, 2
        // Predicated region
        $region93: #{net_forward.1} parent=91 // pred_check
          %p4185 = pneg %p245
        $region94: #{net_forward.1} parent=91 // pred_check_branch
          %4187 = sbr.rel (%p4185) target = $region96
        $region95: #{net_forward.1} parent=91 // pred_region
          %s4188 = sand.u32 %s230, 1
          %s4189 = scalar_lea.sflag [#allocation4], %s4188
          %s4190 = sand.u32 %s230, 1
          %s4191 = scalar_lea.vmem [#allocation14], %s4190
          %4192 = dma.done %s4189, 16
        $region96: #{net_forward.1} parent=91 // pred_fallthru
          _
      $region92: #{net_forward.1} parent=5 // pred_fallthru
        _
    $region6: #{net_forward.1} parent=1 // loop_footer
      %s26 = sadd.s32 1, %s22
    $region7: #{net_forward.1} parent=1 // loop_footer_branch
      %21 = sbr.rel target = $region3
    $region8: #{net_forward.1} parent=1 // loop_exit
      _
    %4193 = vsyncpa [#allocation3], 1
    %s4194 = scalar_lea.sflag [#allocation3], 1
    %4195 = vsyncpa %s4194, 1
    %4196 = vsyncpa [#allocation6], 1
    %4197 = vsyncpa [#allocation9], 1
    %4198 = vsyncpa [#allocation12], 1
    %4199 = vsyncpa [#allocation4], 1
    %s4200 = scalar_lea.sflag [#allocation4], 1
    %4201 = vsyncpa %s4200, 1

</llo_original>
